<compile_context>
chip_gen: v5e
topology: v5e:2x2
jax: 0.10.0
libtpu: 0.0.40
codegen_flags: <defaults>
</compile_context>

<pallas_src>
import functools

import jax
import jax.numpy as jnp
from jax import lax
from jax.experimental import pallas as pl
from jax.experimental.pallas import tpu as pltpu

# Keep f32 matmuls exact in both the XLA reference and the Pallas kernel so the
# correctness check is tight.
jax.config.update("jax_default_matmul_precision", "highest")

LN_EPS = 1e-12  # HF BERT LayerNorm eps
NEG_INF = -1e9  # additive attention-mask value


# ----------------------------------------------------------------------------
# Math helpers shared by the Pallas kernel and the pure-JAX reference.
# ----------------------------------------------------------------------------
def _dot(a, b):
    """a @ b, contracting last dim of a with first dim of b (f32 accumulate)."""
    return lax.dot_general(a, b, (((a.ndim - 1,), (0,)), ((), ())),
                           preferred_element_type=jnp.float32)


def _dot_t(a, b):
    """a @ b.T, contracting the last dims of both (no explicit transpose)."""
    return lax.dot_general(a, b, (((a.ndim - 1,), (b.ndim - 1,)), ((), ())),
                           preferred_element_type=jnp.float32)


def _layer_norm(x, g, b):
    mu = jnp.mean(x, axis=-1, keepdims=True)
    var = jnp.mean((x - mu) ** 2, axis=-1, keepdims=True)
    return (x - mu) * lax.rsqrt(var + LN_EPS) * g + b


def _softmax(x):
    m = jnp.max(x, axis=-1, keepdims=True)
    e = jnp.exp(x - m)
    return e / jnp.sum(e, axis=-1, keepdims=True)


def _encoder_stack(h, amask, lng, lnb, wqkv, bqkv, wo, bo,
                   ln1g, ln1b, w1, b1, w2, b2, ln2g, ln2b,
                   *, n_layers, n_heads):
    """BERT encoder on one sequence.

    h: (S, H) summed embeddings, amask: (1, S) additive mask.
    Stacked per-layer params may be Pallas Refs (kernel) or arrays (reference);
    they are only accessed as `param[l]`.
    """
    S, H = h.shape
    dh = H // n_heads
    scale = 1.0 / float(dh) ** 0.5

    # Embedding LayerNorm (+ Dropout p=0.1 in HF BERT: identity at inference).
    h = _layer_norm(h, lng, lnb)

    for l in range(n_layers):
        wqkv_l, bqkv_l = wqkv[l], bqkv[l]
        wo_l, bo_l = wo[l], bo[l]

        # ---- self-attention -------------------------------------------------
        qkv = _dot(h, wqkv_l) + bqkv_l                     # (S, 3H), fused QKV matmul
        ctx = jnp.zeros((S, H), jnp.float32)
        for hd in range(n_heads):
            lo = hd * dh
            q = qkv[:, lo:lo + dh]                         # (S, dh)
            k = qkv[:, H + lo:H + lo + dh]
            v = qkv[:, 2 * H + lo:2 * H + lo + dh]
            s = _dot_t(q, k) * scale + amask               # (S, S)
            p = _softmax(s)
            # concat(heads) @ Wo == sum_h head_h @ Wo[rows of head h]
            ctx = ctx + _dot(_dot(p, v), wo_l[lo:lo + dh, :])
        h = _layer_norm(h + ctx + bo_l, ln1g[l], ln1b[l])  # attn dropout = identity

        # ---- feed-forward ----------------------------------------------------
        ff = jax.nn.gelu(_dot(h, w1[l]) + b1[l], approximate=True)
        ff = _dot(ff, w2[l]) + b2[l]
        h = _layer_norm(h + ff, ln2g[l], ln2b[l])          # ffn dropout = identity
    return h


# ----------------------------------------------------------------------------
# Pallas kernel: one sequence per grid step (batch axis is "parallel").
# ----------------------------------------------------------------------------
def _textbert_kernel(x_ref, amask_ref, lng_ref, lnb_ref,
                     wqkv_ref, bqkv_ref, wo_ref, bo_ref,
                     ln1g_ref, ln1b_ref, w1_ref, b1_ref,
                     w2_ref, b2_ref, ln2g_ref, ln2b_ref,
                     out_ref, *, n_layers, n_heads):
    h = _encoder_stack(
        x_ref[0], amask_ref[0],                 # (S, H), (1, S)
        lng_ref[...], lnb_ref[...],
        wqkv_ref, bqkv_ref, wo_ref, bo_ref,
        ln1g_ref, ln1b_ref, w1_ref, b1_ref,
        w2_ref, b2_ref, ln2g_ref, ln2b_ref,
        n_layers=n_layers, n_heads=n_heads)
    # pooling='cls' (token 0) -> nn.ReLU -> nn.Dropout(0.2) (identity at inference)
    out_ref[0] = jnp.maximum(h[0:1, :], 0.0).astype(out_ref.dtype)


# ----------------------------------------------------------------------------
# Wrapper / glue.
# ----------------------------------------------------------------------------
def _embed(inp, params):
    """Embedding lookups (word + position + token-type) and additive attention mask.

    Gathers stay in XLA: at real scale the 30522 x 768 word table does not fit VMEM.
    """
    ids = inp["input_ids"]
    B, S = ids.shape
    emb = jnp.take(params["word_emb"], ids, axis=0)
    emb = emb + params["pos_emb"][None, :S, :]
    tids = inp.get("token_type_ids")
    if tids is not None:
        emb = emb + jnp.take(params["type_emb"], tids, axis=0)
    amask01 = inp["attention_mask"].astype(jnp.float32)
    amask = ((1.0 - amask01) * NEG_INF).reshape(B, 1, S)
    return emb.astype(jnp.float32), amask


def textbert_forward(inp, params, *, n_heads):
    """TextBert.forward: returns (B, hidden) pooled text features."""
    emb, amask = _embed(inp, params)
    B, S, H = emb.shape
    L = params["wqkv"].shape[0]
    F = params["w1"].shape[2]

    kernel = functools.partial(_textbert_kernel, n_layers=L, n_heads=n_heads)
    c3 = lambda b: (0, 0, 0)   # weights: same block every grid step -> VMEM-resident
    c2 = lambda b: (0, 0)

    pooled = pl.pallas_call(
        kernel,
        grid=(B,),
        in_specs=[
            pl.BlockSpec((1, S, H), lambda b: (b, 0, 0)),   # hidden-state tile (pipelined)
            pl.BlockSpec((1, 1, S), lambda b: (b, 0, 0)),   # additive attention mask tile
            pl.BlockSpec((1, H), c2),                       # embedding LN gamma
            pl.BlockSpec((1, H), c2),                       # embedding LN beta
            pl.BlockSpec((L, H, 3 * H), c3),                # fused QKV weight
            pl.BlockSpec((L, 1, 3 * H), c3),                # fused QKV bias
            pl.BlockSpec((L, H, H), c3),                    # attention output proj W
            pl.BlockSpec((L, 1, H), c3),                    # attention output proj b
            pl.BlockSpec((L, 1, H), c3),                    # LN1 gamma
            pl.BlockSpec((L, 1, H), c3),                    # LN1 beta
            pl.BlockSpec((L, H, F), c3),                    # FFN W1
            pl.BlockSpec((L, 1, F), c3),                    # FFN b1
            pl.BlockSpec((L, F, H), c3),                    # FFN W2
            pl.BlockSpec((L, 1, H), c3),                    # FFN b2
            pl.BlockSpec((L, 1, H), c3),                    # LN2 gamma
            pl.BlockSpec((L, 1, H), c3),                    # LN2 beta
        ],
        out_specs=pl.BlockSpec((1, 1, H), lambda b: (b, 0, 0)),
        out_shape=jax.ShapeDtypeStruct((B, 1, H), jnp.float32),
        compiler_params=pltpu.CompilerParams(
            dimension_semantics=("parallel",)),             # shard batch across TCs (v7x)
    )(emb, amask,
      params["ln_emb_g"], params["ln_emb_b"],
      params["wqkv"], params["bqkv"], params["wo"], params["bo"],
      params["ln1_g"], params["ln1_b"], params["w1"], params["b1"],
      params["w2"], params["b2"], params["ln2_g"], params["ln2_b"])

    return pooled.reshape(B, H)


def _reference_forward(inp, params, *, n_heads):
    """Pure-JAX reference (same math helpers) for the correctness check."""
    emb, amask = _embed(inp, params)
    L = params["wqkv"].shape[0]

    def one(x, m):
        return _encoder_stack(
            x, m, params["ln_emb_g"], params["ln_emb_b"],
            params["wqkv"], params["bqkv"], params["wo"], params["bo"],
            params["ln1_g"], params["ln1_b"], params["w1"], params["b1"],
            params["w2"], params["b2"], params["ln2_g"], params["ln2_b"],
            n_layers=L, n_heads=n_heads)

    enc = jax.vmap(one)(emb, amask)            # (B, S, H) last hidden state
    return jnp.maximum(enc[:, 0, :], 0.0)      # cls pooling -> ReLU (-> dropout identity)


if __name__ == "__main__":
    # Small shapes consistent with the module: batch=2, seq=8, hidden=32.
    B, S, H, NH, L = 2, 8, 32, 2, 2
    F = 4 * H                       # 128: lane-dense FFN width
    VOCAB, MAX_POS, TYPES = 64, 16, 2

    keys = jax.random.split(jax.random.PRNGKey(0), 20)

    def nrm(k, shape, s=0.02):
        return s * jax.random.normal(k, shape, jnp.float32)

    params = {
        "word_emb": nrm(keys[0], (VOCAB, H)),
        "pos_emb":  nrm(keys[1], (MAX_POS, H)),
        "type_emb": nrm(keys[2], (TYPES, H)),
        "ln_emb_g": 1.0 + nrm(keys[3], (1, H), 0.1),
        "ln_emb_b": nrm(keys[4], (1, H), 0.1),
        "wqkv":     nrm(keys[5], (L, H, 3 * H)),
        "bqkv":     nrm(keys[6], (L, 1, 3 * H)),
        "wo":       nrm(keys[7], (L, H, H)),
        "bo":       nrm(keys[8], (L, 1, H)),
        "ln1_g":    1.0 + nrm(keys[9], (L, 1, H), 0.1),
        "ln1_b":    nrm(keys[10], (L, 1, H), 0.1),
        "w1":       nrm(keys[11], (L, H, F)),
        "b1":       nrm(keys[12], (L, 1, F)),
        "w2":       nrm(keys[13], (L, F, H)),
        "b2":       nrm(keys[14], (L, 1, H)),
        "ln2_g":    1.0 + nrm(keys[15], (L, 1, H), 0.1),
        "ln2_b":    nrm(keys[16], (L, 1, H), 0.1),
    }

    lengths = jnp.array([S, S - 3], jnp.int32)   # second sequence has 3 padded tokens
    inp = {
        "input_ids": jax.random.randint(keys[17], (B, S), 0, VOCAB, jnp.int32),
        "attention_mask": (jnp.arange(S)[None, :] < lengths[:, None]).astype(jnp.int32),
        "token_type_ids": jnp.broadcast_to(
            (jnp.arange(S)[None, :] >= S // 2).astype(jnp.int32), (B, S)),
    }

    out = textbert_forward(inp, params, n_heads=NH)
    jax.block_until_ready(out)

    ref = _reference_forward(inp, params, n_heads=NH)
    assert out.shape == (B, H), out.shape
    max_err = float(jnp.max(jnp.abs(out - ref)))
    assert jnp.allclose(out, ref, atol=5e-4, rtol=5e-4), f"max_err={max_err}"

    print("KERNEL_OK")
</pallas_src>

<mosaic_0001>
module attributes {stable_mosaic.version = 11 : i64} {
  func.func @_textbert_kernel(%arg0: i32, %arg1: memref<1x8x32xf32, #tpu.memory_space<vmem>>, %arg2: memref<1x1x8xf32, #tpu.memory_space<vmem>>, %arg3: memref<1x32xf32, #tpu.memory_space<vmem>>, %arg4: memref<1x32xf32, #tpu.memory_space<vmem>>, %arg5: memref<2x32x96xf32, #tpu.memory_space<vmem>>, %arg6: memref<2x1x96xf32, #tpu.memory_space<vmem>>, %arg7: memref<2x32x32xf32, #tpu.memory_space<vmem>>, %arg8: memref<2x1x32xf32, #tpu.memory_space<vmem>>, %arg9: memref<2x1x32xf32, #tpu.memory_space<vmem>>, %arg10: memref<2x1x32xf32, #tpu.memory_space<vmem>>, %arg11: memref<2x32x128xf32, #tpu.memory_space<vmem>>, %arg12: memref<2x1x128xf32, #tpu.memory_space<vmem>>, %arg13: memref<2x128x32xf32, #tpu.memory_space<vmem>>, %arg14: memref<2x1x32xf32, #tpu.memory_space<vmem>>, %arg15: memref<2x1x32xf32, #tpu.memory_space<vmem>>, %arg16: memref<2x1x32xf32, #tpu.memory_space<vmem>>, %arg17: memref<1x1x32xf32, #tpu.memory_space<vmem>>) attributes {dimension_semantics = [#tpu.dimension_semantics<parallel>], iteration_bounds = array<i64: 2>, scalar_prefetch = 0 : i64, scratch_operands = 0 : i64, tpu.core_type = #tpu.core_type<tc>, window_params = [{transform_indices = @transform_0, window_bounds = array<i64: 1, 8, 32>}, {transform_indices = @transform_1, window_bounds = array<i64: 1, 1, 8>}, {pipeline_mode = #tpu.pipeline_mode<synchronous>, transform_indices = @transform_2, window_bounds = array<i64: 1, 32>}, {pipeline_mode = #tpu.pipeline_mode<synchronous>, transform_indices = @transform_3, window_bounds = array<i64: 1, 32>}, {pipeline_mode = #tpu.pipeline_mode<synchronous>, transform_indices = @transform_4, window_bounds = array<i64: 2, 32, 96>}, {pipeline_mode = #tpu.pipeline_mode<synchronous>, transform_indices = @transform_5, window_bounds = array<i64: 2, 1, 96>}, {pipeline_mode = #tpu.pipeline_mode<synchronous>, transform_indices = @transform_6, window_bounds = array<i64: 2, 32, 32>}, {pipeline_mode = #tpu.pipeline_mode<synchronous>, transform_indices = @transform_7, window_bounds = array<i64: 2, 1, 32>}, {pipeline_mode = #tpu.pipeline_mode<synchronous>, transform_indices = @transform_8, window_bounds = array<i64: 2, 1, 32>}, {pipeline_mode = #tpu.pipeline_mode<synchronous>, transform_indices = @transform_9, window_bounds = array<i64: 2, 1, 32>}, {pipeline_mode = #tpu.pipeline_mode<synchronous>, transform_indices = @transform_10, window_bounds = array<i64: 2, 32, 128>}, {pipeline_mode = #tpu.pipeline_mode<synchronous>, transform_indices = @transform_11, window_bounds = array<i64: 2, 1, 128>}, {pipeline_mode = #tpu.pipeline_mode<synchronous>, transform_indices = @transform_12, window_bounds = array<i64: 2, 128, 32>}, {pipeline_mode = #tpu.pipeline_mode<synchronous>, transform_indices = @transform_13, window_bounds = array<i64: 2, 1, 32>}, {pipeline_mode = #tpu.pipeline_mode<synchronous>, transform_indices = @transform_14, window_bounds = array<i64: 2, 1, 32>}, {pipeline_mode = #tpu.pipeline_mode<synchronous>, transform_indices = @transform_15, window_bounds = array<i64: 2, 1, 32>}, {transform_indices = @transform_16, window_bounds = array<i64: 1, 1, 32>}]} {
    %c0 = arith.constant 0 : index
    %c0_0 = arith.constant 0 : index
    %c0_1 = arith.constant 0 : index
    %0 = vector.load %arg1[%c0, %c0_0, %c0_1] : memref<1x8x32xf32, #tpu.memory_space<vmem>>, vector<1x8x32xf32>
    %1 = vector.shape_cast %0 : vector<1x8x32xf32> to vector<8x32xf32>
    %c0_2 = arith.constant 0 : index
    %c0_3 = arith.constant 0 : index
    %c0_4 = arith.constant 0 : index
    %2 = vector.load %arg2[%c0_2, %c0_3, %c0_4] : memref<1x1x8xf32, #tpu.memory_space<vmem>>, vector<1x1x8xf32>
    %3 = vector.shape_cast %2 : vector<1x1x8xf32> to vector<1x8xf32>
    %c0_5 = arith.constant 0 : index
    %c0_6 = arith.constant 0 : index
    %4 = vector.load %arg3[%c0_5, %c0_6] : memref<1x32xf32, #tpu.memory_space<vmem>>, vector<1x32xf32>
    %c0_7 = arith.constant 0 : index
    %c0_8 = arith.constant 0 : index
    %5 = vector.load %arg4[%c0_7, %c0_8] : memref<1x32xf32, #tpu.memory_space<vmem>>, vector<1x32xf32>
    %cst = arith.constant dense<0.000000e+00> : vector<8xf32>
    %6 = vector.multi_reduction <add>, %1, %cst [1] : vector<8x32xf32> to vector<8xf32>
    %7 = vector.shape_cast %6 : vector<8xf32> to vector<8x1xf32>
    %cst_9 = arith.constant 3.200000e+01 : f32
    %8 = vector.broadcast %cst_9 : f32 to vector<8x1xf32>
    %9 = arith.divf %7, %8 : vector<8x1xf32>
    %10 = vector.broadcast %9 : vector<8x1xf32> to vector<8x32xf32>
    %11 = arith.subf %1, %10 : vector<8x32xf32>
    %12 = arith.mulf %11, %11 : vector<8x32xf32>
    %cst_10 = arith.constant dense<0.000000e+00> : vector<8xf32>
    %13 = vector.multi_reduction <add>, %12, %cst_10 [1] : vector<8x32xf32> to vector<8xf32>
    %14 = vector.shape_cast %13 : vector<8xf32> to vector<8x1xf32>
    %cst_11 = arith.constant 3.200000e+01 : f32
    %15 = vector.broadcast %cst_11 : f32 to vector<8x1xf32>
    %16 = arith.divf %14, %15 : vector<8x1xf32>
    %17 = vector.broadcast %9 : vector<8x1xf32> to vector<8x32xf32>
    %18 = arith.subf %1, %17 : vector<8x32xf32>
    %cst_12 = arith.constant 9.99999996E-13 : f32
    %19 = vector.broadcast %cst_12 : f32 to vector<8x1xf32>
    %20 = arith.addf %16, %19 : vector<8x1xf32>
    %21 = math.rsqrt %20 : vector<8x1xf32>
    %22 = vector.broadcast %21 : vector<8x1xf32> to vector<8x32xf32>
    %23 = arith.mulf %18, %22 : vector<8x32xf32>
    %24 = vector.broadcast %4 : vector<1x32xf32> to vector<8x32xf32>
    %25 = arith.mulf %23, %24 : vector<8x32xf32>
    %26 = vector.broadcast %5 : vector<1x32xf32> to vector<8x32xf32>
    %27 = arith.addf %25, %26 : vector<8x32xf32>
    %c0_13 = arith.constant 0 : index
    %c0_14 = arith.constant 0 : index
    %c0_15 = arith.constant 0 : index
    %28 = vector.load %arg5[%c0_13, %c0_14, %c0_15] : memref<2x32x96xf32, #tpu.memory_space<vmem>>, vector<1x32x96xf32>
    %29 = vector.shape_cast %28 : vector<1x32x96xf32> to vector<32x96xf32>
    %c0_16 = arith.constant 0 : index
    %c0_17 = arith.constant 0 : index
    %c0_18 = arith.constant 0 : index
    %30 = vector.load %arg6[%c0_16, %c0_17, %c0_18] : memref<2x1x96xf32, #tpu.memory_space<vmem>>, vector<1x1x96xf32>
    %31 = vector.shape_cast %30 : vector<1x1x96xf32> to vector<1x96xf32>
    %c0_19 = arith.constant 0 : index
    %c0_20 = arith.constant 0 : index
    %c0_21 = arith.constant 0 : index
    %32 = vector.load %arg7[%c0_19, %c0_20, %c0_21] : memref<2x32x32xf32, #tpu.memory_space<vmem>>, vector<1x32x32xf32>
    %33 = vector.shape_cast %32 : vector<1x32x32xf32> to vector<32x32xf32>
    %c0_22 = arith.constant 0 : index
    %c0_23 = arith.constant 0 : index
    %c0_24 = arith.constant 0 : index
    %34 = vector.load %arg8[%c0_22, %c0_23, %c0_24] : memref<2x1x32xf32, #tpu.memory_space<vmem>>, vector<1x1x32xf32>
    %35 = vector.shape_cast %34 : vector<1x1x32xf32> to vector<1x32xf32>
    %cst_25 = arith.constant dense<0.000000e+00> : vector<8x96xf32>
    %36 = tpu.matmul %27, %29, %cst_25 {dimension_numbers = #tpu.dot_dimension_numbers<[1], [0], [0], [1], [0, 0, 1, 1], [], []>, precision = #tpu.contract_precision<fp32>} : vector<8x32xf32>, vector<32x96xf32>, vector<8x96xf32> -> vector<8x96xf32>
    %37 = vector.broadcast %31 : vector<1x96xf32> to vector<8x96xf32>
    %38 = arith.addf %36, %37 : vector<8x96xf32>
    %cst_26 = arith.constant 0.000000e+00 : f32
    %39 = vector.broadcast %cst_26 : f32 to vector<8x32xf32>
    %40 = vector.extract_strided_slice %38 {offsets = [0, 0], sizes = [8, 16], strides = [1, 1]} : vector<8x96xf32> to vector<8x16xf32>
    %41 = vector.extract_strided_slice %38 {offsets = [0, 32], sizes = [8, 16], strides = [1, 1]} : vector<8x96xf32> to vector<8x16xf32>
    %42 = vector.extract_strided_slice %38 {offsets = [0, 64], sizes = [8, 16], strides = [1, 1]} : vector<8x96xf32> to vector<8x16xf32>
    %cst_27 = arith.constant dense<0.000000e+00> : vector<8x8xf32>
    %43 = tpu.matmul %40, %41, %cst_27 {dimension_numbers = #tpu.dot_dimension_numbers<[1], [1], [0], [0], [0, 0, 1, 0], [], []>, precision = #tpu.contract_precision<fp32>} : vector<8x16xf32>, vector<8x16xf32>, vector<8x8xf32> -> vector<8x8xf32>
    %cst_28 = arith.constant 2.500000e-01 : f32
    %44 = vector.broadcast %cst_28 : f32 to vector<8x8xf32>
    %45 = arith.mulf %43, %44 : vector<8x8xf32>
    %46 = vector.broadcast %3 : vector<1x8xf32> to vector<8x8xf32>
    %47 = arith.addf %45, %46 : vector<8x8xf32>
    %cst_29 = arith.constant dense<0xFF800000> : vector<8xf32>
    %48 = vector.multi_reduction <maximumf>, %47, %cst_29 [1] : vector<8x8xf32> to vector<8xf32>
    %49 = vector.shape_cast %48 : vector<8xf32> to vector<8x1xf32>
    %50 = vector.broadcast %49 : vector<8x1xf32> to vector<8x8xf32>
    %51 = arith.subf %47, %50 : vector<8x8xf32>
    %52 = math.exp %51 : vector<8x8xf32>
    %cst_30 = arith.constant dense<0.000000e+00> : vector<8xf32>
    %53 = vector.multi_reduction <add>, %52, %cst_30 [1] : vector<8x8xf32> to vector<8xf32>
    %54 = vector.shape_cast %53 : vector<8xf32> to vector<8x1xf32>
    %55 = vector.broadcast %54 : vector<8x1xf32> to vector<8x8xf32>
    %56 = arith.divf %52, %55 : vector<8x8xf32>
    %cst_31 = arith.constant dense<0.000000e+00> : vector<8x16xf32>
    %57 = tpu.matmul %56, %42, %cst_31 {dimension_numbers = #tpu.dot_dimension_numbers<[1], [0], [0], [1], [0, 0, 1, 1], [], []>, precision = #tpu.contract_precision<fp32>} : vector<8x8xf32>, vector<8x16xf32>, vector<8x16xf32> -> vector<8x16xf32>
    %58 = vector.extract_strided_slice %33 {offsets = [0, 0], sizes = [16, 32], strides = [1, 1]} : vector<32x32xf32> to vector<16x32xf32>
    %cst_32 = arith.constant dense<0.000000e+00> : vector<8x32xf32>
    %59 = tpu.matmul %57, %58, %cst_32 {dimension_numbers = #tpu.dot_dimension_numbers<[1], [0], [0], [1], [0, 0, 1, 1], [], []>, precision = #tpu.contract_precision<fp32>} : vector<8x16xf32>, vector<16x32xf32>, vector<8x32xf32> -> vector<8x32xf32>
    %60 = arith.addf %39, %59 : vector<8x32xf32>
    %61 = vector.extract_strided_slice %38 {offsets = [0, 16], sizes = [8, 16], strides = [1, 1]} : vector<8x96xf32> to vector<8x16xf32>
    %62 = vector.extract_strided_slice %38 {offsets = [0, 48], sizes = [8, 16], strides = [1, 1]} : vector<8x96xf32> to vector<8x16xf32>
    %63 = vector.extract_strided_slice %38 {offsets = [0, 80], sizes = [8, 16], strides = [1, 1]} : vector<8x96xf32> to vector<8x16xf32>
    %cst_33 = arith.constant dense<0.000000e+00> : vector<8x8xf32>
    %64 = tpu.matmul %61, %62, %cst_33 {dimension_numbers = #tpu.dot_dimension_numbers<[1], [1], [0], [0], [0, 0, 1, 0], [], []>, precision = #tpu.contract_precision<fp32>} : vector<8x16xf32>, vector<8x16xf32>, vector<8x8xf32> -> vector<8x8xf32>
    %cst_34 = arith.constant 2.500000e-01 : f32
    %65 = vector.broadcast %cst_34 : f32 to vector<8x8xf32>
    %66 = arith.mulf %64, %65 : vector<8x8xf32>
    %67 = vector.broadcast %3 : vector<1x8xf32> to vector<8x8xf32>
    %68 = arith.addf %66, %67 : vector<8x8xf32>
    %cst_35 = arith.constant dense<0xFF800000> : vector<8xf32>
    %69 = vector.multi_reduction <maximumf>, %68, %cst_35 [1] : vector<8x8xf32> to vector<8xf32>
    %70 = vector.shape_cast %69 : vector<8xf32> to vector<8x1xf32>
    %71 = vector.broadcast %70 : vector<8x1xf32> to vector<8x8xf32>
    %72 = arith.subf %68, %71 : vector<8x8xf32>
    %73 = math.exp %72 : vector<8x8xf32>
    %cst_36 = arith.constant dense<0.000000e+00> : vector<8xf32>
    %74 = vector.multi_reduction <add>, %73, %cst_36 [1] : vector<8x8xf32> to vector<8xf32>
    %75 = vector.shape_cast %74 : vector<8xf32> to vector<8x1xf32>
    %76 = vector.broadcast %75 : vector<8x1xf32> to vector<8x8xf32>
    %77 = arith.divf %73, %76 : vector<8x8xf32>
    %cst_37 = arith.constant dense<0.000000e+00> : vector<8x16xf32>
    %78 = tpu.matmul %77, %63, %cst_37 {dimension_numbers = #tpu.dot_dimension_numbers<[1], [0], [0], [1], [0, 0, 1, 1], [], []>, precision = #tpu.contract_precision<fp32>} : vector<8x8xf32>, vector<8x16xf32>, vector<8x16xf32> -> vector<8x16xf32>
    %79 = vector.extract_strided_slice %33 {offsets = [16, 0], sizes = [16, 32], strides = [1, 1]} : vector<32x32xf32> to vector<16x32xf32>
    %cst_38 = arith.constant dense<0.000000e+00> : vector<8x32xf32>
    %80 = tpu.matmul %78, %79, %cst_38 {dimension_numbers = #tpu.dot_dimension_numbers<[1], [0], [0], [1], [0, 0, 1, 1], [], []>, precision = #tpu.contract_precision<fp32>} : vector<8x16xf32>, vector<16x32xf32>, vector<8x32xf32> -> vector<8x32xf32>
    %81 = arith.addf %60, %80 : vector<8x32xf32>
    %82 = arith.addf %27, %81 : vector<8x32xf32>
    %83 = vector.broadcast %35 : vector<1x32xf32> to vector<8x32xf32>
    %84 = arith.addf %82, %83 : vector<8x32xf32>
    %c0_39 = arith.constant 0 : index
    %c0_40 = arith.constant 0 : index
    %c0_41 = arith.constant 0 : index
    %85 = vector.load %arg9[%c0_39, %c0_40, %c0_41] : memref<2x1x32xf32, #tpu.memory_space<vmem>>, vector<1x1x32xf32>
    %86 = vector.shape_cast %85 : vector<1x1x32xf32> to vector<1x32xf32>
    %c0_42 = arith.constant 0 : index
    %c0_43 = arith.constant 0 : index
    %c0_44 = arith.constant 0 : index
    %87 = vector.load %arg10[%c0_42, %c0_43, %c0_44] : memref<2x1x32xf32, #tpu.memory_space<vmem>>, vector<1x1x32xf32>
    %88 = vector.shape_cast %87 : vector<1x1x32xf32> to vector<1x32xf32>
    %cst_45 = arith.constant dense<0.000000e+00> : vector<8xf32>
    %89 = vector.multi_reduction <add>, %84, %cst_45 [1] : vector<8x32xf32> to vector<8xf32>
    %90 = vector.shape_cast %89 : vector<8xf32> to vector<8x1xf32>
    %cst_46 = arith.constant 3.200000e+01 : f32
    %91 = vector.broadcast %cst_46 : f32 to vector<8x1xf32>
    %92 = arith.divf %90, %91 : vector<8x1xf32>
    %93 = vector.broadcast %92 : vector<8x1xf32> to vector<8x32xf32>
    %94 = arith.subf %84, %93 : vector<8x32xf32>
    %95 = arith.mulf %94, %94 : vector<8x32xf32>
    %cst_47 = arith.constant dense<0.000000e+00> : vector<8xf32>
    %96 = vector.multi_reduction <add>, %95, %cst_47 [1] : vector<8x32xf32> to vector<8xf32>
    %97 = vector.shape_cast %96 : vector<8xf32> to vector<8x1xf32>
    %cst_48 = arith.constant 3.200000e+01 : f32
    %98 = vector.broadcast %cst_48 : f32 to vector<8x1xf32>
    %99 = arith.divf %97, %98 : vector<8x1xf32>
    %100 = vector.broadcast %92 : vector<8x1xf32> to vector<8x32xf32>
    %101 = arith.subf %84, %100 : vector<8x32xf32>
    %cst_49 = arith.constant 9.99999996E-13 : f32
    %102 = vector.broadcast %cst_49 : f32 to vector<8x1xf32>
    %103 = arith.addf %99, %102 : vector<8x1xf32>
    %104 = math.rsqrt %103 : vector<8x1xf32>
    %105 = vector.broadcast %104 : vector<8x1xf32> to vector<8x32xf32>
    %106 = arith.mulf %101, %105 : vector<8x32xf32>
    %107 = vector.broadcast %86 : vector<1x32xf32> to vector<8x32xf32>
    %108 = arith.mulf %106, %107 : vector<8x32xf32>
    %109 = vector.broadcast %88 : vector<1x32xf32> to vector<8x32xf32>
    %110 = arith.addf %108, %109 : vector<8x32xf32>
    %c0_50 = arith.constant 0 : index
    %c0_51 = arith.constant 0 : index
    %c0_52 = arith.constant 0 : index
    %111 = vector.load %arg11[%c0_50, %c0_51, %c0_52] : memref<2x32x128xf32, #tpu.memory_space<vmem>>, vector<1x32x128xf32>
    %112 = vector.shape_cast %111 : vector<1x32x128xf32> to vector<32x128xf32>
    %cst_53 = arith.constant dense<0.000000e+00> : vector<8x128xf32>
    %113 = tpu.matmul %110, %112, %cst_53 {dimension_numbers = #tpu.dot_dimension_numbers<[1], [0], [0], [1], [0, 0, 1, 1], [], []>, precision = #tpu.contract_precision<fp32>} : vector<8x32xf32>, vector<32x128xf32>, vector<8x128xf32> -> vector<8x128xf32>
    %c0_54 = arith.constant 0 : index
    %c0_55 = arith.constant 0 : index
    %c0_56 = arith.constant 0 : index
    %114 = vector.load %arg12[%c0_54, %c0_55, %c0_56] : memref<2x1x128xf32, #tpu.memory_space<vmem>>, vector<1x1x128xf32>
    %115 = vector.shape_cast %114 : vector<1x1x128xf32> to vector<1x128xf32>
    %116 = vector.broadcast %115 : vector<1x128xf32> to vector<8x128xf32>
    %117 = arith.addf %113, %116 : vector<8x128xf32>
    %118 = arith.mulf %117, %117 : vector<8x128xf32>
    %119 = arith.mulf %117, %118 : vector<8x128xf32>
    %cst_57 = arith.constant 4.471500e-02 : f32
    %120 = vector.broadcast %cst_57 : f32 to vector<8x128xf32>
    %121 = arith.mulf %120, %119 : vector<8x128xf32>
    %122 = arith.addf %117, %121 : vector<8x128xf32>
    %cst_58 = arith.constant 0.797884583 : f32
    %123 = vector.broadcast %cst_58 : f32 to vector<8x128xf32>
    %124 = arith.mulf %123, %122 : vector<8x128xf32>
    %125 = math.tanh %124 : vector<8x128xf32>
    %cst_59 = arith.constant 1.000000e+00 : f32
    %126 = vector.broadcast %cst_59 : f32 to vector<8x128xf32>
    %127 = arith.addf %126, %125 : vector<8x128xf32>
    %cst_60 = arith.constant 5.000000e-01 : f32
    %128 = vector.broadcast %cst_60 : f32 to vector<8x128xf32>
    %129 = arith.mulf %128, %127 : vector<8x128xf32>
    %130 = arith.mulf %117, %129 : vector<8x128xf32>
    %c0_61 = arith.constant 0 : index
    %c0_62 = arith.constant 0 : index
    %c0_63 = arith.constant 0 : index
    %131 = vector.load %arg13[%c0_61, %c0_62, %c0_63] : memref<2x128x32xf32, #tpu.memory_space<vmem>>, vector<1x128x32xf32>
    %132 = vector.shape_cast %131 : vector<1x128x32xf32> to vector<128x32xf32>
    %cst_64 = arith.constant dense<0.000000e+00> : vector<8x32xf32>
    %133 = tpu.matmul %130, %132, %cst_64 {dimension_numbers = #tpu.dot_dimension_numbers<[1], [0], [0], [1], [0, 0, 1, 1], [], []>, precision = #tpu.contract_precision<fp32>} : vector<8x128xf32>, vector<128x32xf32>, vector<8x32xf32> -> vector<8x32xf32>
    %c0_65 = arith.constant 0 : index
    %c0_66 = arith.constant 0 : index
    %c0_67 = arith.constant 0 : index
    %134 = vector.load %arg14[%c0_65, %c0_66, %c0_67] : memref<2x1x32xf32, #tpu.memory_space<vmem>>, vector<1x1x32xf32>
    %135 = vector.shape_cast %134 : vector<1x1x32xf32> to vector<1x32xf32>
    %136 = vector.broadcast %135 : vector<1x32xf32> to vector<8x32xf32>
    %137 = arith.addf %133, %136 : vector<8x32xf32>
    %138 = arith.addf %110, %137 : vector<8x32xf32>
    %c0_68 = arith.constant 0 : index
    %c0_69 = arith.constant 0 : index
    %c0_70 = arith.constant 0 : index
    %139 = vector.load %arg15[%c0_68, %c0_69, %c0_70] : memref<2x1x32xf32, #tpu.memory_space<vmem>>, vector<1x1x32xf32>
    %140 = vector.shape_cast %139 : vector<1x1x32xf32> to vector<1x32xf32>
    %c0_71 = arith.constant 0 : index
    %c0_72 = arith.constant 0 : index
    %c0_73 = arith.constant 0 : index
    %141 = vector.load %arg16[%c0_71, %c0_72, %c0_73] : memref<2x1x32xf32, #tpu.memory_space<vmem>>, vector<1x1x32xf32>
    %142 = vector.shape_cast %141 : vector<1x1x32xf32> to vector<1x32xf32>
    %cst_74 = arith.constant dense<0.000000e+00> : vector<8xf32>
    %143 = vector.multi_reduction <add>, %138, %cst_74 [1] : vector<8x32xf32> to vector<8xf32>
    %144 = vector.shape_cast %143 : vector<8xf32> to vector<8x1xf32>
    %cst_75 = arith.constant 3.200000e+01 : f32
    %145 = vector.broadcast %cst_75 : f32 to vector<8x1xf32>
    %146 = arith.divf %144, %145 : vector<8x1xf32>
    %147 = vector.broadcast %146 : vector<8x1xf32> to vector<8x32xf32>
    %148 = arith.subf %138, %147 : vector<8x32xf32>
    %149 = arith.mulf %148, %148 : vector<8x32xf32>
    %cst_76 = arith.constant dense<0.000000e+00> : vector<8xf32>
    %150 = vector.multi_reduction <add>, %149, %cst_76 [1] : vector<8x32xf32> to vector<8xf32>
    %151 = vector.shape_cast %150 : vector<8xf32> to vector<8x1xf32>
    %cst_77 = arith.constant 3.200000e+01 : f32
    %152 = vector.broadcast %cst_77 : f32 to vector<8x1xf32>
    %153 = arith.divf %151, %152 : vector<8x1xf32>
    %154 = vector.broadcast %146 : vector<8x1xf32> to vector<8x32xf32>
    %155 = arith.subf %138, %154 : vector<8x32xf32>
    %cst_78 = arith.constant 9.99999996E-13 : f32
    %156 = vector.broadcast %cst_78 : f32 to vector<8x1xf32>
    %157 = arith.addf %153, %156 : vector<8x1xf32>
    %158 = math.rsqrt %157 : vector<8x1xf32>
    %159 = vector.broadcast %158 : vector<8x1xf32> to vector<8x32xf32>
    %160 = arith.mulf %155, %159 : vector<8x32xf32>
    %161 = vector.broadcast %140 : vector<1x32xf32> to vector<8x32xf32>
    %162 = arith.mulf %160, %161 : vector<8x32xf32>
    %163 = vector.broadcast %142 : vector<1x32xf32> to vector<8x32xf32>
    %164 = arith.addf %162, %163 : vector<8x32xf32>
    %c1 = arith.constant 1 : index
    %c0_79 = arith.constant 0 : index
    %c0_80 = arith.constant 0 : index
    %165 = vector.load %arg5[%c1, %c0_79, %c0_80] : memref<2x32x96xf32, #tpu.memory_space<vmem>>, vector<1x32x96xf32>
    %166 = vector.shape_cast %165 : vector<1x32x96xf32> to vector<32x96xf32>
    %c1_81 = arith.constant 1 : index
    %c0_82 = arith.constant 0 : index
    %c0_83 = arith.constant 0 : index
    %167 = vector.load %arg6[%c1_81, %c0_82, %c0_83] : memref<2x1x96xf32, #tpu.memory_space<vmem>>, vector<1x1x96xf32>
    %168 = vector.shape_cast %167 : vector<1x1x96xf32> to vector<1x96xf32>
    %c1_84 = arith.constant 1 : index
    %c0_85 = arith.constant 0 : index
    %c0_86 = arith.constant 0 : index
    %169 = vector.load %arg7[%c1_84, %c0_85, %c0_86] : memref<2x32x32xf32, #tpu.memory_space<vmem>>, vector<1x32x32xf32>
    %170 = vector.shape_cast %169 : vector<1x32x32xf32> to vector<32x32xf32>
    %c1_87 = arith.constant 1 : index
    %c0_88 = arith.constant 0 : index
    %c0_89 = arith.constant 0 : index
    %171 = vector.load %arg8[%c1_87, %c0_88, %c0_89] : memref<2x1x32xf32, #tpu.memory_space<vmem>>, vector<1x1x32xf32>
    %172 = vector.shape_cast %171 : vector<1x1x32xf32> to vector<1x32xf32>
    %cst_90 = arith.constant dense<0.000000e+00> : vector<8x96xf32>
    %173 = tpu.matmul %164, %166, %cst_90 {dimension_numbers = #tpu.dot_dimension_numbers<[1], [0], [0], [1], [0, 0, 1, 1], [], []>, precision = #tpu.contract_precision<fp32>} : vector<8x32xf32>, vector<32x96xf32>, vector<8x96xf32> -> vector<8x96xf32>
    %174 = vector.broadcast %168 : vector<1x96xf32> to vector<8x96xf32>
    %175 = arith.addf %173, %174 : vector<8x96xf32>
    %cst_91 = arith.constant 0.000000e+00 : f32
    %176 = vector.broadcast %cst_91 : f32 to vector<8x32xf32>
    %177 = vector.extract_strided_slice %175 {offsets = [0, 0], sizes = [8, 16], strides = [1, 1]} : vector<8x96xf32> to vector<8x16xf32>
    %178 = vector.extract_strided_slice %175 {offsets = [0, 32], sizes = [8, 16], strides = [1, 1]} : vector<8x96xf32> to vector<8x16xf32>
    %179 = vector.extract_strided_slice %175 {offsets = [0, 64], sizes = [8, 16], strides = [1, 1]} : vector<8x96xf32> to vector<8x16xf32>
    %cst_92 = arith.constant dense<0.000000e+00> : vector<8x8xf32>
    %180 = tpu.matmul %177, %178, %cst_92 {dimension_numbers = #tpu.dot_dimension_numbers<[1], [1], [0], [0], [0, 0, 1, 0], [], []>, precision = #tpu.contract_precision<fp32>} : vector<8x16xf32>, vector<8x16xf32>, vector<8x8xf32> -> vector<8x8xf32>
    %cst_93 = arith.constant 2.500000e-01 : f32
    %181 = vector.broadcast %cst_93 : f32 to vector<8x8xf32>
    %182 = arith.mulf %180, %181 : vector<8x8xf32>
    %183 = vector.broadcast %3 : vector<1x8xf32> to vector<8x8xf32>
    %184 = arith.addf %182, %183 : vector<8x8xf32>
    %cst_94 = arith.constant dense<0xFF800000> : vector<8xf32>
    %185 = vector.multi_reduction <maximumf>, %184, %cst_94 [1] : vector<8x8xf32> to vector<8xf32>
    %186 = vector.shape_cast %185 : vector<8xf32> to vector<8x1xf32>
    %187 = vector.broadcast %186 : vector<8x1xf32> to vector<8x8xf32>
    %188 = arith.subf %184, %187 : vector<8x8xf32>
    %189 = math.exp %188 : vector<8x8xf32>
    %cst_95 = arith.constant dense<0.000000e+00> : vector<8xf32>
    %190 = vector.multi_reduction <add>, %189, %cst_95 [1] : vector<8x8xf32> to vector<8xf32>
    %191 = vector.shape_cast %190 : vector<8xf32> to vector<8x1xf32>
    %192 = vector.broadcast %191 : vector<8x1xf32> to vector<8x8xf32>
    %193 = arith.divf %189, %192 : vector<8x8xf32>
    %cst_96 = arith.constant dense<0.000000e+00> : vector<8x16xf32>
    %194 = tpu.matmul %193, %179, %cst_96 {dimension_numbers = #tpu.dot_dimension_numbers<[1], [0], [0], [1], [0, 0, 1, 1], [], []>, precision = #tpu.contract_precision<fp32>} : vector<8x8xf32>, vector<8x16xf32>, vector<8x16xf32> -> vector<8x16xf32>
    %195 = vector.extract_strided_slice %170 {offsets = [0, 0], sizes = [16, 32], strides = [1, 1]} : vector<32x32xf32> to vector<16x32xf32>
    %cst_97 = arith.constant dense<0.000000e+00> : vector<8x32xf32>
    %196 = tpu.matmul %194, %195, %cst_97 {dimension_numbers = #tpu.dot_dimension_numbers<[1], [0], [0], [1], [0, 0, 1, 1], [], []>, precision = #tpu.contract_precision<fp32>} : vector<8x16xf32>, vector<16x32xf32>, vector<8x32xf32> -> vector<8x32xf32>
    %197 = arith.addf %176, %196 : vector<8x32xf32>
    %198 = vector.extract_strided_slice %175 {offsets = [0, 16], sizes = [8, 16], strides = [1, 1]} : vector<8x96xf32> to vector<8x16xf32>
    %199 = vector.extract_strided_slice %175 {offsets = [0, 48], sizes = [8, 16], strides = [1, 1]} : vector<8x96xf32> to vector<8x16xf32>
    %200 = vector.extract_strided_slice %175 {offsets = [0, 80], sizes = [8, 16], strides = [1, 1]} : vector<8x96xf32> to vector<8x16xf32>
    %cst_98 = arith.constant dense<0.000000e+00> : vector<8x8xf32>
    %201 = tpu.matmul %198, %199, %cst_98 {dimension_numbers = #tpu.dot_dimension_numbers<[1], [1], [0], [0], [0, 0, 1, 0], [], []>, precision = #tpu.contract_precision<fp32>} : vector<8x16xf32>, vector<8x16xf32>, vector<8x8xf32> -> vector<8x8xf32>
    %cst_99 = arith.constant 2.500000e-01 : f32
    %202 = vector.broadcast %cst_99 : f32 to vector<8x8xf32>
    %203 = arith.mulf %201, %202 : vector<8x8xf32>
    %204 = vector.broadcast %3 : vector<1x8xf32> to vector<8x8xf32>
    %205 = arith.addf %203, %204 : vector<8x8xf32>
    %cst_100 = arith.constant dense<0xFF800000> : vector<8xf32>
    %206 = vector.multi_reduction <maximumf>, %205, %cst_100 [1] : vector<8x8xf32> to vector<8xf32>
    %207 = vector.shape_cast %206 : vector<8xf32> to vector<8x1xf32>
    %208 = vector.broadcast %207 : vector<8x1xf32> to vector<8x8xf32>
    %209 = arith.subf %205, %208 : vector<8x8xf32>
    %210 = math.exp %209 : vector<8x8xf32>
    %cst_101 = arith.constant dense<0.000000e+00> : vector<8xf32>
    %211 = vector.multi_reduction <add>, %210, %cst_101 [1] : vector<8x8xf32> to vector<8xf32>
    %212 = vector.shape_cast %211 : vector<8xf32> to vector<8x1xf32>
    %213 = vector.broadcast %212 : vector<8x1xf32> to vector<8x8xf32>
    %214 = arith.divf %210, %213 : vector<8x8xf32>
    %cst_102 = arith.constant dense<0.000000e+00> : vector<8x16xf32>
    %215 = tpu.matmul %214, %200, %cst_102 {dimension_numbers = #tpu.dot_dimension_numbers<[1], [0], [0], [1], [0, 0, 1, 1], [], []>, precision = #tpu.contract_precision<fp32>} : vector<8x8xf32>, vector<8x16xf32>, vector<8x16xf32> -> vector<8x16xf32>
    %216 = vector.extract_strided_slice %170 {offsets = [16, 0], sizes = [16, 32], strides = [1, 1]} : vector<32x32xf32> to vector<16x32xf32>
    %cst_103 = arith.constant dense<0.000000e+00> : vector<8x32xf32>
    %217 = tpu.matmul %215, %216, %cst_103 {dimension_numbers = #tpu.dot_dimension_numbers<[1], [0], [0], [1], [0, 0, 1, 1], [], []>, precision = #tpu.contract_precision<fp32>} : vector<8x16xf32>, vector<16x32xf32>, vector<8x32xf32> -> vector<8x32xf32>
    %218 = arith.addf %197, %217 : vector<8x32xf32>
    %219 = arith.addf %164, %218 : vector<8x32xf32>
    %220 = vector.broadcast %172 : vector<1x32xf32> to vector<8x32xf32>
    %221 = arith.addf %219, %220 : vector<8x32xf32>
    %c1_104 = arith.constant 1 : index
    %c0_105 = arith.constant 0 : index
    %c0_106 = arith.constant 0 : index
    %222 = vector.load %arg9[%c1_104, %c0_105, %c0_106] : memref<2x1x32xf32, #tpu.memory_space<vmem>>, vector<1x1x32xf32>
    %223 = vector.shape_cast %222 : vector<1x1x32xf32> to vector<1x32xf32>
    %c1_107 = arith.constant 1 : index
    %c0_108 = arith.constant 0 : index
    %c0_109 = arith.constant 0 : index
    %224 = vector.load %arg10[%c1_107, %c0_108, %c0_109] : memref<2x1x32xf32, #tpu.memory_space<vmem>>, vector<1x1x32xf32>
    %225 = vector.shape_cast %224 : vector<1x1x32xf32> to vector<1x32xf32>
    %cst_110 = arith.constant dense<0.000000e+00> : vector<8xf32>
    %226 = vector.multi_reduction <add>, %221, %cst_110 [1] : vector<8x32xf32> to vector<8xf32>
    %227 = vector.shape_cast %226 : vector<8xf32> to vector<8x1xf32>
    %cst_111 = arith.constant 3.200000e+01 : f32
    %228 = vector.broadcast %cst_111 : f32 to vector<8x1xf32>
    %229 = arith.divf %227, %228 : vector<8x1xf32>
    %230 = vector.broadcast %229 : vector<8x1xf32> to vector<8x32xf32>
    %231 = arith.subf %221, %230 : vector<8x32xf32>
    %232 = arith.mulf %231, %231 : vector<8x32xf32>
    %cst_112 = arith.constant dense<0.000000e+00> : vector<8xf32>
    %233 = vector.multi_reduction <add>, %232, %cst_112 [1] : vector<8x32xf32> to vector<8xf32>
    %234 = vector.shape_cast %233 : vector<8xf32> to vector<8x1xf32>
    %cst_113 = arith.constant 3.200000e+01 : f32
    %235 = vector.broadcast %cst_113 : f32 to vector<8x1xf32>
    %236 = arith.divf %234, %235 : vector<8x1xf32>
    %237 = vector.broadcast %229 : vector<8x1xf32> to vector<8x32xf32>
    %238 = arith.subf %221, %237 : vector<8x32xf32>
    %cst_114 = arith.constant 9.99999996E-13 : f32
    %239 = vector.broadcast %cst_114 : f32 to vector<8x1xf32>
    %240 = arith.addf %236, %239 : vector<8x1xf32>
    %241 = math.rsqrt %240 : vector<8x1xf32>
    %242 = vector.broadcast %241 : vector<8x1xf32> to vector<8x32xf32>
    %243 = arith.mulf %238, %242 : vector<8x32xf32>
    %244 = vector.broadcast %223 : vector<1x32xf32> to vector<8x32xf32>
    %245 = arith.mulf %243, %244 : vector<8x32xf32>
    %246 = vector.broadcast %225 : vector<1x32xf32> to vector<8x32xf32>
    %247 = arith.addf %245, %246 : vector<8x32xf32>
    %c1_115 = arith.constant 1 : index
    %c0_116 = arith.constant 0 : index
    %c0_117 = arith.constant 0 : index
    %248 = vector.load %arg11[%c1_115, %c0_116, %c0_117] : memref<2x32x128xf32, #tpu.memory_space<vmem>>, vector<1x32x128xf32>
    %249 = vector.shape_cast %248 : vector<1x32x128xf32> to vector<32x128xf32>
    %cst_118 = arith.constant dense<0.000000e+00> : vector<8x128xf32>
    %250 = tpu.matmul %247, %249, %cst_118 {dimension_numbers = #tpu.dot_dimension_numbers<[1], [0], [0], [1], [0, 0, 1, 1], [], []>, precision = #tpu.contract_precision<fp32>} : vector<8x32xf32>, vector<32x128xf32>, vector<8x128xf32> -> vector<8x128xf32>
    %c1_119 = arith.constant 1 : index
    %c0_120 = arith.constant 0 : index
    %c0_121 = arith.constant 0 : index
    %251 = vector.load %arg12[%c1_119, %c0_120, %c0_121] : memref<2x1x128xf32, #tpu.memory_space<vmem>>, vector<1x1x128xf32>
    %252 = vector.shape_cast %251 : vector<1x1x128xf32> to vector<1x128xf32>
    %253 = vector.broadcast %252 : vector<1x128xf32> to vector<8x128xf32>
    %254 = arith.addf %250, %253 : vector<8x128xf32>
    %255 = arith.mulf %254, %254 : vector<8x128xf32>
    %256 = arith.mulf %254, %255 : vector<8x128xf32>
    %cst_122 = arith.constant 4.471500e-02 : f32
    %257 = vector.broadcast %cst_122 : f32 to vector<8x128xf32>
    %258 = arith.mulf %257, %256 : vector<8x128xf32>
    %259 = arith.addf %254, %258 : vector<8x128xf32>
    %cst_123 = arith.constant 0.797884583 : f32
    %260 = vector.broadcast %cst_123 : f32 to vector<8x128xf32>
    %261 = arith.mulf %260, %259 : vector<8x128xf32>
    %262 = math.tanh %261 : vector<8x128xf32>
    %cst_124 = arith.constant 1.000000e+00 : f32
    %263 = vector.broadcast %cst_124 : f32 to vector<8x128xf32>
    %264 = arith.addf %263, %262 : vector<8x128xf32>
    %cst_125 = arith.constant 5.000000e-01 : f32
    %265 = vector.broadcast %cst_125 : f32 to vector<8x128xf32>
    %266 = arith.mulf %265, %264 : vector<8x128xf32>
    %267 = arith.mulf %254, %266 : vector<8x128xf32>
    %c1_126 = arith.constant 1 : index
    %c0_127 = arith.constant 0 : index
    %c0_128 = arith.constant 0 : index
    %268 = vector.load %arg13[%c1_126, %c0_127, %c0_128] : memref<2x128x32xf32, #tpu.memory_space<vmem>>, vector<1x128x32xf32>
    %269 = vector.shape_cast %268 : vector<1x128x32xf32> to vector<128x32xf32>
    %cst_129 = arith.constant dense<0.000000e+00> : vector<8x32xf32>
    %270 = tpu.matmul %267, %269, %cst_129 {dimension_numbers = #tpu.dot_dimension_numbers<[1], [0], [0], [1], [0, 0, 1, 1], [], []>, precision = #tpu.contract_precision<fp32>} : vector<8x128xf32>, vector<128x32xf32>, vector<8x32xf32> -> vector<8x32xf32>
    %c1_130 = arith.constant 1 : index
    %c0_131 = arith.constant 0 : index
    %c0_132 = arith.constant 0 : index
    %271 = vector.load %arg14[%c1_130, %c0_131, %c0_132] : memref<2x1x32xf32, #tpu.memory_space<vmem>>, vector<1x1x32xf32>
    %272 = vector.shape_cast %271 : vector<1x1x32xf32> to vector<1x32xf32>
    %273 = vector.broadcast %272 : vector<1x32xf32> to vector<8x32xf32>
    %274 = arith.addf %270, %273 : vector<8x32xf32>
    %275 = arith.addf %247, %274 : vector<8x32xf32>
    %c1_133 = arith.constant 1 : index
    %c0_134 = arith.constant 0 : index
    %c0_135 = arith.constant 0 : index
    %276 = vector.load %arg15[%c1_133, %c0_134, %c0_135] : memref<2x1x32xf32, #tpu.memory_space<vmem>>, vector<1x1x32xf32>
    %277 = vector.shape_cast %276 : vector<1x1x32xf32> to vector<1x32xf32>
    %c1_136 = arith.constant 1 : index
    %c0_137 = arith.constant 0 : index
    %c0_138 = arith.constant 0 : index
    %278 = vector.load %arg16[%c1_136, %c0_137, %c0_138] : memref<2x1x32xf32, #tpu.memory_space<vmem>>, vector<1x1x32xf32>
    %279 = vector.shape_cast %278 : vector<1x1x32xf32> to vector<1x32xf32>
    %cst_139 = arith.constant dense<0.000000e+00> : vector<8xf32>
    %280 = vector.multi_reduction <add>, %275, %cst_139 [1] : vector<8x32xf32> to vector<8xf32>
    %281 = vector.shape_cast %280 : vector<8xf32> to vector<8x1xf32>
    %cst_140 = arith.constant 3.200000e+01 : f32
    %282 = vector.broadcast %cst_140 : f32 to vector<8x1xf32>
    %283 = arith.divf %281, %282 : vector<8x1xf32>
    %284 = vector.broadcast %283 : vector<8x1xf32> to vector<8x32xf32>
    %285 = arith.subf %275, %284 : vector<8x32xf32>
    %286 = arith.mulf %285, %285 : vector<8x32xf32>
    %cst_141 = arith.constant dense<0.000000e+00> : vector<8xf32>
    %287 = vector.multi_reduction <add>, %286, %cst_141 [1] : vector<8x32xf32> to vector<8xf32>
    %288 = vector.shape_cast %287 : vector<8xf32> to vector<8x1xf32>
    %cst_142 = arith.constant 3.200000e+01 : f32
    %289 = vector.broadcast %cst_142 : f32 to vector<8x1xf32>
    %290 = arith.divf %288, %289 : vector<8x1xf32>
    %291 = vector.broadcast %283 : vector<8x1xf32> to vector<8x32xf32>
    %292 = arith.subf %275, %291 : vector<8x32xf32>
    %cst_143 = arith.constant 9.99999996E-13 : f32
    %293 = vector.broadcast %cst_143 : f32 to vector<8x1xf32>
    %294 = arith.addf %290, %293 : vector<8x1xf32>
    %295 = math.rsqrt %294 : vector<8x1xf32>
    %296 = vector.broadcast %295 : vector<8x1xf32> to vector<8x32xf32>
    %297 = arith.mulf %292, %296 : vector<8x32xf32>
    %298 = vector.broadcast %277 : vector<1x32xf32> to vector<8x32xf32>
    %299 = arith.mulf %297, %298 : vector<8x32xf32>
    %300 = vector.broadcast %279 : vector<1x32xf32> to vector<8x32xf32>
    %301 = arith.addf %299, %300 : vector<8x32xf32>
    %302 = vector.extract_strided_slice %301 {offsets = [0, 0], sizes = [1, 32], strides = [1, 1]} : vector<8x32xf32> to vector<1x32xf32>
    %cst_144 = arith.constant 0.000000e+00 : f32
    %303 = vector.broadcast %cst_144 : f32 to vector<1x32xf32>
    %304 = arith.maximumf %302, %303 : vector<1x32xf32>
    %c0_145 = arith.constant 0 : index
    %c0_146 = arith.constant 0 : index
    %c0_147 = arith.constant 0 : index
    %305 = vector.load %arg17[%c0_145, %c0_146, %c0_147] : memref<1x1x32xf32, #tpu.memory_space<vmem>>, vector<1x1x32xf32>
    %306 = vector.shape_cast %305 : vector<1x1x32xf32> to vector<1x32xf32>
    %307 = vector.shape_cast %304 : vector<1x32xf32> to vector<1x1x32xf32>
    tpu.vector_store %arg17[%c0_145, %c0_146, %c0_147], %307 {strides = array<i32>} : memref<1x1x32xf32, #tpu.memory_space<vmem>>, vector<1x1x32xf32>,
    return
  }
  func.func @transform_0(%arg0: i32) -> (i32, i32, i32) {
    %c0_i32 = arith.constant 0 : i32
    %c0_i32_0 = arith.constant 0 : i32
    %c0_i32_1 = arith.constant 0 : i32
    return %arg0, %c0_i32, %c0_i32_0 : i32, i32, i32
  }
  func.func @transform_1(%arg0: i32) -> (i32, i32, i32) {
    %c0_i32 = arith.constant 0 : i32
    %c0_i32_0 = arith.constant 0 : i32
    %c0_i32_1 = arith.constant 0 : i32
    return %arg0, %c0_i32, %c0_i32_0 : i32, i32, i32
  }
  func.func @transform_2(%arg0: i32) -> (i32, i32) {
    %c0_i32 = arith.constant 0 : i32
    %c0_i32_0 = arith.constant 0 : i32
    %c0_i32_1 = arith.constant 0 : i32
    return %c0_i32, %c0_i32_0 : i32, i32
  }
  func.func @transform_3(%arg0: i32) -> (i32, i32) {
    %c0_i32 = arith.constant 0 : i32
    %c0_i32_0 = arith.constant 0 : i32
    %c0_i32_1 = arith.constant 0 : i32
    return %c0_i32, %c0_i32_0 : i32, i32
  }
  func.func @transform_4(%arg0: i32) -> (i32, i32, i32) {
    %c0_i32 = arith.constant 0 : i32
    %c0_i32_0 = arith.constant 0 : i32
    %c0_i32_1 = arith.constant 0 : i32
    %c0_i32_2 = arith.constant 0 : i32
    return %c0_i32, %c0_i32_0, %c0_i32_1 : i32, i32, i32
  }
  func.func @transform_5(%arg0: i32) -> (i32, i32, i32) {
    %c0_i32 = arith.constant 0 : i32
    %c0_i32_0 = arith.constant 0 : i32
    %c0_i32_1 = arith.constant 0 : i32
    %c0_i32_2 = arith.constant 0 : i32
    return %c0_i32, %c0_i32_0, %c0_i32_1 : i32, i32, i32
  }
  func.func @transform_6(%arg0: i32) -> (i32, i32, i32) {
    %c0_i32 = arith.constant 0 : i32
    %c0_i32_0 = arith.constant 0 : i32
    %c0_i32_1 = arith.constant 0 : i32
    %c0_i32_2 = arith.constant 0 : i32
    return %c0_i32, %c0_i32_0, %c0_i32_1 : i32, i32, i32
  }
  func.func @transform_7(%arg0: i32) -> (i32, i32, i32) {
    %c0_i32 = arith.constant 0 : i32
    %c0_i32_0 = arith.constant 0 : i32
    %c0_i32_1 = arith.constant 0 : i32
    %c0_i32_2 = arith.constant 0 : i32
    return %c0_i32, %c0_i32_0, %c0_i32_1 : i32, i32, i32
  }
  func.func @transform_8(%arg0: i32) -> (i32, i32, i32) {
    %c0_i32 = arith.constant 0 : i32
    %c0_i32_0 = arith.constant 0 : i32
    %c0_i32_1 = arith.constant 0 : i32
    %c0_i32_2 = arith.constant 0 : i32
    return %c0_i32, %c0_i32_0, %c0_i32_1 : i32, i32, i32
  }
  func.func @transform_9(%arg0: i32) -> (i32, i32, i32) {
    %c0_i32 = arith.constant 0 : i32
    %c0_i32_0 = arith.constant 0 : i32
    %c0_i32_1 = arith.constant 0 : i32
    %c0_i32_2 = arith.constant 0 : i32
    return %c0_i32, %c0_i32_0, %c0_i32_1 : i32, i32, i32
  }
  func.func @transform_10(%arg0: i32) -> (i32, i32, i32) {
    %c0_i32 = arith.constant 0 : i32
    %c0_i32_0 = arith.constant 0 : i32
    %c0_i32_1 = arith.constant 0 : i32
    %c0_i32_2 = arith.constant 0 : i32
    return %c0_i32, %c0_i32_0, %c0_i32_1 : i32, i32, i32
  }
  func.func @transform_11(%arg0: i32) -> (i32, i32, i32) {
    %c0_i32 = arith.constant 0 : i32
    %c0_i32_0 = arith.constant 0 : i32
    %c0_i32_1 = arith.constant 0 : i32
    %c0_i32_2 = arith.constant 0 : i32
    return %c0_i32, %c0_i32_0, %c0_i32_1 : i32, i32, i32
  }
  func.func @transform_12(%arg0: i32) -> (i32, i32, i32) {
    %c0_i32 = arith.constant 0 : i32
    %c0_i32_0 = arith.constant 0 : i32
    %c0_i32_1 = arith.constant 0 : i32
    %c0_i32_2 = arith.constant 0 : i32
    return %c0_i32, %c0_i32_0, %c0_i32_1 : i32, i32, i32
  }
  func.func @transform_13(%arg0: i32) -> (i32, i32, i32) {
    %c0_i32 = arith.constant 0 : i32
    %c0_i32_0 = arith.constant 0 : i32
    %c0_i32_1 = arith.constant 0 : i32
    %c0_i32_2 = arith.constant 0 : i32
    return %c0_i32, %c0_i32_0, %c0_i32_1 : i32, i32, i32
  }
  func.func @transform_14(%arg0: i32) -> (i32, i32, i32) {
    %c0_i32 = arith.constant 0 : i32
    %c0_i32_0 = arith.constant 0 : i32
    %c0_i32_1 = arith.constant 0 : i32
    %c0_i32_2 = arith.constant 0 : i32
    return %c0_i32, %c0_i32_0, %c0_i32_1 : i32, i32, i32
  }
  func.func @transform_15(%arg0: i32) -> (i32, i32, i32) {
    %c0_i32 = arith.constant 0 : i32
    %c0_i32_0 = arith.constant 0 : i32
    %c0_i32_1 = arith.constant 0 : i32
    %c0_i32_2 = arith.constant 0 : i32
    return %c0_i32, %c0_i32_0, %c0_i32_1 : i32, i32, i32
  }
  func.func @transform_16(%arg0: i32) -> (i32, i32, i32) {
    %c0_i32 = arith.constant 0 : i32
    %c0_i32_0 = arith.constant 0 : i32
    %c0_i32_1 = arith.constant 0 : i32
    return %arg0, %c0_i32, %c0_i32_0 : i32, i32, i32
  }
}

</mosaic_0001>

<llo_original>
// kernel: tpu_custom_call.1
$region0: #{tpu_custom_call.1}
  #allocation0 [shape = 'u32[]', space=smem, size = 0x4, offset = 0x4, fixed_abs, tag = 'smem constant byte address 0x4 - core index']
  #allocation1 [shape = 'u32[72,128]{1,0:T(1,128)}', space=vmem, size = 0x9000, scoped, tag = 'internal scratch']
  %s0 = inlined_call_operand.vmem [shape: f32[2,8,32], index: 0, kind: input, shape index: {}]
  %s1 = inlined_call_operand.vmem [shape: f32[2,1,8], index: 1, kind: input, shape index: {}]
  %s2 = inlined_call_operand.vmem [shape: f32[1,32], index: 2, kind: input, shape index: {}]
  %s3 = inlined_call_operand.vmem [shape: f32[1,32], index: 3, kind: input, shape index: {}]
  %s4 = inlined_call_operand.vmem [shape: f32[2,32,96], index: 4, kind: input, shape index: {}]
  %s5 = inlined_call_operand.vmem [shape: f32[2,1,96], index: 5, kind: input, shape index: {}]
  %s6 = inlined_call_operand.vmem [shape: f32[2,32,32], index: 6, kind: input, shape index: {}]
  %s7 = inlined_call_operand.vmem [shape: f32[2,1,32], index: 7, kind: input, shape index: {}]
  %s8 = inlined_call_operand.vmem [shape: f32[2,1,32], index: 8, kind: input, shape index: {}]
  %s9 = inlined_call_operand.vmem [shape: f32[2,1,32], index: 9, kind: input, shape index: {}]
  %s10 = inlined_call_operand.vmem [shape: f32[2,32,128], index: 10, kind: input, shape index: {}]
  %s11 = inlined_call_operand.vmem [shape: f32[2,1,128], index: 11, kind: input, shape index: {}]
  %s12 = inlined_call_operand.vmem [shape: f32[2,128,32], index: 12, kind: input, shape index: {}]
  %s13 = inlined_call_operand.vmem [shape: f32[2,1,32], index: 13, kind: input, shape index: {}]
  %s14 = inlined_call_operand.vmem [shape: f32[2,1,32], index: 14, kind: input, shape index: {}]
  %s15 = inlined_call_operand.vmem [shape: f32[2,1,32], index: 15, kind: input, shape index: {}]
  %s16 = inlined_call_operand.hbm [shape: f32[2,1,32], index: 16, kind: output, shape index: {}]
  %s17 = sld [smem:[#allocation0]]
  $region97: #{tpu_custom_call.1} parent=0
    _
  %s19 = ssub.s32 1, %s17
  %s20 = scalar_select 0, %s19, %s17
  $region1: #{tpu_custom_call.1} parent=0
    #allocation2 [shape = 'u8[1024]{0}', space=vmem, size = 0x400, scoped, tag = 'output window, operand 0']
    #allocation3 [shape = 's32[2]{0}', space=sflag, size = 0x8, scoped, tag = 'scoped memory for tpu_custom_call.1']
    %21 = vsyncpa [#allocation3], 0
    %s22 = scalar_lea.sflag [#allocation3], 1
    %23 = vsyncpa %s22, 0
    loop: start=0, step=1, limit=4
    $region2: #{tpu_custom_call.1} parent=1 // loop_pre_header
      _
    $region3: #{tpu_custom_call.1} parent=1 // loop_header
      %s25 = sphi 0, %s29
      %p26 = scmp.ge.s32.totalorder %s25, 4
      %s35 = sphi 0, %s37
      %s38 = sphi 0, %s35
      %s39 = sphi 0, %s38
      %s55 = sphi 0, %s39
      %s61 = sphi 0, %s63
      %s64 = sphi 0, %s61
      %s65 = sphi 0, %s64
      %s81 = sphi 0, %s65
      %s85 = sphi 0, %s85
      %s87 = sphi 0, %s85
      %s88 = sphi 0, %s87
      %s102 = sphi 0, %s88
      %s106 = sphi 0, %s106
      %s108 = sphi 0, %s106
      %s109 = sphi 0, %s108
      %s123 = sphi 0, %s109
      %s127 = sphi 0, %s127
      %s129 = sphi 0, %s127
      %s130 = sphi 0, %s129
      %s144 = sphi 0, %s130
      %s148 = sphi 0, %s148
      %s150 = sphi 0, %s148
      %s151 = sphi 0, %s150
      %s165 = sphi 0, %s151
      %s169 = sphi 0, %s169
      %s171 = sphi 0, %s169
      %s172 = sphi 0, %s171
      %s186 = sphi 0, %s172
      %s190 = sphi 0, %s190
      %s192 = sphi 0, %s190
      %s193 = sphi 0, %s192
      %s207 = sphi 0, %s193
      %s211 = sphi 0, %s211
      %s213 = sphi 0, %s211
      %s214 = sphi 0, %s213
      %s228 = sphi 0, %s214
      %s232 = sphi 0, %s232
      %s234 = sphi 0, %s232
      %s235 = sphi 0, %s234
      %s249 = sphi 0, %s235
      %s253 = sphi 0, %s253
      %s255 = sphi 0, %s253
      %s256 = sphi 0, %s255
      %s270 = sphi 0, %s256
      %s274 = sphi 0, %s274
      %s276 = sphi 0, %s274
      %s277 = sphi 0, %s276
      %s291 = sphi 0, %s277
      %s295 = sphi 0, %s295
      %s297 = sphi 0, %s295
      %s298 = sphi 0, %s297
      %s312 = sphi 0, %s298
      %s316 = sphi 0, %s316
      %s318 = sphi 0, %s316
      %s319 = sphi 0, %s318
      %s333 = sphi 0, %s319
      %s337 = sphi 0, %s337
      %s339 = sphi 0, %s337
      %s340 = sphi 0, %s339
      %s354 = sphi 0, %s340
      %s358 = sphi 0, %s358
      %s360 = sphi 0, %s358
      %s361 = sphi 0, %s360
      %s375 = sphi 0, %s361
      %s381 = sphi 0, %s383
      %s384 = sphi 0, %s381
      %s385 = sphi 0, %s384
      %s401 = sphi 0, %s385
    $region4: #{tpu_custom_call.1} parent=1 // loop_header_branch
      %28 = sbr.rel (%p26) target = $region8
    $region5: #{tpu_custom_call.1} parent=1 // loop_body
      %s30 = ssub.s32 %s25, 1
      %s31 = ssub.s32 %s25, 2
      %s32 = sadd.s32 %s25, 1
      %s33 = ssub.s32 %s25, %s32
      %p34 = scmp.eq.s32.totalorder %s33, 0
      %s36 = sadd.s32 %s35, 1
      %s37 = scalar_select %p34, %s35, %s36
      %p40 = pneg %p34
      %p41 = scmp.eq.s32.totalorder %s25, 1
      %p42 = por %p40, %p41
      %p43 = scmp.ne.s32.totalorder %s35, %s38
      %p44 = scmp.eq.s32.totalorder %s25, 0
      %p45 = por %p43, %p44
      %p46 = scmp.ne.s32.totalorder %s35, %s38
      %p47 = scmp.eq.s32.totalorder %s30, 1
      %p48 = por %p46, %p47
      %p49 = scmp.ne.s32.totalorder %s38, %s39
      %p50 = scmp.eq.s32.totalorder %s30, 0
      %p51 = por %p49, %p50
      %p52 = scmp.ne.s32.totalorder %s38, %s39
      %p53 = scmp.eq.s32.totalorder %s31, 1
      %p54 = por %p52, %p53
      %p56 = scmp.ne.s32.totalorder %s39, %s55
      %p57 = scmp.eq.s32.totalorder %s31, 0
      %p58 = por %p56, %p57
      %s59 = ssub.s32 %s25, %s32
      %p60 = scmp.eq.s32.totalorder %s59, 0
      %s62 = sadd.s32 %s61, 1
      %s63 = scalar_select %p60, %s61, %s62
      %p66 = pneg %p60
      %p67 = scmp.eq.s32.totalorder %s25, 1
      %p68 = por %p66, %p67
      %p69 = scmp.ne.s32.totalorder %s61, %s64
      %p70 = scmp.eq.s32.totalorder %s25, 0
      %p71 = por %p69, %p70
      %p72 = scmp.ne.s32.totalorder %s61, %s64
      %p73 = scmp.eq.s32.totalorder %s30, 1
      %p74 = por %p72, %p73
      %p75 = scmp.ne.s32.totalorder %s64, %s65
      %p76 = scmp.eq.s32.totalorder %s30, 0
      %p77 = por %p75, %p76
      %p78 = scmp.ne.s32.totalorder %s64, %s65
      %p79 = scmp.eq.s32.totalorder %s31, 1
      %p80 = por %p78, %p79
      %p82 = scmp.ne.s32.totalorder %s65, %s81
      %p83 = scmp.eq.s32.totalorder %s31, 0
      %p84 = por %p82, %p83
      %s86 = sadd.s32 %s85, 1
      %p89 = scmp.eq.s32.totalorder %s25, 1
      %p90 = scmp.ne.s32.totalorder %s85, %s87
      %p91 = scmp.eq.s32.totalorder %s25, 0
      %p92 = por %p90, %p91
      %p93 = scmp.ne.s32.totalorder %s85, %s87
      %p94 = scmp.eq.s32.totalorder %s30, 1
      %p95 = por %p93, %p94
      %p96 = scmp.ne.s32.totalorder %s87, %s88
      %p97 = scmp.eq.s32.totalorder %s30, 0
      %p98 = por %p96, %p97
      %p99 = scmp.ne.s32.totalorder %s87, %s88
      %p100 = scmp.eq.s32.totalorder %s31, 1
      %p101 = por %p99, %p100
      %p103 = scmp.ne.s32.totalorder %s88, %s102
      %p104 = scmp.eq.s32.totalorder %s31, 0
      %p105 = por %p103, %p104
      %s107 = sadd.s32 %s106, 1
      %p110 = scmp.eq.s32.totalorder %s25, 1
      %p111 = scmp.ne.s32.totalorder %s106, %s108
      %p112 = scmp.eq.s32.totalorder %s25, 0
      %p113 = por %p111, %p112
      %p114 = scmp.ne.s32.totalorder %s106, %s108
      %p115 = scmp.eq.s32.totalorder %s30, 1
      %p116 = por %p114, %p115
      %p117 = scmp.ne.s32.totalorder %s108, %s109
      %p118 = scmp.eq.s32.totalorder %s30, 0
      %p119 = por %p117, %p118
      %p120 = scmp.ne.s32.totalorder %s108, %s109
      %p121 = scmp.eq.s32.totalorder %s31, 1
      %p122 = por %p120, %p121
      %p124 = scmp.ne.s32.totalorder %s109, %s123
      %p125 = scmp.eq.s32.totalorder %s31, 0
      %p126 = por %p124, %p125
      %s128 = sadd.s32 %s127, 1
      %p131 = scmp.eq.s32.totalorder %s25, 1
      %p132 = scmp.ne.s32.totalorder %s127, %s129
      %p133 = scmp.eq.s32.totalorder %s25, 0
      %p134 = por %p132, %p133
      %p135 = scmp.ne.s32.totalorder %s127, %s129
      %p136 = scmp.eq.s32.totalorder %s30, 1
      %p137 = por %p135, %p136
      %p138 = scmp.ne.s32.totalorder %s129, %s130
      %p139 = scmp.eq.s32.totalorder %s30, 0
      %p140 = por %p138, %p139
      %p141 = scmp.ne.s32.totalorder %s129, %s130
      %p142 = scmp.eq.s32.totalorder %s31, 1
      %p143 = por %p141, %p142
      %p145 = scmp.ne.s32.totalorder %s130, %s144
      %p146 = scmp.eq.s32.totalorder %s31, 0
      %p147 = por %p145, %p146
      %s149 = sadd.s32 %s148, 1
      %p152 = scmp.eq.s32.totalorder %s25, 1
      %p153 = scmp.ne.s32.totalorder %s148, %s150
      %p154 = scmp.eq.s32.totalorder %s25, 0
      %p155 = por %p153, %p154
      %p156 = scmp.ne.s32.totalorder %s148, %s150
      %p157 = scmp.eq.s32.totalorder %s30, 1
      %p158 = por %p156, %p157
      %p159 = scmp.ne.s32.totalorder %s150, %s151
      %p160 = scmp.eq.s32.totalorder %s30, 0
      %p161 = por %p159, %p160
      %p162 = scmp.ne.s32.totalorder %s150, %s151
      %p163 = scmp.eq.s32.totalorder %s31, 1
      %p164 = por %p162, %p163
      %p166 = scmp.ne.s32.totalorder %s151, %s165
      %p167 = scmp.eq.s32.totalorder %s31, 0
      %p168 = por %p166, %p167
      %s170 = sadd.s32 %s169, 1
      %p173 = scmp.eq.s32.totalorder %s25, 1
      %p174 = scmp.ne.s32.totalorder %s169, %s171
      %p175 = scmp.eq.s32.totalorder %s25, 0
      %p176 = por %p174, %p175
      %p177 = scmp.ne.s32.totalorder %s169, %s171
      %p178 = scmp.eq.s32.totalorder %s30, 1
      %p179 = por %p177, %p178
      %p180 = scmp.ne.s32.totalorder %s171, %s172
      %p181 = scmp.eq.s32.totalorder %s30, 0
      %p182 = por %p180, %p181
      %p183 = scmp.ne.s32.totalorder %s171, %s172
      %p184 = scmp.eq.s32.totalorder %s31, 1
      %p185 = por %p183, %p184
      %p187 = scmp.ne.s32.totalorder %s172, %s186
      %p188 = scmp.eq.s32.totalorder %s31, 0
      %p189 = por %p187, %p188
      %s191 = sadd.s32 %s190, 1
      %p194 = scmp.eq.s32.totalorder %s25, 1
      %p195 = scmp.ne.s32.totalorder %s190, %s192
      %p196 = scmp.eq.s32.totalorder %s25, 0
      %p197 = por %p195, %p196
      %p198 = scmp.ne.s32.totalorder %s190, %s192
      %p199 = scmp.eq.s32.totalorder %s30, 1
      %p200 = por %p198, %p199
      %p201 = scmp.ne.s32.totalorder %s192, %s193
      %p202 = scmp.eq.s32.totalorder %s30, 0
      %p203 = por %p201, %p202
      %p204 = scmp.ne.s32.totalorder %s192, %s193
      %p205 = scmp.eq.s32.totalorder %s31, 1
      %p206 = por %p204, %p205
      %p208 = scmp.ne.s32.totalorder %s193, %s207
      %p209 = scmp.eq.s32.totalorder %s31, 0
      %p210 = por %p208, %p209
      %s212 = sadd.s32 %s211, 1
      %p215 = scmp.eq.s32.totalorder %s25, 1
      %p216 = scmp.ne.s32.totalorder %s211, %s213
      %p217 = scmp.eq.s32.totalorder %s25, 0
      %p218 = por %p216, %p217
      %p219 = scmp.ne.s32.totalorder %s211, %s213
      %p220 = scmp.eq.s32.totalorder %s30, 1
      %p221 = por %p219, %p220
      %p222 = scmp.ne.s32.totalorder %s213, %s214
      %p223 = scmp.eq.s32.totalorder %s30, 0
      %p224 = por %p222, %p223
      %p225 = scmp.ne.s32.totalorder %s213, %s214
      %p226 = scmp.eq.s32.totalorder %s31, 1
      %p227 = por %p225, %p226
      %p229 = scmp.ne.s32.totalorder %s214, %s228
      %p230 = scmp.eq.s32.totalorder %s31, 0
      %p231 = por %p229, %p230
      %s233 = sadd.s32 %s232, 1
      %p236 = scmp.eq.s32.totalorder %s25, 1
      %p237 = scmp.ne.s32.totalorder %s232, %s234
      %p238 = scmp.eq.s32.totalorder %s25, 0
      %p239 = por %p237, %p238
      %p240 = scmp.ne.s32.totalorder %s232, %s234
      %p241 = scmp.eq.s32.totalorder %s30, 1
      %p242 = por %p240, %p241
      %p243 = scmp.ne.s32.totalorder %s234, %s235
      %p244 = scmp.eq.s32.totalorder %s30, 0
      %p245 = por %p243, %p244
      %p246 = scmp.ne.s32.totalorder %s234, %s235
      %p247 = scmp.eq.s32.totalorder %s31, 1
      %p248 = por %p246, %p247
      %p250 = scmp.ne.s32.totalorder %s235, %s249
      %p251 = scmp.eq.s32.totalorder %s31, 0
      %p252 = por %p250, %p251
      %s254 = sadd.s32 %s253, 1
      %p257 = scmp.eq.s32.totalorder %s25, 1
      %p258 = scmp.ne.s32.totalorder %s253, %s255
      %p259 = scmp.eq.s32.totalorder %s25, 0
      %p260 = por %p258, %p259
      %p261 = scmp.ne.s32.totalorder %s253, %s255
      %p262 = scmp.eq.s32.totalorder %s30, 1
      %p263 = por %p261, %p262
      %p264 = scmp.ne.s32.totalorder %s255, %s256
      %p265 = scmp.eq.s32.totalorder %s30, 0
      %p266 = por %p264, %p265
      %p267 = scmp.ne.s32.totalorder %s255, %s256
      %p268 = scmp.eq.s32.totalorder %s31, 1
      %p269 = por %p267, %p268
      %p271 = scmp.ne.s32.totalorder %s256, %s270
      %p272 = scmp.eq.s32.totalorder %s31, 0
      %p273 = por %p271, %p272
      %s275 = sadd.s32 %s274, 1
      %p278 = scmp.eq.s32.totalorder %s25, 1
      %p279 = scmp.ne.s32.totalorder %s274, %s276
      %p280 = scmp.eq.s32.totalorder %s25, 0
      %p281 = por %p279, %p280
      %p282 = scmp.ne.s32.totalorder %s274, %s276
      %p283 = scmp.eq.s32.totalorder %s30, 1
      %p284 = por %p282, %p283
      %p285 = scmp.ne.s32.totalorder %s276, %s277
      %p286 = scmp.eq.s32.totalorder %s30, 0
      %p287 = por %p285, %p286
      %p288 = scmp.ne.s32.totalorder %s276, %s277
      %p289 = scmp.eq.s32.totalorder %s31, 1
      %p290 = por %p288, %p289
      %p292 = scmp.ne.s32.totalorder %s277, %s291
      %p293 = scmp.eq.s32.totalorder %s31, 0
      %p294 = por %p292, %p293
      %s296 = sadd.s32 %s295, 1
      %p299 = scmp.eq.s32.totalorder %s25, 1
      %p300 = scmp.ne.s32.totalorder %s295, %s297
      %p301 = scmp.eq.s32.totalorder %s25, 0
      %p302 = por %p300, %p301
      %p303 = scmp.ne.s32.totalorder %s295, %s297
      %p304 = scmp.eq.s32.totalorder %s30, 1
      %p305 = por %p303, %p304
      %p306 = scmp.ne.s32.totalorder %s297, %s298
      %p307 = scmp.eq.s32.totalorder %s30, 0
      %p308 = por %p306, %p307
      %p309 = scmp.ne.s32.totalorder %s297, %s298
      %p310 = scmp.eq.s32.totalorder %s31, 1
      %p311 = por %p309, %p310
      %p313 = scmp.ne.s32.totalorder %s298, %s312
      %p314 = scmp.eq.s32.totalorder %s31, 0
      %p315 = por %p313, %p314
      %s317 = sadd.s32 %s316, 1
      %p320 = scmp.eq.s32.totalorder %s25, 1
      %p321 = scmp.ne.s32.totalorder %s316, %s318
      %p322 = scmp.eq.s32.totalorder %s25, 0
      %p323 = por %p321, %p322
      %p324 = scmp.ne.s32.totalorder %s316, %s318
      %p325 = scmp.eq.s32.totalorder %s30, 1
      %p326 = por %p324, %p325
      %p327 = scmp.ne.s32.totalorder %s318, %s319
      %p328 = scmp.eq.s32.totalorder %s30, 0
      %p329 = por %p327, %p328
      %p330 = scmp.ne.s32.totalorder %s318, %s319
      %p331 = scmp.eq.s32.totalorder %s31, 1
      %p332 = por %p330, %p331
      %p334 = scmp.ne.s32.totalorder %s319, %s333
      %p335 = scmp.eq.s32.totalorder %s31, 0
      %p336 = por %p334, %p335
      %s338 = sadd.s32 %s337, 1
      %p341 = scmp.eq.s32.totalorder %s25, 1
      %p342 = scmp.ne.s32.totalorder %s337, %s339
      %p343 = scmp.eq.s32.totalorder %s25, 0
      %p344 = por %p342, %p343
      %p345 = scmp.ne.s32.totalorder %s337, %s339
      %p346 = scmp.eq.s32.totalorder %s30, 1
      %p347 = por %p345, %p346
      %p348 = scmp.ne.s32.totalorder %s339, %s340
      %p349 = scmp.eq.s32.totalorder %s30, 0
      %p350 = por %p348, %p349
      %p351 = scmp.ne.s32.totalorder %s339, %s340
      %p352 = scmp.eq.s32.totalorder %s31, 1
      %p353 = por %p351, %p352
      %p355 = scmp.ne.s32.totalorder %s340, %s354
      %p356 = scmp.eq.s32.totalorder %s31, 0
      %p357 = por %p355, %p356
      %s359 = sadd.s32 %s358, 1
      %p362 = scmp.eq.s32.totalorder %s25, 1
      %p363 = scmp.ne.s32.totalorder %s358, %s360
      %p364 = scmp.eq.s32.totalorder %s25, 0
      %p365 = por %p363, %p364
      %p366 = scmp.ne.s32.totalorder %s358, %s360
      %p367 = scmp.eq.s32.totalorder %s30, 1
      %p368 = por %p366, %p367
      %p369 = scmp.ne.s32.totalorder %s360, %s361
      %p370 = scmp.eq.s32.totalorder %s30, 0
      %p371 = por %p369, %p370
      %p372 = scmp.ne.s32.totalorder %s360, %s361
      %p373 = scmp.eq.s32.totalorder %s31, 1
      %p374 = por %p372, %p373
      %p376 = scmp.ne.s32.totalorder %s361, %s375
      %p377 = scmp.eq.s32.totalorder %s31, 0
      %p378 = por %p376, %p377
      %s379 = ssub.s32 %s25, %s32
      %p380 = scmp.eq.s32.totalorder %s379, 0
      %s382 = sadd.s32 %s381, 1
      %s383 = scalar_select %p380, %s381, %s382
      %p386 = pneg %p380
      %p387 = scmp.eq.s32.totalorder %s25, 1
      %p388 = por %p386, %p387
      %p389 = scmp.ne.s32.totalorder %s381, %s384
      %p390 = scmp.eq.s32.totalorder %s25, 0
      %p391 = por %p389, %p390
      %p392 = scmp.ne.s32.totalorder %s381, %s384
      %p393 = scmp.eq.s32.totalorder %s30, 1
      %p394 = por %p392, %p393
      %p395 = scmp.ne.s32.totalorder %s384, %s385
      %p396 = scmp.eq.s32.totalorder %s30, 0
      %p397 = por %p395, %p396
      %p398 = scmp.ne.s32.totalorder %s384, %s385
      %p399 = scmp.eq.s32.totalorder %s31, 1
      %p400 = por %p398, %p399
      %p402 = scmp.ne.s32.totalorder %s385, %s401
      %p403 = scmp.eq.s32.totalorder %s31, 0
      %p404 = por %p402, %p403
      %p405 = scmp.le.s32.totalorder 1, %s25
      %p406 = scmp.lt.s32.totalorder %s25, 3
      %p407 = pnand %p405, %p406
      %p408 = pneg %p407
      // Predicated region
      $region9: #{tpu_custom_call.1} parent=5 // pred_check
        _
      $region10: #{tpu_custom_call.1} parent=5 // pred_check_branch
        %410 = sbr.rel (%p407) target = $region12
      $region11: #{tpu_custom_call.1} parent=5 // pred_region
        %s411 = ssub.s32 %s25, 1
        // Predicated region
        $region13: #{tpu_custom_call.1} parent=11 // pred_check
          %p412 = pneg %p98
        $region14: #{tpu_custom_call.1} parent=11 // pred_check_branch
          %414 = sbr.rel (%p412) target = $region16
        $region15: #{tpu_custom_call.1} parent=11 // pred_region
          _
        $region16: #{tpu_custom_call.1} parent=11 // pred_fallthru
          _
        // Predicated region
        $region17: #{tpu_custom_call.1} parent=11 // pred_check
          %p415 = pneg %p119
        $region18: #{tpu_custom_call.1} parent=11 // pred_check_branch
          %417 = sbr.rel (%p415) target = $region20
        $region19: #{tpu_custom_call.1} parent=11 // pred_region
          _
        $region20: #{tpu_custom_call.1} parent=11 // pred_fallthru
          _
        // Predicated region
        $region21: #{tpu_custom_call.1} parent=11 // pred_check
          %p418 = pneg %p140
        $region22: #{tpu_custom_call.1} parent=11 // pred_check_branch
          %420 = sbr.rel (%p418) target = $region24
        $region23: #{tpu_custom_call.1} parent=11 // pred_region
          _
        $region24: #{tpu_custom_call.1} parent=11 // pred_fallthru
          _
        // Predicated region
        $region25: #{tpu_custom_call.1} parent=11 // pred_check
          %p421 = pneg %p161
        $region26: #{tpu_custom_call.1} parent=11 // pred_check_branch
          %423 = sbr.rel (%p421) target = $region28
        $region27: #{tpu_custom_call.1} parent=11 // pred_region
          _
        $region28: #{tpu_custom_call.1} parent=11 // pred_fallthru
          _
        // Predicated region
        $region29: #{tpu_custom_call.1} parent=11 // pred_check
          %p424 = pneg %p182
        $region30: #{tpu_custom_call.1} parent=11 // pred_check_branch
          %426 = sbr.rel (%p424) target = $region32
        $region31: #{tpu_custom_call.1} parent=11 // pred_region
          _
        $region32: #{tpu_custom_call.1} parent=11 // pred_fallthru
          _
        // Predicated region
        $region33: #{tpu_custom_call.1} parent=11 // pred_check
          %p427 = pneg %p203
        $region34: #{tpu_custom_call.1} parent=11 // pred_check_branch
          %429 = sbr.rel (%p427) target = $region36
        $region35: #{tpu_custom_call.1} parent=11 // pred_region
          _
        $region36: #{tpu_custom_call.1} parent=11 // pred_fallthru
          _
        // Predicated region
        $region37: #{tpu_custom_call.1} parent=11 // pred_check
          %p430 = pneg %p224
        $region38: #{tpu_custom_call.1} parent=11 // pred_check_branch
          %432 = sbr.rel (%p430) target = $region40
        $region39: #{tpu_custom_call.1} parent=11 // pred_region
          _
        $region40: #{tpu_custom_call.1} parent=11 // pred_fallthru
          _
        // Predicated region
        $region41: #{tpu_custom_call.1} parent=11 // pred_check
          %p433 = pneg %p245
        $region42: #{tpu_custom_call.1} parent=11 // pred_check_branch
          %435 = sbr.rel (%p433) target = $region44
        $region43: #{tpu_custom_call.1} parent=11 // pred_region
          _
        $region44: #{tpu_custom_call.1} parent=11 // pred_fallthru
          _
        // Predicated region
        $region45: #{tpu_custom_call.1} parent=11 // pred_check
          %p436 = pneg %p266
        $region46: #{tpu_custom_call.1} parent=11 // pred_check_branch
          %438 = sbr.rel (%p436) target = $region48
        $region47: #{tpu_custom_call.1} parent=11 // pred_region
          _
        $region48: #{tpu_custom_call.1} parent=11 // pred_fallthru
          _
        // Predicated region
        $region49: #{tpu_custom_call.1} parent=11 // pred_check
          %p439 = pneg %p287
        $region50: #{tpu_custom_call.1} parent=11 // pred_check_branch
          %441 = sbr.rel (%p439) target = $region52
        $region51: #{tpu_custom_call.1} parent=11 // pred_region
          _
        $region52: #{tpu_custom_call.1} parent=11 // pred_fallthru
          _
        // Predicated region
        $region53: #{tpu_custom_call.1} parent=11 // pred_check
          %p442 = pneg %p308
        $region54: #{tpu_custom_call.1} parent=11 // pred_check_branch
          %444 = sbr.rel (%p442) target = $region56
        $region55: #{tpu_custom_call.1} parent=11 // pred_region
          _
        $region56: #{tpu_custom_call.1} parent=11 // pred_fallthru
          _
        // Predicated region
        $region57: #{tpu_custom_call.1} parent=11 // pred_check
          %p445 = pneg %p329
        $region58: #{tpu_custom_call.1} parent=11 // pred_check_branch
          %447 = sbr.rel (%p445) target = $region60
        $region59: #{tpu_custom_call.1} parent=11 // pred_region
          _
        $region60: #{tpu_custom_call.1} parent=11 // pred_fallthru
          _
        // Predicated region
        $region61: #{tpu_custom_call.1} parent=11 // pred_check
          %p448 = pneg %p350
        $region62: #{tpu_custom_call.1} parent=11 // pred_check_branch
          %450 = sbr.rel (%p448) target = $region64
        $region63: #{tpu_custom_call.1} parent=11 // pred_region
          _
        $region64: #{tpu_custom_call.1} parent=11 // pred_fallthru
          _
        // Predicated region
        $region65: #{tpu_custom_call.1} parent=11 // pred_check
          %p451 = pneg %p371
        $region66: #{tpu_custom_call.1} parent=11 // pred_check_branch
          %453 = sbr.rel (%p451) target = $region68
        $region67: #{tpu_custom_call.1} parent=11 // pred_region
          _
        $region68: #{tpu_custom_call.1} parent=11 // pred_fallthru
          _
      $region12: #{tpu_custom_call.1} parent=5 // pred_fallthru
        _
      %p454 = scmp.lt.s32.totalorder %s25, 2
      // Predicated region
      $region69: #{tpu_custom_call.1} parent=5 // pred_check
        %p455 = pneg %p454
      $region70: #{tpu_custom_call.1} parent=5 // pred_check_branch
        %457 = sbr.rel (%p455) target = $region72
      $region71: #{tpu_custom_call.1} parent=5 // pred_region
        // Predicated region
        $region73: #{tpu_custom_call.1} parent=71 // pred_check
          %p458 = pneg %p45
        $region74: #{tpu_custom_call.1} parent=71 // pred_check_branch
          %460 = sbr.rel (%p458) target = $region76
        $region75: #{tpu_custom_call.1} parent=71 // pred_region
          %p461 = scmp.lt.s32.totalorder %s25, 1
          %s462 = scalar_select %p461, %s25, 1
          %s463 = smul.addr %s462, 8
          %s464 = scalar_lea.vmem %s0, %s463
        $region76: #{tpu_custom_call.1} parent=71 // pred_fallthru
          _
        // Predicated region
        $region77: #{tpu_custom_call.1} parent=71 // pred_check
          %p465 = pneg %p71
        $region78: #{tpu_custom_call.1} parent=71 // pred_check_branch
          %467 = sbr.rel (%p465) target = $region80
        $region79: #{tpu_custom_call.1} parent=71 // pred_region
          %p468 = scmp.lt.s32.totalorder %s25, 1
          %s469 = scalar_select %p468, %s25, 1
          %s470 = scalar_lea.vmem %s1, %s469
        $region80: #{tpu_custom_call.1} parent=71 // pred_fallthru
          _
      $region72: #{tpu_custom_call.1} parent=5 // pred_fallthru
        _
      %p471 = scmp.le.s32.totalorder 1, %s25
      %p472 = scmp.lt.s32.totalorder %s25, 3
      %p473 = pnand %p471, %p472
      %p474 = pneg %p473
      // Predicated region
      $region81: #{tpu_custom_call.1} parent=5 // pred_check
        _
      $region82: #{tpu_custom_call.1} parent=5 // pred_check_branch
        %476 = sbr.rel (%p473) target = $region84
      $region83: #{tpu_custom_call.1} parent=5 // pred_region
        %s477 = ssub.s32 %s25, 1
        %p478 = scmp.lt.s32.totalorder %s30, 1
        %s479 = scalar_select %p478, %s30, 1
        %s480 = smul.addr %s479, 8
        %s481 = scalar_lea.vmem %s0, %s480
        %p482 = pneg %p51
        %p483 = pneg %p48
        %p484 = scmp.lt.s32.totalorder %s30, 1
        %s485 = scalar_select %p484, %s30, 1
        %s486 = scalar_lea.vmem %s1, %s485
        %p487 = pneg %p77
        %p488 = pneg %p74
        %p489 = pneg %p98
        %p490 = pneg %p95
        %p491 = pneg %p119
        %p492 = pneg %p116
        %p493 = pneg %p140
        %p494 = pneg %p137
        %p495 = pneg %p161
        %p496 = pneg %p158
        %p497 = pneg %p182
        %p498 = pneg %p179
        %p499 = pneg %p203
        %p500 = pneg %p200
        %p501 = pneg %p224
        %p502 = pneg %p221
        %p503 = pneg %p245
        %p504 = pneg %p242
        %p505 = pneg %p266
        %p506 = pneg %p263
        %p507 = pneg %p287
        %p508 = pneg %p284
        %p509 = pneg %p308
        %p510 = pneg %p305
        %p511 = pneg %p329
        %p512 = pneg %p326
        %p513 = pneg %p350
        %p514 = pneg %p347
        %p515 = pneg %p371
        %p516 = pneg %p368
        %p517 = pneg %p397
        %p518 = pneg %p394
        %s519 = sand.u32 %s384, 1
        %s520 = scalar_lea.sflag [#allocation3], %s519
        %s521 = sand.u32 %s384, 1
        %s522 = scalar_lea.vmem [#allocation2], %s521
        %p523 = scmp.lt.s32.totalorder %s30, 1
        %s524 = scalar_select %p523, %s30, 1
        %s525 = smul.addr %s524, 8
        %s526 = scalar_lea.vmem %s0, %s525
        %p527 = scmp.lt.s32.totalorder %s30, 1
        %s528 = scalar_select %p527, %s30, 1
        %s529 = scalar_lea.vmem %s1, %s528
        %v530 = vld [vmem:[%s526] sm:$0xff]
        %v531 = vld [vmem:[%s529] sm:$0x1]
        %v532 = vld [vmem:[%s2] sm:$0x1]
        %v533 = vld [vmem:[%s3] sm:$0x1]
        %vm534 = vcmask 261120
        %v535 = vsel %vm534, %v530, 0.0
        %536 = vadd.xlane.f32.xlu0 %v535
        %v537 = vpop.xlane.xlu0 %536
        %v538 = vrcp.pop 32.0
        %v539 = vmul.f32 32.0, %v538
        %v540 = vsub.f32 1.0, %v539
        %v541 = vmul.f32 %v538, %v540
        %v542 = vadd.f32 %v538, %v541
        %vm543 = vweird.f32 %v538
        %v544 = vsel %vm543, %v538, %v542
        %v545 = vmul.f32 %v537, %v544
        %v546 = vsub.f32 %v530, %v545
        %v547 = vmul.f32 %v546, %v546
        %v548 = vsel %vm534, %v547, 0.0
        %549 = vadd.xlane.f32.xlu0 %v548
        %v550 = vpop.xlane.xlu0 %549
        %v551 = vmul.f32 %v550, %v544
        %v552 = vadd.f32 %v551, 1e-12
        %v553 = vrsqrt.pop %v552
        %v554 = vmul.f32 %v553, %v552
        %v555 = vmul.f32 %v554, %v553
        %v556 = vmul.f32 0.5, %v555
        %v557 = vsub.f32 1.5, %v556
        %v558 = vmul.f32 %v553, %v557
        %vm559 = vweird.f32 %v552
        %vm560 = vweird.f32 %v553
        %vm561 = vmor %vm559, %vm560
        %v562 = vsel %vm561, %v553, %v558
        %v563 = vmul.f32 %v546, %v562
        %v565 = vperm.slane %v532, 0
        %v567 = vmul.f32 %v563, %v565
        %v569 = vperm.slane %v533, 0
        %v571 = vadd.f32 %v567, %v569
        %v572 = vld [vmem:[%s4] sm:$0xff]
        %v573 = vld [vmem:[%s4 + $0x8] sm:$0xff]
        %v574 = vld [vmem:[%s4 + $0x10] sm:$0xff]
        %v575 = vld [vmem:[%s4 + $0x18] sm:$0xff]
        %v576 = vld [vmem:[%s5] sm:$0x1]
        %v577 = vld [vmem:[%s6] sm:$0xff]
        %v578 = vld [vmem:[%s6 + $0x8] sm:$0xff]
        %v579 = vld [vmem:[%s6 + $0x10] sm:$0xff]
        %v580 = vld [vmem:[%s6 + $0x18] sm:$0xff]
        %v581 = vld [vmem:[%s7] sm:$0x1]
        %v583 = vperm.slane %v576, 0
        %v586 = vsel %vm534, %v571, 0
        %588 = vmatpush.msra.mxu0 0.0
        %589 = vmatpush.msra.mxu0 0.0
        %590 = vmatpush.msra.mxu0 0.0
        %591 = vmatpush.msra.mxu0 0.0
        %592 = vmatpush.msra.mxu0 0.0
        %593 = vmatpush.msra.mxu0 0.0
        %594 = vmatpush.msra.mxu0 0.0
        %595 = vmatpush.msra.mxu0 0.0
        %596 = vmatpush.msra.mxu0 0.0
        %597 = vmatpush.msra.mxu0 0.0
        %598 = vmatpush.msra.mxu0 0.0
        %599 = vmatpush.msra.mxu0 0.0
        %v600 = vand.u32 %v575, 4294901760
        %601 = vmatpush.msra.mxu0 %v600
        %v602 = vand.u32 %v574, 4294901760
        %603 = vmatpush.msra.mxu0 %v602
        %v604 = vand.u32 %v573, 4294901760
        %605 = vmatpush.msra.mxu0 %v604
        %v606 = vand.u32 %v572, 4294901760
        %607 = vmatpush.msra.mxu0 %v606
        %v608 = vand.u32 %v586, 4294901760
        %v609 = vsub.f32 %v586, %v608
        %v610 = vand.u32 %v609, 4294901760
        %v611 = vsub.f32 %v609, %v610
        %v612 = vand.u32 %v611, 4294901760
        %613 = vmatmul.f32.gmra.mxu0 %v612
        %v614 = vpop.f32.mrf.mxu0
        %v615 = vadd.f32 %v583, %v614
        %616 = vdwg.mxu0
        %617 = vmatpush.msra.mxu0 0.0
        %618 = vmatpush.msra.mxu0 0.0
        %619 = vmatpush.msra.mxu0 0.0
        %620 = vmatpush.msra.mxu0 0.0
        %621 = vmatpush.msra.mxu0 0.0
        %622 = vmatpush.msra.mxu0 0.0
        %623 = vmatpush.msra.mxu0 0.0
        %624 = vmatpush.msra.mxu0 0.0
        %625 = vmatpush.msra.mxu0 0.0
        %626 = vmatpush.msra.mxu0 0.0
        %627 = vmatpush.msra.mxu0 0.0
        %628 = vmatpush.msra.mxu0 0.0
        %v629 = vand.u32 %v575, 4294901760
        %v630 = vsub.f32 %v575, %v629
        %v631 = vand.u32 %v630, 4294901760
        %v632 = vsub.f32 %v630, %v631
        %v633 = vand.u32 %v632, 4294901760
        %634 = vmatpush.msra.mxu0 %v633
        %v635 = vand.u32 %v574, 4294901760
        %v636 = vsub.f32 %v574, %v635
        %v637 = vand.u32 %v636, 4294901760
        %v638 = vsub.f32 %v636, %v637
        %v639 = vand.u32 %v638, 4294901760
        %640 = vmatpush.msra.mxu0 %v639
        %v641 = vand.u32 %v573, 4294901760
        %v642 = vsub.f32 %v573, %v641
        %v643 = vand.u32 %v642, 4294901760
        %v644 = vsub.f32 %v642, %v643
        %v645 = vand.u32 %v644, 4294901760
        %646 = vmatpush.msra.mxu0 %v645
        %v647 = vand.u32 %v572, 4294901760
        %v648 = vsub.f32 %v572, %v647
        %v649 = vand.u32 %v648, 4294901760
        %v650 = vsub.f32 %v648, %v649
        %v651 = vand.u32 %v650, 4294901760
        %652 = vmatpush.msra.mxu0 %v651
        %v653 = vand.u32 %v586, 4294901760
        %654 = vmatmul.f32.gmra.mxu0 %v653
        %v655 = vpop.f32.mrf.mxu0
        %v656 = vadd.f32 %v615, %v655
        %657 = vdwg.mxu0
        %658 = vmatpush.msra.mxu0 0.0
        %659 = vmatpush.msra.mxu0 0.0
        %660 = vmatpush.msra.mxu0 0.0
        %661 = vmatpush.msra.mxu0 0.0
        %662 = vmatpush.msra.mxu0 0.0
        %663 = vmatpush.msra.mxu0 0.0
        %664 = vmatpush.msra.mxu0 0.0
        %665 = vmatpush.msra.mxu0 0.0
        %666 = vmatpush.msra.mxu0 0.0
        %667 = vmatpush.msra.mxu0 0.0
        %668 = vmatpush.msra.mxu0 0.0
        %669 = vmatpush.msra.mxu0 0.0
        %v670 = vand.u32 %v575, 4294901760
        %v671 = vsub.f32 %v575, %v670
        %672 = vmatpush.msra.mxu0 %v671
        %v673 = vand.u32 %v574, 4294901760
        %v674 = vsub.f32 %v574, %v673
        %675 = vmatpush.msra.mxu0 %v674
        %v676 = vand.u32 %v573, 4294901760
        %v677 = vsub.f32 %v573, %v676
        %678 = vmatpush.msra.mxu0 %v677
        %v679 = vand.u32 %v572, 4294901760
        %v680 = vsub.f32 %v572, %v679
        %681 = vmatpush.msra.mxu0 %v680
        %v682 = vand.u32 %v586, 4294901760
        %v683 = vsub.f32 %v586, %v682
        %684 = vmatmul.f32.gmra.mxu0 %v683
        %v685 = vpop.f32.mrf.mxu0
        %v686 = vadd.f32 %v656, %v685
        %687 = vdwg.mxu0
        %688 = vmatpush.msra.mxu0 0.0
        %689 = vmatpush.msra.mxu0 0.0
        %690 = vmatpush.msra.mxu0 0.0
        %691 = vmatpush.msra.mxu0 0.0
        %692 = vmatpush.msra.mxu0 0.0
        %693 = vmatpush.msra.mxu0 0.0
        %694 = vmatpush.msra.mxu0 0.0
        %695 = vmatpush.msra.mxu0 0.0
        %696 = vmatpush.msra.mxu0 0.0
        %697 = vmatpush.msra.mxu0 0.0
        %698 = vmatpush.msra.mxu0 0.0
        %699 = vmatpush.msra.mxu0 0.0
        %v700 = vand.u32 %v575, 4294901760
        %701 = vmatpush.msra.mxu0 %v700
        %v702 = vand.u32 %v574, 4294901760
        %703 = vmatpush.msra.mxu0 %v702
        %v704 = vand.u32 %v573, 4294901760
        %705 = vmatpush.msra.mxu0 %v704
        %v706 = vand.u32 %v572, 4294901760
        %707 = vmatpush.msra.mxu0 %v706
        %v708 = vand.u32 %v586, 4294901760
        %v709 = vsub.f32 %v586, %v708
        %v710 = vand.u32 %v709, 4294901760
        %711 = vmatmul.f32.gmra.mxu0 %v710
        %v712 = vpop.f32.mrf.mxu0
        %v713 = vadd.f32 %v686, %v712
        %714 = vdwg.mxu0
        %715 = vmatpush.msra.mxu0 0.0
        %716 = vmatpush.msra.mxu0 0.0
        %717 = vmatpush.msra.mxu0 0.0
        %718 = vmatpush.msra.mxu0 0.0
        %719 = vmatpush.msra.mxu0 0.0
        %720 = vmatpush.msra.mxu0 0.0
        %721 = vmatpush.msra.mxu0 0.0
        %722 = vmatpush.msra.mxu0 0.0
        %723 = vmatpush.msra.mxu0 0.0
        %724 = vmatpush.msra.mxu0 0.0
        %725 = vmatpush.msra.mxu0 0.0
        %726 = vmatpush.msra.mxu0 0.0
        %v727 = vand.u32 %v575, 4294901760
        %v728 = vsub.f32 %v575, %v727
        %v729 = vand.u32 %v728, 4294901760
        %730 = vmatpush.msra.mxu0 %v729
        %v731 = vand.u32 %v574, 4294901760
        %v732 = vsub.f32 %v574, %v731
        %v733 = vand.u32 %v732, 4294901760
        %734 = vmatpush.msra.mxu0 %v733
        %v735 = vand.u32 %v573, 4294901760
        %v736 = vsub.f32 %v573, %v735
        %v737 = vand.u32 %v736, 4294901760
        %738 = vmatpush.msra.mxu0 %v737
        %v739 = vand.u32 %v572, 4294901760
        %v740 = vsub.f32 %v572, %v739
        %v741 = vand.u32 %v740, 4294901760
        %742 = vmatpush.msra.mxu0 %v741
        %v743 = vand.u32 %v586, 4294901760
        %744 = vmatmul.f32.gmra.mxu0 %v743
        %v745 = vpop.f32.mrf.mxu0
        %v746 = vadd.f32 %v713, %v745
        %747 = vdwg.mxu0
        %748 = vmatpush.msra.mxu0 0.0
        %749 = vmatpush.msra.mxu0 0.0
        %750 = vmatpush.msra.mxu0 0.0
        %751 = vmatpush.msra.mxu0 0.0
        %752 = vmatpush.msra.mxu0 0.0
        %753 = vmatpush.msra.mxu0 0.0
        %754 = vmatpush.msra.mxu0 0.0
        %755 = vmatpush.msra.mxu0 0.0
        %756 = vmatpush.msra.mxu0 0.0
        %757 = vmatpush.msra.mxu0 0.0
        %758 = vmatpush.msra.mxu0 0.0
        %759 = vmatpush.msra.mxu0 0.0
        %v760 = vand.u32 %v575, 4294901760
        %761 = vmatpush.msra.mxu0 %v760
        %v762 = vand.u32 %v574, 4294901760
        %763 = vmatpush.msra.mxu0 %v762
        %v764 = vand.u32 %v573, 4294901760
        %765 = vmatpush.msra.mxu0 %v764
        %v766 = vand.u32 %v572, 4294901760
        %767 = vmatpush.msra.mxu0 %v766
        %v768 = vand.u32 %v586, 4294901760
        %769 = vmatmul.f32.gmra.mxu0 %v768
        %v770 = vpop.f32.mrf.mxu0
        %v771 = vadd.f32 %v746, %v770
        %772 = vdwg.mxu0
        %774 = vrot.lane.b32.xlu0 %v771, 96
        %v775 = vpop.permute.xlu0 %774
        %vm776 = vcmask 130048
        %v777 = vsel %vm776, %v771, 0
        %v779 = vsel %vm776, %v775, 0
        %781 = vmatpush.xpose.msra.mxu0 0.0
        %782 = vmatpush.xpose.msra.mxu0 0.0
        %783 = vmatpush.xpose.msra.mxu0 0.0
        %784 = vmatpush.xpose.msra.mxu0 0.0
        %785 = vmatpush.xpose.msra.mxu0 0.0
        %786 = vmatpush.xpose.msra.mxu0 0.0
        %787 = vmatpush.xpose.msra.mxu0 0.0
        %788 = vmatpush.xpose.msra.mxu0 0.0
        %789 = vmatpush.xpose.msra.mxu0 0.0
        %790 = vmatpush.xpose.msra.mxu0 0.0
        %791 = vmatpush.xpose.msra.mxu0 0.0
        %792 = vmatpush.xpose.msra.mxu0 0.0
        %793 = vmatpush.xpose.msra.mxu0 0.0
        %794 = vmatpush.xpose.msra.mxu0 0.0
        %795 = vmatpush.xpose.msra.mxu0 0.0
        %v796 = vand.u32 %v779, 4294901760
        %797 = vmatpush.xpose.msra.mxu0 %v796
        %v798 = vand.u32 %v777, 4294901760
        %v799 = vsub.f32 %v777, %v798
        %v800 = vand.u32 %v799, 4294901760
        %v801 = vsub.f32 %v799, %v800
        %v802 = vand.u32 %v801, 4294901760
        %803 = vmatmul.f32.gmra.mxu0 %v802
        %v804 = vpop.f32.mrf.mxu0
        %v805 = vadd.f32 0.0, %v804
        %806 = vdwg.mxu0
        %807 = vmatpush.xpose.msra.mxu0 0.0
        %808 = vmatpush.xpose.msra.mxu0 0.0
        %809 = vmatpush.xpose.msra.mxu0 0.0
        %810 = vmatpush.xpose.msra.mxu0 0.0
        %811 = vmatpush.xpose.msra.mxu0 0.0
        %812 = vmatpush.xpose.msra.mxu0 0.0
        %813 = vmatpush.xpose.msra.mxu0 0.0
        %814 = vmatpush.xpose.msra.mxu0 0.0
        %815 = vmatpush.xpose.msra.mxu0 0.0
        %816 = vmatpush.xpose.msra.mxu0 0.0
        %817 = vmatpush.xpose.msra.mxu0 0.0
        %818 = vmatpush.xpose.msra.mxu0 0.0
        %819 = vmatpush.xpose.msra.mxu0 0.0
        %820 = vmatpush.xpose.msra.mxu0 0.0
        %821 = vmatpush.xpose.msra.mxu0 0.0
        %v822 = vand.u32 %v779, 4294901760
        %v823 = vsub.f32 %v779, %v822
        %v824 = vand.u32 %v823, 4294901760
        %v825 = vsub.f32 %v823, %v824
        %v826 = vand.u32 %v825, 4294901760
        %827 = vmatpush.xpose.msra.mxu0 %v826
        %v828 = vand.u32 %v777, 4294901760
        %829 = vmatmul.f32.gmra.mxu0 %v828
        %v830 = vpop.f32.mrf.mxu0
        %v831 = vadd.f32 %v805, %v830
        %832 = vdwg.mxu0
        %833 = vmatpush.xpose.msra.mxu0 0.0
        %834 = vmatpush.xpose.msra.mxu0 0.0
        %835 = vmatpush.xpose.msra.mxu0 0.0
        %836 = vmatpush.xpose.msra.mxu0 0.0
        %837 = vmatpush.xpose.msra.mxu0 0.0
        %838 = vmatpush.xpose.msra.mxu0 0.0
        %839 = vmatpush.xpose.msra.mxu0 0.0
        %840 = vmatpush.xpose.msra.mxu0 0.0
        %841 = vmatpush.xpose.msra.mxu0 0.0
        %842 = vmatpush.xpose.msra.mxu0 0.0
        %843 = vmatpush.xpose.msra.mxu0 0.0
        %844 = vmatpush.xpose.msra.mxu0 0.0
        %845 = vmatpush.xpose.msra.mxu0 0.0
        %846 = vmatpush.xpose.msra.mxu0 0.0
        %847 = vmatpush.xpose.msra.mxu0 0.0
        %v848 = vand.u32 %v779, 4294901760
        %v849 = vsub.f32 %v779, %v848
        %850 = vmatpush.xpose.msra.mxu0 %v849
        %v851 = vand.u32 %v777, 4294901760
        %v852 = vsub.f32 %v777, %v851
        %853 = vmatmul.f32.gmra.mxu0 %v852
        %v854 = vpop.f32.mrf.mxu0
        %v855 = vadd.f32 %v831, %v854
        %856 = vdwg.mxu0
        %857 = vmatpush.xpose.msra.mxu0 0.0
        %858 = vmatpush.xpose.msra.mxu0 0.0
        %859 = vmatpush.xpose.msra.mxu0 0.0
        %860 = vmatpush.xpose.msra.mxu0 0.0
        %861 = vmatpush.xpose.msra.mxu0 0.0
        %862 = vmatpush.xpose.msra.mxu0 0.0
        %863 = vmatpush.xpose.msra.mxu0 0.0
        %864 = vmatpush.xpose.msra.mxu0 0.0
        %865 = vmatpush.xpose.msra.mxu0 0.0
        %866 = vmatpush.xpose.msra.mxu0 0.0
        %867 = vmatpush.xpose.msra.mxu0 0.0
        %868 = vmatpush.xpose.msra.mxu0 0.0
        %869 = vmatpush.xpose.msra.mxu0 0.0
        %870 = vmatpush.xpose.msra.mxu0 0.0
        %871 = vmatpush.xpose.msra.mxu0 0.0
        %v872 = vand.u32 %v779, 4294901760
        %873 = vmatpush.xpose.msra.mxu0 %v872
        %v874 = vand.u32 %v777, 4294901760
        %v875 = vsub.f32 %v777, %v874
        %v876 = vand.u32 %v875, 4294901760
        %877 = vmatmul.f32.gmra.mxu0 %v876
        %v878 = vpop.f32.mrf.mxu0
        %v879 = vadd.f32 %v855, %v878
        %880 = vdwg.mxu0
        %881 = vmatpush.xpose.msra.mxu0 0.0
        %882 = vmatpush.xpose.msra.mxu0 0.0
        %883 = vmatpush.xpose.msra.mxu0 0.0
        %884 = vmatpush.xpose.msra.mxu0 0.0
        %885 = vmatpush.xpose.msra.mxu0 0.0
        %886 = vmatpush.xpose.msra.mxu0 0.0
        %887 = vmatpush.xpose.msra.mxu0 0.0
        %888 = vmatpush.xpose.msra.mxu0 0.0
        %889 = vmatpush.xpose.msra.mxu0 0.0
        %890 = vmatpush.xpose.msra.mxu0 0.0
        %891 = vmatpush.xpose.msra.mxu0 0.0
        %892 = vmatpush.xpose.msra.mxu0 0.0
        %893 = vmatpush.xpose.msra.mxu0 0.0
        %894 = vmatpush.xpose.msra.mxu0 0.0
        %895 = vmatpush.xpose.msra.mxu0 0.0
        %v896 = vand.u32 %v779, 4294901760
        %v897 = vsub.f32 %v779, %v896
        %v898 = vand.u32 %v897, 4294901760
        %899 = vmatpush.xpose.msra.mxu0 %v898
        %v900 = vand.u32 %v777, 4294901760
        %901 = vmatmul.f32.gmra.mxu0 %v900
        %v902 = vpop.f32.mrf.mxu0
        %v903 = vadd.f32 %v879, %v902
        %904 = vdwg.mxu0
        %905 = vmatpush.xpose.msra.mxu0 0.0
        %906 = vmatpush.xpose.msra.mxu0 0.0
        %907 = vmatpush.xpose.msra.mxu0 0.0
        %908 = vmatpush.xpose.msra.mxu0 0.0
        %909 = vmatpush.xpose.msra.mxu0 0.0
        %910 = vmatpush.xpose.msra.mxu0 0.0
        %911 = vmatpush.xpose.msra.mxu0 0.0
        %912 = vmatpush.xpose.msra.mxu0 0.0
        %913 = vmatpush.xpose.msra.mxu0 0.0
        %914 = vmatpush.xpose.msra.mxu0 0.0
        %915 = vmatpush.xpose.msra.mxu0 0.0
        %916 = vmatpush.xpose.msra.mxu0 0.0
        %917 = vmatpush.xpose.msra.mxu0 0.0
        %918 = vmatpush.xpose.msra.mxu0 0.0
        %919 = vmatpush.xpose.msra.mxu0 0.0
        %v920 = vand.u32 %v779, 4294901760
        %921 = vmatpush.xpose.msra.mxu0 %v920
        %v922 = vand.u32 %v777, 4294901760
        %923 = vmatmul.f32.gmra.mxu0 %v922
        %v924 = vpop.f32.mrf.mxu0
        %v925 = vadd.f32 %v903, %v924
        %926 = vdwg.mxu0
        %v927 = vmul.f32 %v925, 0.25
        %v929 = vperm.slane %v531, 0
        %v931 = vadd.f32 %v927, %v929
        %vm932 = vcmask 64512
        %v933 = vsel %vm932, %v931, -inf
        %934 = vmax.xlane.f32.xlu0 %v933
        %v935 = vpop.xlane.xlu0 %934
        %v936 = vsub.f32 %v931, %v935
        %v937 = vmul.f32 %v936, 1.442695
        %v938 = vpow.pop %v937
        %v939 = vsel %vm932, %v938, 0.0
        %940 = vadd.xlane.f32.xlu0 %v939
        %v941 = vpop.xlane.xlu0 %940
        %v942 = vrcp.pop %v941
        %v943 = vmul.f32 %v941, %v942
        %v944 = vsub.f32 1.0, %v943
        %v945 = vmul.f32 %v942, %v944
        %v946 = vadd.f32 %v942, %v945
        %vm947 = vweird.f32 %v941
        %vm948 = vweird.f32 %v942
        %vm949 = vmor %vm947, %vm948
        %v950 = vsel %vm949, %v942, %v946
        %v951 = vand.u32 2147483647, %v941
        %vm952 = vcmp.eq.f32.partialorder %v951, 8.507059e+37
        %v953 = vand.u32 %v941, 2147483648
        %v954 = vor.u32 1.1754944e-38, %v953
        %v955 = vsel %vm952, %v954, %v950
        %v956 = vmul.f32 %v938, %v955
        %957 = vrot.lane.b32.xlu0 %v771, 64
        %v958 = vpop.permute.xlu0 %957
        %v961 = vsel %vm932, %v956, 0
        %963 = vmatpush.msra.mxu0 0.0
        %964 = vmatpush.msra.mxu0 0.0
        %965 = vmatpush.msra.mxu0 0.0
        %966 = vmatpush.msra.mxu0 0.0
        %967 = vmatpush.msra.mxu0 0.0
        %968 = vmatpush.msra.mxu0 0.0
        %969 = vmatpush.msra.mxu0 0.0
        %970 = vmatpush.msra.mxu0 0.0
        %971 = vmatpush.msra.mxu0 0.0
        %972 = vmatpush.msra.mxu0 0.0
        %973 = vmatpush.msra.mxu0 0.0
        %974 = vmatpush.msra.mxu0 0.0
        %975 = vmatpush.msra.mxu0 0.0
        %976 = vmatpush.msra.mxu0 0.0
        %977 = vmatpush.msra.mxu0 0.0
        %v978 = vand.u32 %v958, 4294901760
        %979 = vmatpush.msra.mxu0 %v978
        %v980 = vand.u32 %v961, 4294901760
        %v981 = vsub.f32 %v961, %v980
        %v982 = vand.u32 %v981, 4294901760
        %v983 = vsub.f32 %v981, %v982
        %v984 = vand.u32 %v983, 4294901760
        %985 = vmatmul.f32.gmra.mxu0 %v984
        %v986 = vpop.f32.mrf.mxu0
        %v987 = vadd.f32 0.0, %v986
        %988 = vdwg.mxu0
        %989 = vmatpush.msra.mxu0 0.0
        %990 = vmatpush.msra.mxu0 0.0
        %991 = vmatpush.msra.mxu0 0.0
        %992 = vmatpush.msra.mxu0 0.0
        %993 = vmatpush.msra.mxu0 0.0
        %994 = vmatpush.msra.mxu0 0.0
        %995 = vmatpush.msra.mxu0 0.0
        %996 = vmatpush.msra.mxu0 0.0
        %997 = vmatpush.msra.mxu0 0.0
        %998 = vmatpush.msra.mxu0 0.0
        %999 = vmatpush.msra.mxu0 0.0
        %1000 = vmatpush.msra.mxu0 0.0
        %1001 = vmatpush.msra.mxu0 0.0
        %1002 = vmatpush.msra.mxu0 0.0
        %1003 = vmatpush.msra.mxu0 0.0
        %v1004 = vand.u32 %v958, 4294901760
        %v1005 = vsub.f32 %v958, %v1004
        %v1006 = vand.u32 %v1005, 4294901760
        %v1007 = vsub.f32 %v1005, %v1006
        %v1008 = vand.u32 %v1007, 4294901760
        %1009 = vmatpush.msra.mxu0 %v1008
        %v1010 = vand.u32 %v961, 4294901760
        %1011 = vmatmul.f32.gmra.mxu0 %v1010
        %v1012 = vpop.f32.mrf.mxu0
        %v1013 = vadd.f32 %v987, %v1012
        %1014 = vdwg.mxu0
        %1015 = vmatpush.msra.mxu0 0.0
        %1016 = vmatpush.msra.mxu0 0.0
        %1017 = vmatpush.msra.mxu0 0.0
        %1018 = vmatpush.msra.mxu0 0.0
        %1019 = vmatpush.msra.mxu0 0.0
        %1020 = vmatpush.msra.mxu0 0.0
        %1021 = vmatpush.msra.mxu0 0.0
        %1022 = vmatpush.msra.mxu0 0.0
        %1023 = vmatpush.msra.mxu0 0.0
        %1024 = vmatpush.msra.mxu0 0.0
        %1025 = vmatpush.msra.mxu0 0.0
        %1026 = vmatpush.msra.mxu0 0.0
        %1027 = vmatpush.msra.mxu0 0.0
        %1028 = vmatpush.msra.mxu0 0.0
        %1029 = vmatpush.msra.mxu0 0.0
        %v1030 = vand.u32 %v958, 4294901760
        %v1031 = vsub.f32 %v958, %v1030
        %1032 = vmatpush.msra.mxu0 %v1031
        %v1033 = vand.u32 %v961, 4294901760
        %v1034 = vsub.f32 %v961, %v1033
        %1035 = vmatmul.f32.gmra.mxu0 %v1034
        %v1036 = vpop.f32.mrf.mxu0
        %v1037 = vadd.f32 %v1013, %v1036
        %1038 = vdwg.mxu0
        %1039 = vmatpush.msra.mxu0 0.0
        %1040 = vmatpush.msra.mxu0 0.0
        %1041 = vmatpush.msra.mxu0 0.0
        %1042 = vmatpush.msra.mxu0 0.0
        %1043 = vmatpush.msra.mxu0 0.0
        %1044 = vmatpush.msra.mxu0 0.0
        %1045 = vmatpush.msra.mxu0 0.0
        %1046 = vmatpush.msra.mxu0 0.0
        %1047 = vmatpush.msra.mxu0 0.0
        %1048 = vmatpush.msra.mxu0 0.0
        %1049 = vmatpush.msra.mxu0 0.0
        %1050 = vmatpush.msra.mxu0 0.0
        %1051 = vmatpush.msra.mxu0 0.0
        %1052 = vmatpush.msra.mxu0 0.0
        %1053 = vmatpush.msra.mxu0 0.0
        %v1054 = vand.u32 %v958, 4294901760
        %1055 = vmatpush.msra.mxu0 %v1054
        %v1056 = vand.u32 %v961, 4294901760
        %v1057 = vsub.f32 %v961, %v1056
        %v1058 = vand.u32 %v1057, 4294901760
        %1059 = vmatmul.f32.gmra.mxu0 %v1058
        %v1060 = vpop.f32.mrf.mxu0
        %v1061 = vadd.f32 %v1037, %v1060
        %1062 = vdwg.mxu0
        %1063 = vmatpush.msra.mxu0 0.0
        %1064 = vmatpush.msra.mxu0 0.0
        %1065 = vmatpush.msra.mxu0 0.0
        %1066 = vmatpush.msra.mxu0 0.0
        %1067 = vmatpush.msra.mxu0 0.0
        %1068 = vmatpush.msra.mxu0 0.0
        %1069 = vmatpush.msra.mxu0 0.0
        %1070 = vmatpush.msra.mxu0 0.0
        %1071 = vmatpush.msra.mxu0 0.0
        %1072 = vmatpush.msra.mxu0 0.0
        %1073 = vmatpush.msra.mxu0 0.0
        %1074 = vmatpush.msra.mxu0 0.0
        %1075 = vmatpush.msra.mxu0 0.0
        %1076 = vmatpush.msra.mxu0 0.0
        %1077 = vmatpush.msra.mxu0 0.0
        %v1078 = vand.u32 %v958, 4294901760
        %v1079 = vsub.f32 %v958, %v1078
        %v1080 = vand.u32 %v1079, 4294901760
        %1081 = vmatpush.msra.mxu0 %v1080
        %v1082 = vand.u32 %v961, 4294901760
        %1083 = vmatmul.f32.gmra.mxu0 %v1082
        %v1084 = vpop.f32.mrf.mxu0
        %v1085 = vadd.f32 %v1061, %v1084
        %1086 = vdwg.mxu0
        %1087 = vmatpush.msra.mxu0 0.0
        %1088 = vmatpush.msra.mxu0 0.0
        %1089 = vmatpush.msra.mxu0 0.0
        %1090 = vmatpush.msra.mxu0 0.0
        %1091 = vmatpush.msra.mxu0 0.0
        %1092 = vmatpush.msra.mxu0 0.0
        %1093 = vmatpush.msra.mxu0 0.0
        %1094 = vmatpush.msra.mxu0 0.0
        %1095 = vmatpush.msra.mxu0 0.0
        %1096 = vmatpush.msra.mxu0 0.0
        %1097 = vmatpush.msra.mxu0 0.0
        %1098 = vmatpush.msra.mxu0 0.0
        %1099 = vmatpush.msra.mxu0 0.0
        %1100 = vmatpush.msra.mxu0 0.0
        %1101 = vmatpush.msra.mxu0 0.0
        %v1102 = vand.u32 %v958, 4294901760
        %1103 = vmatpush.msra.mxu0 %v1102
        %v1104 = vand.u32 %v961, 4294901760
        %1105 = vmatmul.f32.gmra.mxu0 %v1104
        %v1106 = vpop.f32.mrf.mxu0
        %v1107 = vadd.f32 %v1085, %v1106
        %1108 = vdwg.mxu0
        %1109 = vrot.lane.b32.xlu0 %v771, 112
        %v1110 = vpop.permute.xlu0 %1109
        %1111 = vrot.lane.b32.xlu0 %v771, 80
        %v1112 = vpop.permute.xlu0 %1111
        %v1113 = vsel %vm776, %v1110, 0
        %v1115 = vsel %vm776, %v1112, 0
        %1117 = vmatpush.xpose.msra.mxu0 0.0
        %1118 = vmatpush.xpose.msra.mxu0 0.0
        %1119 = vmatpush.xpose.msra.mxu0 0.0
        %1120 = vmatpush.xpose.msra.mxu0 0.0
        %1121 = vmatpush.xpose.msra.mxu0 0.0
        %1122 = vmatpush.xpose.msra.mxu0 0.0
        %1123 = vmatpush.xpose.msra.mxu0 0.0
        %1124 = vmatpush.xpose.msra.mxu0 0.0
        %1125 = vmatpush.xpose.msra.mxu0 0.0
        %1126 = vmatpush.xpose.msra.mxu0 0.0
        %1127 = vmatpush.xpose.msra.mxu0 0.0
        %1128 = vmatpush.xpose.msra.mxu0 0.0
        %1129 = vmatpush.xpose.msra.mxu0 0.0
        %1130 = vmatpush.xpose.msra.mxu0 0.0
        %1131 = vmatpush.xpose.msra.mxu0 0.0
        %v1132 = vand.u32 %v1115, 4294901760
        %1133 = vmatpush.xpose.msra.mxu0 %v1132
        %v1134 = vand.u32 %v1113, 4294901760
        %v1135 = vsub.f32 %v1113, %v1134
        %v1136 = vand.u32 %v1135, 4294901760
        %v1137 = vsub.f32 %v1135, %v1136
        %v1138 = vand.u32 %v1137, 4294901760
        %1139 = vmatmul.f32.gmra.mxu0 %v1138
        %v1140 = vpop.f32.mrf.mxu0
        %v1141 = vadd.f32 0.0, %v1140
        %1142 = vdwg.mxu0
        %1143 = vmatpush.xpose.msra.mxu0 0.0
        %1144 = vmatpush.xpose.msra.mxu0 0.0
        %1145 = vmatpush.xpose.msra.mxu0 0.0
        %1146 = vmatpush.xpose.msra.mxu0 0.0
        %1147 = vmatpush.xpose.msra.mxu0 0.0
        %1148 = vmatpush.xpose.msra.mxu0 0.0
        %1149 = vmatpush.xpose.msra.mxu0 0.0
        %1150 = vmatpush.xpose.msra.mxu0 0.0
        %1151 = vmatpush.xpose.msra.mxu0 0.0
        %1152 = vmatpush.xpose.msra.mxu0 0.0
        %1153 = vmatpush.xpose.msra.mxu0 0.0
        %1154 = vmatpush.xpose.msra.mxu0 0.0
        %1155 = vmatpush.xpose.msra.mxu0 0.0
        %1156 = vmatpush.xpose.msra.mxu0 0.0
        %1157 = vmatpush.xpose.msra.mxu0 0.0
        %v1158 = vand.u32 %v1115, 4294901760
        %v1159 = vsub.f32 %v1115, %v1158
        %v1160 = vand.u32 %v1159, 4294901760
        %v1161 = vsub.f32 %v1159, %v1160
        %v1162 = vand.u32 %v1161, 4294901760
        %1163 = vmatpush.xpose.msra.mxu0 %v1162
        %v1164 = vand.u32 %v1113, 4294901760
        %1165 = vmatmul.f32.gmra.mxu0 %v1164
        %v1166 = vpop.f32.mrf.mxu0
        %v1167 = vadd.f32 %v1141, %v1166
        %1168 = vdwg.mxu0
        %1169 = vmatpush.xpose.msra.mxu0 0.0
        %1170 = vmatpush.xpose.msra.mxu0 0.0
        %1171 = vmatpush.xpose.msra.mxu0 0.0
        %1172 = vmatpush.xpose.msra.mxu0 0.0
        %1173 = vmatpush.xpose.msra.mxu0 0.0
        %1174 = vmatpush.xpose.msra.mxu0 0.0
        %1175 = vmatpush.xpose.msra.mxu0 0.0
        %1176 = vmatpush.xpose.msra.mxu0 0.0
        %1177 = vmatpush.xpose.msra.mxu0 0.0
        %1178 = vmatpush.xpose.msra.mxu0 0.0
        %1179 = vmatpush.xpose.msra.mxu0 0.0
        %1180 = vmatpush.xpose.msra.mxu0 0.0
        %1181 = vmatpush.xpose.msra.mxu0 0.0
        %1182 = vmatpush.xpose.msra.mxu0 0.0
        %1183 = vmatpush.xpose.msra.mxu0 0.0
        %v1184 = vand.u32 %v1115, 4294901760
        %v1185 = vsub.f32 %v1115, %v1184
        %1186 = vmatpush.xpose.msra.mxu0 %v1185
        %v1187 = vand.u32 %v1113, 4294901760
        %v1188 = vsub.f32 %v1113, %v1187
        %1189 = vmatmul.f32.gmra.mxu0 %v1188
        %v1190 = vpop.f32.mrf.mxu0
        %v1191 = vadd.f32 %v1167, %v1190
        %1192 = vdwg.mxu0
        %1193 = vmatpush.xpose.msra.mxu0 0.0
        %1194 = vmatpush.xpose.msra.mxu0 0.0
        %1195 = vmatpush.xpose.msra.mxu0 0.0
        %1196 = vmatpush.xpose.msra.mxu0 0.0
        %1197 = vmatpush.xpose.msra.mxu0 0.0
        %1198 = vmatpush.xpose.msra.mxu0 0.0
        %1199 = vmatpush.xpose.msra.mxu0 0.0
        %1200 = vmatpush.xpose.msra.mxu0 0.0
        %1201 = vmatpush.xpose.msra.mxu0 0.0
        %1202 = vmatpush.xpose.msra.mxu0 0.0
        %1203 = vmatpush.xpose.msra.mxu0 0.0
        %1204 = vmatpush.xpose.msra.mxu0 0.0
        %1205 = vmatpush.xpose.msra.mxu0 0.0
        %1206 = vmatpush.xpose.msra.mxu0 0.0
        %1207 = vmatpush.xpose.msra.mxu0 0.0
        %v1208 = vand.u32 %v1115, 4294901760
        %1209 = vmatpush.xpose.msra.mxu0 %v1208
        %v1210 = vand.u32 %v1113, 4294901760
        %v1211 = vsub.f32 %v1113, %v1210
        %v1212 = vand.u32 %v1211, 4294901760
        %1213 = vmatmul.f32.gmra.mxu0 %v1212
        %v1214 = vpop.f32.mrf.mxu0
        %v1215 = vadd.f32 %v1191, %v1214
        %1216 = vdwg.mxu0
        %1217 = vmatpush.xpose.msra.mxu0 0.0
        %1218 = vmatpush.xpose.msra.mxu0 0.0
        %1219 = vmatpush.xpose.msra.mxu0 0.0
        %1220 = vmatpush.xpose.msra.mxu0 0.0
        %1221 = vmatpush.xpose.msra.mxu0 0.0
        %1222 = vmatpush.xpose.msra.mxu0 0.0
        %1223 = vmatpush.xpose.msra.mxu0 0.0
        %1224 = vmatpush.xpose.msra.mxu0 0.0
        %1225 = vmatpush.xpose.msra.mxu0 0.0
        %1226 = vmatpush.xpose.msra.mxu0 0.0
        %1227 = vmatpush.xpose.msra.mxu0 0.0
        %1228 = vmatpush.xpose.msra.mxu0 0.0
        %1229 = vmatpush.xpose.msra.mxu0 0.0
        %1230 = vmatpush.xpose.msra.mxu0 0.0
        %1231 = vmatpush.xpose.msra.mxu0 0.0
        %v1232 = vand.u32 %v1115, 4294901760
        %v1233 = vsub.f32 %v1115, %v1232
        %v1234 = vand.u32 %v1233, 4294901760
        %1235 = vmatpush.xpose.msra.mxu0 %v1234
        %v1236 = vand.u32 %v1113, 4294901760
        %1237 = vmatmul.f32.gmra.mxu0 %v1236
        %v1238 = vpop.f32.mrf.mxu0
        %v1239 = vadd.f32 %v1215, %v1238
        %1240 = vdwg.mxu0
        %1241 = vmatpush.xpose.msra.mxu0 0.0
        %1242 = vmatpush.xpose.msra.mxu0 0.0
        %1243 = vmatpush.xpose.msra.mxu0 0.0
        %1244 = vmatpush.xpose.msra.mxu0 0.0
        %1245 = vmatpush.xpose.msra.mxu0 0.0
        %1246 = vmatpush.xpose.msra.mxu0 0.0
        %1247 = vmatpush.xpose.msra.mxu0 0.0
        %1248 = vmatpush.xpose.msra.mxu0 0.0
        %1249 = vmatpush.xpose.msra.mxu0 0.0
        %1250 = vmatpush.xpose.msra.mxu0 0.0
        %1251 = vmatpush.xpose.msra.mxu0 0.0
        %1252 = vmatpush.xpose.msra.mxu0 0.0
        %1253 = vmatpush.xpose.msra.mxu0 0.0
        %1254 = vmatpush.xpose.msra.mxu0 0.0
        %1255 = vmatpush.xpose.msra.mxu0 0.0
        %v1256 = vand.u32 %v1115, 4294901760
        %1257 = vmatpush.xpose.msra.mxu0 %v1256
        %v1258 = vand.u32 %v1113, 4294901760
        %1259 = vmatmul.f32.gmra.mxu0 %v1258
        %v1260 = vpop.f32.mrf.mxu0
        %v1261 = vadd.f32 %v1239, %v1260
        %1262 = vdwg.mxu0
        %v1263 = vmul.f32 %v1261, 0.25
        %v1264 = vadd.f32 %v1263, %v929
        %v1265 = vsel %vm932, %v1264, -inf
        %1266 = vmax.xlane.f32.xlu0 %v1265
        %v1267 = vpop.xlane.xlu0 %1266
        %v1268 = vsub.f32 %v1264, %v1267
        %v1269 = vmul.f32 %v1268, 1.442695
        %v1270 = vpow.pop %v1269
        %v1271 = vsel %vm932, %v1270, 0.0
        %1272 = vadd.xlane.f32.xlu0 %v1271
        %v1273 = vpop.xlane.xlu0 %1272
        %v1274 = vrcp.pop %v1273
        %v1275 = vmul.f32 %v1273, %v1274
        %v1276 = vsub.f32 1.0, %v1275
        %v1277 = vmul.f32 %v1274, %v1276
        %v1278 = vadd.f32 %v1274, %v1277
        %vm1279 = vweird.f32 %v1273
        %vm1280 = vweird.f32 %v1274
        %vm1281 = vmor %vm1279, %vm1280
        %v1282 = vsel %vm1281, %v1274, %v1278
        %v1283 = vand.u32 2147483647, %v1273
        %vm1284 = vcmp.eq.f32.partialorder %v1283, 8.507059e+37
        %v1285 = vand.u32 %v1273, 2147483648
        %v1286 = vor.u32 1.1754944e-38, %v1285
        %v1287 = vsel %vm1284, %v1286, %v1282
        %v1288 = vmul.f32 %v1270, %v1287
        %1289 = vrot.lane.b32.xlu0 %v771, 48
        %v1290 = vpop.permute.xlu0 %1289
        %v1293 = vsel %vm932, %v1288, 0
        %1295 = vmatpush.msra.mxu0 0.0
        %1296 = vmatpush.msra.mxu0 0.0
        %1297 = vmatpush.msra.mxu0 0.0
        %1298 = vmatpush.msra.mxu0 0.0
        %1299 = vmatpush.msra.mxu0 0.0
        %1300 = vmatpush.msra.mxu0 0.0
        %1301 = vmatpush.msra.mxu0 0.0
        %1302 = vmatpush.msra.mxu0 0.0
        %1303 = vmatpush.msra.mxu0 0.0
        %1304 = vmatpush.msra.mxu0 0.0
        %1305 = vmatpush.msra.mxu0 0.0
        %1306 = vmatpush.msra.mxu0 0.0
        %1307 = vmatpush.msra.mxu0 0.0
        %1308 = vmatpush.msra.mxu0 0.0
        %1309 = vmatpush.msra.mxu0 0.0
        %v1310 = vand.u32 %v1290, 4294901760
        %1311 = vmatpush.msra.mxu0 %v1310
        %v1312 = vand.u32 %v1293, 4294901760
        %v1313 = vsub.f32 %v1293, %v1312
        %v1314 = vand.u32 %v1313, 4294901760
        %v1315 = vsub.f32 %v1313, %v1314
        %v1316 = vand.u32 %v1315, 4294901760
        %1317 = vmatmul.f32.gmra.mxu0 %v1316
        %v1318 = vpop.f32.mrf.mxu0
        %v1319 = vadd.f32 0.0, %v1318
        %1320 = vdwg.mxu0
        %1321 = vmatpush.msra.mxu0 0.0
        %1322 = vmatpush.msra.mxu0 0.0
        %1323 = vmatpush.msra.mxu0 0.0
        %1324 = vmatpush.msra.mxu0 0.0
        %1325 = vmatpush.msra.mxu0 0.0
        %1326 = vmatpush.msra.mxu0 0.0
        %1327 = vmatpush.msra.mxu0 0.0
        %1328 = vmatpush.msra.mxu0 0.0
        %1329 = vmatpush.msra.mxu0 0.0
        %1330 = vmatpush.msra.mxu0 0.0
        %1331 = vmatpush.msra.mxu0 0.0
        %1332 = vmatpush.msra.mxu0 0.0
        %1333 = vmatpush.msra.mxu0 0.0
        %1334 = vmatpush.msra.mxu0 0.0
        %1335 = vmatpush.msra.mxu0 0.0
        %v1336 = vand.u32 %v1290, 4294901760
        %v1337 = vsub.f32 %v1290, %v1336
        %v1338 = vand.u32 %v1337, 4294901760
        %v1339 = vsub.f32 %v1337, %v1338
        %v1340 = vand.u32 %v1339, 4294901760
        %1341 = vmatpush.msra.mxu0 %v1340
        %v1342 = vand.u32 %v1293, 4294901760
        %1343 = vmatmul.f32.gmra.mxu0 %v1342
        %v1344 = vpop.f32.mrf.mxu0
        %v1345 = vadd.f32 %v1319, %v1344
        %1346 = vdwg.mxu0
        %1347 = vmatpush.msra.mxu0 0.0
        %1348 = vmatpush.msra.mxu0 0.0
        %1349 = vmatpush.msra.mxu0 0.0
        %1350 = vmatpush.msra.mxu0 0.0
        %1351 = vmatpush.msra.mxu0 0.0
        %1352 = vmatpush.msra.mxu0 0.0
        %1353 = vmatpush.msra.mxu0 0.0
        %1354 = vmatpush.msra.mxu0 0.0
        %1355 = vmatpush.msra.mxu0 0.0
        %1356 = vmatpush.msra.mxu0 0.0
        %1357 = vmatpush.msra.mxu0 0.0
        %1358 = vmatpush.msra.mxu0 0.0
        %1359 = vmatpush.msra.mxu0 0.0
        %1360 = vmatpush.msra.mxu0 0.0
        %1361 = vmatpush.msra.mxu0 0.0
        %v1362 = vand.u32 %v1290, 4294901760
        %v1363 = vsub.f32 %v1290, %v1362
        %1364 = vmatpush.msra.mxu0 %v1363
        %v1365 = vand.u32 %v1293, 4294901760
        %v1366 = vsub.f32 %v1293, %v1365
        %1367 = vmatmul.f32.gmra.mxu0 %v1366
        %v1368 = vpop.f32.mrf.mxu0
        %v1369 = vadd.f32 %v1345, %v1368
        %1370 = vdwg.mxu0
        %1371 = vmatpush.msra.mxu0 0.0
        %1372 = vmatpush.msra.mxu0 0.0
        %1373 = vmatpush.msra.mxu0 0.0
        %1374 = vmatpush.msra.mxu0 0.0
        %1375 = vmatpush.msra.mxu0 0.0
        %1376 = vmatpush.msra.mxu0 0.0
        %1377 = vmatpush.msra.mxu0 0.0
        %1378 = vmatpush.msra.mxu0 0.0
        %1379 = vmatpush.msra.mxu0 0.0
        %1380 = vmatpush.msra.mxu0 0.0
        %1381 = vmatpush.msra.mxu0 0.0
        %1382 = vmatpush.msra.mxu0 0.0
        %1383 = vmatpush.msra.mxu0 0.0
        %1384 = vmatpush.msra.mxu0 0.0
        %1385 = vmatpush.msra.mxu0 0.0
        %v1386 = vand.u32 %v1290, 4294901760
        %1387 = vmatpush.msra.mxu0 %v1386
        %v1388 = vand.u32 %v1293, 4294901760
        %v1389 = vsub.f32 %v1293, %v1388
        %v1390 = vand.u32 %v1389, 4294901760
        %1391 = vmatmul.f32.gmra.mxu0 %v1390
        %v1392 = vpop.f32.mrf.mxu0
        %v1393 = vadd.f32 %v1369, %v1392
        %1394 = vdwg.mxu0
        %1395 = vmatpush.msra.mxu0 0.0
        %1396 = vmatpush.msra.mxu0 0.0
        %1397 = vmatpush.msra.mxu0 0.0
        %1398 = vmatpush.msra.mxu0 0.0
        %1399 = vmatpush.msra.mxu0 0.0
        %1400 = vmatpush.msra.mxu0 0.0
        %1401 = vmatpush.msra.mxu0 0.0
        %1402 = vmatpush.msra.mxu0 0.0
        %1403 = vmatpush.msra.mxu0 0.0
        %1404 = vmatpush.msra.mxu0 0.0
        %1405 = vmatpush.msra.mxu0 0.0
        %1406 = vmatpush.msra.mxu0 0.0
        %1407 = vmatpush.msra.mxu0 0.0
        %1408 = vmatpush.msra.mxu0 0.0
        %1409 = vmatpush.msra.mxu0 0.0
        %v1410 = vand.u32 %v1290, 4294901760
        %v1411 = vsub.f32 %v1290, %v1410
        %v1412 = vand.u32 %v1411, 4294901760
        %1413 = vmatpush.msra.mxu0 %v1412
        %v1414 = vand.u32 %v1293, 4294901760
        %1415 = vmatmul.f32.gmra.mxu0 %v1414
        %v1416 = vpop.f32.mrf.mxu0
        %v1417 = vadd.f32 %v1393, %v1416
        %1418 = vdwg.mxu0
        %1419 = vmatpush.msra.mxu0 0.0
        %1420 = vmatpush.msra.mxu0 0.0
        %1421 = vmatpush.msra.mxu0 0.0
        %1422 = vmatpush.msra.mxu0 0.0
        %1423 = vmatpush.msra.mxu0 0.0
        %1424 = vmatpush.msra.mxu0 0.0
        %1425 = vmatpush.msra.mxu0 0.0
        %1426 = vmatpush.msra.mxu0 0.0
        %1427 = vmatpush.msra.mxu0 0.0
        %1428 = vmatpush.msra.mxu0 0.0
        %1429 = vmatpush.msra.mxu0 0.0
        %1430 = vmatpush.msra.mxu0 0.0
        %1431 = vmatpush.msra.mxu0 0.0
        %1432 = vmatpush.msra.mxu0 0.0
        %1433 = vmatpush.msra.mxu0 0.0
        %v1434 = vand.u32 %v1290, 4294901760
        %1435 = vmatpush.msra.mxu0 %v1434
        %v1436 = vand.u32 %v1293, 4294901760
        %1437 = vmatmul.f32.gmra.mxu0 %v1436
        %v1438 = vpop.f32.mrf.mxu0
        %v1439 = vadd.f32 %v1417, %v1438
        %1440 = vdwg.mxu0
        %v1442 = vsel %vm776, %v1439, 0
        %1444 = vmatpush.msra.mxu0 0.0
        %1445 = vmatpush.msra.mxu0 0.0
        %1446 = vmatpush.msra.mxu0 0.0
        %1447 = vmatpush.msra.mxu0 0.0
        %1448 = vmatpush.msra.mxu0 0.0
        %1449 = vmatpush.msra.mxu0 0.0
        %1450 = vmatpush.msra.mxu0 0.0
        %1451 = vmatpush.msra.mxu0 0.0
        %1452 = vmatpush.msra.mxu0 0.0
        %1453 = vmatpush.msra.mxu0 0.0
        %1454 = vmatpush.msra.mxu0 0.0
        %1455 = vmatpush.msra.mxu0 0.0
        %1456 = vmatpush.msra.mxu0 0.0
        %1457 = vmatpush.msra.mxu0 0.0
        %v1458 = vand.u32 %v580, 4294901760
        %1459 = vmatpush.msra.mxu0 %v1458
        %v1460 = vand.u32 %v579, 4294901760
        %1461 = vmatpush.msra.mxu0 %v1460
        %v1462 = vand.u32 %v1442, 4294901760
        %v1463 = vsub.f32 %v1442, %v1462
        %v1464 = vand.u32 %v1463, 4294901760
        %v1465 = vsub.f32 %v1463, %v1464
        %v1466 = vand.u32 %v1465, 4294901760
        %1467 = vmatmul.f32.gmra.mxu0 %v1466
        %v1468 = vpop.f32.mrf.mxu0
        %v1469 = vadd.f32 0.0, %v1468
        %1470 = vdwg.mxu0
        %1471 = vmatpush.msra.mxu0 0.0
        %1472 = vmatpush.msra.mxu0 0.0
        %1473 = vmatpush.msra.mxu0 0.0
        %1474 = vmatpush.msra.mxu0 0.0
        %1475 = vmatpush.msra.mxu0 0.0
        %1476 = vmatpush.msra.mxu0 0.0
        %1477 = vmatpush.msra.mxu0 0.0
        %1478 = vmatpush.msra.mxu0 0.0
        %1479 = vmatpush.msra.mxu0 0.0
        %1480 = vmatpush.msra.mxu0 0.0
        %1481 = vmatpush.msra.mxu0 0.0
        %1482 = vmatpush.msra.mxu0 0.0
        %1483 = vmatpush.msra.mxu0 0.0
        %1484 = vmatpush.msra.mxu0 0.0
        %v1485 = vand.u32 %v580, 4294901760
        %v1486 = vsub.f32 %v580, %v1485
        %v1487 = vand.u32 %v1486, 4294901760
        %v1488 = vsub.f32 %v1486, %v1487
        %v1489 = vand.u32 %v1488, 4294901760
        %1490 = vmatpush.msra.mxu0 %v1489
        %v1491 = vand.u32 %v579, 4294901760
        %v1492 = vsub.f32 %v579, %v1491
        %v1493 = vand.u32 %v1492, 4294901760
        %v1494 = vsub.f32 %v1492, %v1493
        %v1495 = vand.u32 %v1494, 4294901760
        %1496 = vmatpush.msra.mxu0 %v1495
        %v1497 = vand.u32 %v1442, 4294901760
        %1498 = vmatmul.f32.gmra.mxu0 %v1497
        %v1499 = vpop.f32.mrf.mxu0
        %v1500 = vadd.f32 %v1469, %v1499
        %1501 = vdwg.mxu0
        %1502 = vmatpush.msra.mxu0 0.0
        %1503 = vmatpush.msra.mxu0 0.0
        %1504 = vmatpush.msra.mxu0 0.0
        %1505 = vmatpush.msra.mxu0 0.0
        %1506 = vmatpush.msra.mxu0 0.0
        %1507 = vmatpush.msra.mxu0 0.0
        %1508 = vmatpush.msra.mxu0 0.0
        %1509 = vmatpush.msra.mxu0 0.0
        %1510 = vmatpush.msra.mxu0 0.0
        %1511 = vmatpush.msra.mxu0 0.0
        %1512 = vmatpush.msra.mxu0 0.0
        %1513 = vmatpush.msra.mxu0 0.0
        %1514 = vmatpush.msra.mxu0 0.0
        %1515 = vmatpush.msra.mxu0 0.0
        %v1516 = vand.u32 %v580, 4294901760
        %v1517 = vsub.f32 %v580, %v1516
        %1518 = vmatpush.msra.mxu0 %v1517
        %v1519 = vand.u32 %v579, 4294901760
        %v1520 = vsub.f32 %v579, %v1519
        %1521 = vmatpush.msra.mxu0 %v1520
        %v1522 = vand.u32 %v1442, 4294901760
        %v1523 = vsub.f32 %v1442, %v1522
        %1524 = vmatmul.f32.gmra.mxu0 %v1523
        %v1525 = vpop.f32.mrf.mxu0
        %v1526 = vadd.f32 %v1500, %v1525
        %1527 = vdwg.mxu0
        %1528 = vmatpush.msra.mxu0 0.0
        %1529 = vmatpush.msra.mxu0 0.0
        %1530 = vmatpush.msra.mxu0 0.0
        %1531 = vmatpush.msra.mxu0 0.0
        %1532 = vmatpush.msra.mxu0 0.0
        %1533 = vmatpush.msra.mxu0 0.0
        %1534 = vmatpush.msra.mxu0 0.0
        %1535 = vmatpush.msra.mxu0 0.0
        %1536 = vmatpush.msra.mxu0 0.0
        %1537 = vmatpush.msra.mxu0 0.0
        %1538 = vmatpush.msra.mxu0 0.0
        %1539 = vmatpush.msra.mxu0 0.0
        %1540 = vmatpush.msra.mxu0 0.0
        %1541 = vmatpush.msra.mxu0 0.0
        %v1542 = vand.u32 %v580, 4294901760
        %1543 = vmatpush.msra.mxu0 %v1542
        %v1544 = vand.u32 %v579, 4294901760
        %1545 = vmatpush.msra.mxu0 %v1544
        %v1546 = vand.u32 %v1442, 4294901760
        %v1547 = vsub.f32 %v1442, %v1546
        %v1548 = vand.u32 %v1547, 4294901760
        %1549 = vmatmul.f32.gmra.mxu0 %v1548
        %v1550 = vpop.f32.mrf.mxu0
        %v1551 = vadd.f32 %v1526, %v1550
        %1552 = vdwg.mxu0
        %1553 = vmatpush.msra.mxu0 0.0
        %1554 = vmatpush.msra.mxu0 0.0
        %1555 = vmatpush.msra.mxu0 0.0
        %1556 = vmatpush.msra.mxu0 0.0
        %1557 = vmatpush.msra.mxu0 0.0
        %1558 = vmatpush.msra.mxu0 0.0
        %1559 = vmatpush.msra.mxu0 0.0
        %1560 = vmatpush.msra.mxu0 0.0
        %1561 = vmatpush.msra.mxu0 0.0
        %1562 = vmatpush.msra.mxu0 0.0
        %1563 = vmatpush.msra.mxu0 0.0
        %1564 = vmatpush.msra.mxu0 0.0
        %1565 = vmatpush.msra.mxu0 0.0
        %1566 = vmatpush.msra.mxu0 0.0
        %v1567 = vand.u32 %v580, 4294901760
        %v1568 = vsub.f32 %v580, %v1567
        %v1569 = vand.u32 %v1568, 4294901760
        %1570 = vmatpush.msra.mxu0 %v1569
        %v1571 = vand.u32 %v579, 4294901760
        %v1572 = vsub.f32 %v579, %v1571
        %v1573 = vand.u32 %v1572, 4294901760
        %1574 = vmatpush.msra.mxu0 %v1573
        %v1575 = vand.u32 %v1442, 4294901760
        %1576 = vmatmul.f32.gmra.mxu0 %v1575
        %v1577 = vpop.f32.mrf.mxu0
        %v1578 = vadd.f32 %v1551, %v1577
        %1579 = vdwg.mxu0
        %1580 = vmatpush.msra.mxu0 0.0
        %1581 = vmatpush.msra.mxu0 0.0
        %1582 = vmatpush.msra.mxu0 0.0
        %1583 = vmatpush.msra.mxu0 0.0
        %1584 = vmatpush.msra.mxu0 0.0
        %1585 = vmatpush.msra.mxu0 0.0
        %1586 = vmatpush.msra.mxu0 0.0
        %1587 = vmatpush.msra.mxu0 0.0
        %1588 = vmatpush.msra.mxu0 0.0
        %1589 = vmatpush.msra.mxu0 0.0
        %1590 = vmatpush.msra.mxu0 0.0
        %1591 = vmatpush.msra.mxu0 0.0
        %1592 = vmatpush.msra.mxu0 0.0
        %1593 = vmatpush.msra.mxu0 0.0
        %v1594 = vand.u32 %v580, 4294901760
        %1595 = vmatpush.msra.mxu0 %v1594
        %v1596 = vand.u32 %v579, 4294901760
        %1597 = vmatpush.msra.mxu0 %v1596
        %v1598 = vand.u32 %v1442, 4294901760
        %1599 = vmatmul.f32.gmra.mxu0 %v1598
        %v1600 = vpop.f32.mrf.mxu0
        %v1601 = vadd.f32 %v1578, %v1600
        %1602 = vdwg.mxu0
        %v1604 = vsel %vm776, %v1107, 0
        %1606 = vmatpush.msra.mxu0 0.0
        %1607 = vmatpush.msra.mxu0 0.0
        %1608 = vmatpush.msra.mxu0 0.0
        %1609 = vmatpush.msra.mxu0 0.0
        %1610 = vmatpush.msra.mxu0 0.0
        %1611 = vmatpush.msra.mxu0 0.0
        %1612 = vmatpush.msra.mxu0 0.0
        %1613 = vmatpush.msra.mxu0 0.0
        %1614 = vmatpush.msra.mxu0 0.0
        %1615 = vmatpush.msra.mxu0 0.0
        %1616 = vmatpush.msra.mxu0 0.0
        %1617 = vmatpush.msra.mxu0 0.0
        %1618 = vmatpush.msra.mxu0 0.0
        %1619 = vmatpush.msra.mxu0 0.0
        %v1620 = vand.u32 %v578, 4294901760
        %1621 = vmatpush.msra.mxu0 %v1620
        %v1622 = vand.u32 %v577, 4294901760
        %1623 = vmatpush.msra.mxu0 %v1622
        %v1624 = vand.u32 %v1604, 4294901760
        %v1625 = vsub.f32 %v1604, %v1624
        %v1626 = vand.u32 %v1625, 4294901760
        %v1627 = vsub.f32 %v1625, %v1626
        %v1628 = vand.u32 %v1627, 4294901760
        %1629 = vmatmul.f32.gmra.mxu0 %v1628
        %v1630 = vpop.f32.mrf.mxu0
        %v1631 = vadd.f32 %v1601, %v1630
        %1632 = vdwg.mxu0
        %1633 = vmatpush.msra.mxu0 0.0
        %1634 = vmatpush.msra.mxu0 0.0
        %1635 = vmatpush.msra.mxu0 0.0
        %1636 = vmatpush.msra.mxu0 0.0
        %1637 = vmatpush.msra.mxu0 0.0
        %1638 = vmatpush.msra.mxu0 0.0
        %1639 = vmatpush.msra.mxu0 0.0
        %1640 = vmatpush.msra.mxu0 0.0
        %1641 = vmatpush.msra.mxu0 0.0
        %1642 = vmatpush.msra.mxu0 0.0
        %1643 = vmatpush.msra.mxu0 0.0
        %1644 = vmatpush.msra.mxu0 0.0
        %1645 = vmatpush.msra.mxu0 0.0
        %1646 = vmatpush.msra.mxu0 0.0
        %v1647 = vand.u32 %v578, 4294901760
        %v1648 = vsub.f32 %v578, %v1647
        %v1649 = vand.u32 %v1648, 4294901760
        %v1650 = vsub.f32 %v1648, %v1649
        %v1651 = vand.u32 %v1650, 4294901760
        %1652 = vmatpush.msra.mxu0 %v1651
        %v1653 = vand.u32 %v577, 4294901760
        %v1654 = vsub.f32 %v577, %v1653
        %v1655 = vand.u32 %v1654, 4294901760
        %v1656 = vsub.f32 %v1654, %v1655
        %v1657 = vand.u32 %v1656, 4294901760
        %1658 = vmatpush.msra.mxu0 %v1657
        %v1659 = vand.u32 %v1604, 4294901760
        %1660 = vmatmul.f32.gmra.mxu0 %v1659
        %v1661 = vpop.f32.mrf.mxu0
        %v1662 = vadd.f32 %v1631, %v1661
        %1663 = vdwg.mxu0
        %1664 = vmatpush.msra.mxu0 0.0
        %1665 = vmatpush.msra.mxu0 0.0
        %1666 = vmatpush.msra.mxu0 0.0
        %1667 = vmatpush.msra.mxu0 0.0
        %1668 = vmatpush.msra.mxu0 0.0
        %1669 = vmatpush.msra.mxu0 0.0
        %1670 = vmatpush.msra.mxu0 0.0
        %1671 = vmatpush.msra.mxu0 0.0
        %1672 = vmatpush.msra.mxu0 0.0
        %1673 = vmatpush.msra.mxu0 0.0
        %1674 = vmatpush.msra.mxu0 0.0
        %1675 = vmatpush.msra.mxu0 0.0
        %1676 = vmatpush.msra.mxu0 0.0
        %1677 = vmatpush.msra.mxu0 0.0
        %v1678 = vand.u32 %v578, 4294901760
        %v1679 = vsub.f32 %v578, %v1678
        %1680 = vmatpush.msra.mxu0 %v1679
        %v1681 = vand.u32 %v577, 4294901760
        %v1682 = vsub.f32 %v577, %v1681
        %1683 = vmatpush.msra.mxu0 %v1682
        %v1684 = vand.u32 %v1604, 4294901760
        %v1685 = vsub.f32 %v1604, %v1684
        %1686 = vmatmul.f32.gmra.mxu0 %v1685
        %v1687 = vpop.f32.mrf.mxu0
        %v1688 = vadd.f32 %v1662, %v1687
        %1689 = vdwg.mxu0
        %1690 = vmatpush.msra.mxu0 0.0
        %1691 = vmatpush.msra.mxu0 0.0
        %1692 = vmatpush.msra.mxu0 0.0
        %1693 = vmatpush.msra.mxu0 0.0
        %1694 = vmatpush.msra.mxu0 0.0
        %1695 = vmatpush.msra.mxu0 0.0
        %1696 = vmatpush.msra.mxu0 0.0
        %1697 = vmatpush.msra.mxu0 0.0
        %1698 = vmatpush.msra.mxu0 0.0
        %1699 = vmatpush.msra.mxu0 0.0
        %1700 = vmatpush.msra.mxu0 0.0
        %1701 = vmatpush.msra.mxu0 0.0
        %1702 = vmatpush.msra.mxu0 0.0
        %1703 = vmatpush.msra.mxu0 0.0
        %v1704 = vand.u32 %v578, 4294901760
        %1705 = vmatpush.msra.mxu0 %v1704
        %v1706 = vand.u32 %v577, 4294901760
        %1707 = vmatpush.msra.mxu0 %v1706
        %v1708 = vand.u32 %v1604, 4294901760
        %v1709 = vsub.f32 %v1604, %v1708
        %v1710 = vand.u32 %v1709, 4294901760
        %1711 = vmatmul.f32.gmra.mxu0 %v1710
        %v1712 = vpop.f32.mrf.mxu0
        %v1713 = vadd.f32 %v1688, %v1712
        %1714 = vdwg.mxu0
        %1715 = vmatpush.msra.mxu0 0.0
        %1716 = vmatpush.msra.mxu0 0.0
        %1717 = vmatpush.msra.mxu0 0.0
        %1718 = vmatpush.msra.mxu0 0.0
        %1719 = vmatpush.msra.mxu0 0.0
        %1720 = vmatpush.msra.mxu0 0.0
        %1721 = vmatpush.msra.mxu0 0.0
        %1722 = vmatpush.msra.mxu0 0.0
        %1723 = vmatpush.msra.mxu0 0.0
        %1724 = vmatpush.msra.mxu0 0.0
        %1725 = vmatpush.msra.mxu0 0.0
        %1726 = vmatpush.msra.mxu0 0.0
        %1727 = vmatpush.msra.mxu0 0.0
        %1728 = vmatpush.msra.mxu0 0.0
        %v1729 = vand.u32 %v578, 4294901760
        %v1730 = vsub.f32 %v578, %v1729
        %v1731 = vand.u32 %v1730, 4294901760
        %1732 = vmatpush.msra.mxu0 %v1731
        %v1733 = vand.u32 %v577, 4294901760
        %v1734 = vsub.f32 %v577, %v1733
        %v1735 = vand.u32 %v1734, 4294901760
        %1736 = vmatpush.msra.mxu0 %v1735
        %v1737 = vand.u32 %v1604, 4294901760
        %1738 = vmatmul.f32.gmra.mxu0 %v1737
        %v1739 = vpop.f32.mrf.mxu0
        %v1740 = vadd.f32 %v1713, %v1739
        %1741 = vdwg.mxu0
        %1742 = vmatpush.msra.mxu0 0.0
        %1743 = vmatpush.msra.mxu0 0.0
        %1744 = vmatpush.msra.mxu0 0.0
        %1745 = vmatpush.msra.mxu0 0.0
        %1746 = vmatpush.msra.mxu0 0.0
        %1747 = vmatpush.msra.mxu0 0.0
        %1748 = vmatpush.msra.mxu0 0.0
        %1749 = vmatpush.msra.mxu0 0.0
        %1750 = vmatpush.msra.mxu0 0.0
        %1751 = vmatpush.msra.mxu0 0.0
        %1752 = vmatpush.msra.mxu0 0.0
        %1753 = vmatpush.msra.mxu0 0.0
        %1754 = vmatpush.msra.mxu0 0.0
        %1755 = vmatpush.msra.mxu0 0.0
        %v1756 = vand.u32 %v578, 4294901760
        %1757 = vmatpush.msra.mxu0 %v1756
        %v1758 = vand.u32 %v577, 4294901760
        %1759 = vmatpush.msra.mxu0 %v1758
        %v1760 = vand.u32 %v1604, 4294901760
        %1761 = vmatmul.f32.gmra.mxu0 %v1760
        %v1762 = vpop.f32.mrf.mxu0
        %v1763 = vadd.f32 %v1740, %v1762
        %1764 = vdwg.mxu0
        %v1765 = vadd.f32 %v571, %v1763
        %v1767 = vperm.slane %v581, 0
        %v1769 = vadd.f32 %v1765, %v1767
        %v1770 = vld [vmem:[%s8] sm:$0x1]
        %v1771 = vld [vmem:[%s9] sm:$0x1]
        %v1772 = vsel %vm534, %v1769, 0.0
        %1773 = vadd.xlane.f32.xlu0 %v1772
        %v1774 = vpop.xlane.xlu0 %1773
        %v1775 = vmul.f32 %v1774, %v544
        %v1776 = vsub.f32 %v1769, %v1775
        %v1777 = vmul.f32 %v1776, %v1776
        %v1778 = vsel %vm534, %v1777, 0.0
        %1779 = vadd.xlane.f32.xlu0 %v1778
        %v1780 = vpop.xlane.xlu0 %1779
        %v1781 = vmul.f32 %v1780, %v544
        %v1782 = vadd.f32 %v1781, 1e-12
        %v1783 = vrsqrt.pop %v1782
        %v1784 = vmul.f32 %v1783, %v1782
        %v1785 = vmul.f32 %v1784, %v1783
        %v1786 = vmul.f32 0.5, %v1785
        %v1787 = vsub.f32 1.5, %v1786
        %v1788 = vmul.f32 %v1783, %v1787
        %vm1789 = vweird.f32 %v1782
        %vm1790 = vweird.f32 %v1783
        %vm1791 = vmor %vm1789, %vm1790
        %v1792 = vsel %vm1791, %v1783, %v1788
        %v1793 = vmul.f32 %v1776, %v1792
        %v1795 = vperm.slane %v1770, 0
        %v1797 = vmul.f32 %v1793, %v1795
        %v1799 = vperm.slane %v1771, 0
        %v1801 = vadd.f32 %v1797, %v1799
        %v1802 = vld [vmem:[%s10] sm:$0xff]
        %v1803 = vld [vmem:[%s10 + $0x8] sm:$0xff]
        %v1804 = vld [vmem:[%s10 + $0x10] sm:$0xff]
        %v1805 = vld [vmem:[%s10 + $0x18] sm:$0xff]
        %v1806 = vld [vmem:[%s11] sm:$0x1]
        %v1808 = vperm.slane %v1806, 0
        %v1811 = vsel %vm534, %v1801, 0
        %1813 = vmatpush.msra.mxu0 0.0
        %1814 = vmatpush.msra.mxu0 0.0
        %1815 = vmatpush.msra.mxu0 0.0
        %1816 = vmatpush.msra.mxu0 0.0
        %1817 = vmatpush.msra.mxu0 0.0
        %1818 = vmatpush.msra.mxu0 0.0
        %1819 = vmatpush.msra.mxu0 0.0
        %1820 = vmatpush.msra.mxu0 0.0
        %1821 = vmatpush.msra.mxu0 0.0
        %1822 = vmatpush.msra.mxu0 0.0
        %1823 = vmatpush.msra.mxu0 0.0
        %1824 = vmatpush.msra.mxu0 0.0
        %v1825 = vand.u32 %v1805, 4294901760
        %1826 = vmatpush.msra.mxu0 %v1825
        %v1827 = vand.u32 %v1804, 4294901760
        %1828 = vmatpush.msra.mxu0 %v1827
        %v1829 = vand.u32 %v1803, 4294901760
        %1830 = vmatpush.msra.mxu0 %v1829
        %v1831 = vand.u32 %v1802, 4294901760
        %1832 = vmatpush.msra.mxu0 %v1831
        %v1833 = vand.u32 %v1811, 4294901760
        %v1834 = vsub.f32 %v1811, %v1833
        %v1835 = vand.u32 %v1834, 4294901760
        %v1836 = vsub.f32 %v1834, %v1835
        %v1837 = vand.u32 %v1836, 4294901760
        %1838 = vmatmul.f32.gmra.mxu0 %v1837
        %v1839 = vpop.f32.mrf.mxu0
        %v1840 = vadd.f32 %v1808, %v1839
        %1841 = vdwg.mxu0
        %1842 = vmatpush.msra.mxu0 0.0
        %1843 = vmatpush.msra.mxu0 0.0
        %1844 = vmatpush.msra.mxu0 0.0
        %1845 = vmatpush.msra.mxu0 0.0
        %1846 = vmatpush.msra.mxu0 0.0
        %1847 = vmatpush.msra.mxu0 0.0
        %1848 = vmatpush.msra.mxu0 0.0
        %1849 = vmatpush.msra.mxu0 0.0
        %1850 = vmatpush.msra.mxu0 0.0
        %1851 = vmatpush.msra.mxu0 0.0
        %1852 = vmatpush.msra.mxu0 0.0
        %1853 = vmatpush.msra.mxu0 0.0
        %v1854 = vand.u32 %v1805, 4294901760
        %v1855 = vsub.f32 %v1805, %v1854
        %v1856 = vand.u32 %v1855, 4294901760
        %v1857 = vsub.f32 %v1855, %v1856
        %v1858 = vand.u32 %v1857, 4294901760
        %1859 = vmatpush.msra.mxu0 %v1858
        %v1860 = vand.u32 %v1804, 4294901760
        %v1861 = vsub.f32 %v1804, %v1860
        %v1862 = vand.u32 %v1861, 4294901760
        %v1863 = vsub.f32 %v1861, %v1862
        %v1864 = vand.u32 %v1863, 4294901760
        %1865 = vmatpush.msra.mxu0 %v1864
        %v1866 = vand.u32 %v1803, 4294901760
        %v1867 = vsub.f32 %v1803, %v1866
        %v1868 = vand.u32 %v1867, 4294901760
        %v1869 = vsub.f32 %v1867, %v1868
        %v1870 = vand.u32 %v1869, 4294901760
        %1871 = vmatpush.msra.mxu0 %v1870
        %v1872 = vand.u32 %v1802, 4294901760
        %v1873 = vsub.f32 %v1802, %v1872
        %v1874 = vand.u32 %v1873, 4294901760
        %v1875 = vsub.f32 %v1873, %v1874
        %v1876 = vand.u32 %v1875, 4294901760
        %1877 = vmatpush.msra.mxu0 %v1876
        %v1878 = vand.u32 %v1811, 4294901760
        %1879 = vmatmul.f32.gmra.mxu0 %v1878
        %v1880 = vpop.f32.mrf.mxu0
        %v1881 = vadd.f32 %v1840, %v1880
        %1882 = vdwg.mxu0
        %1883 = vmatpush.msra.mxu0 0.0
        %1884 = vmatpush.msra.mxu0 0.0
        %1885 = vmatpush.msra.mxu0 0.0
        %1886 = vmatpush.msra.mxu0 0.0
        %1887 = vmatpush.msra.mxu0 0.0
        %1888 = vmatpush.msra.mxu0 0.0
        %1889 = vmatpush.msra.mxu0 0.0
        %1890 = vmatpush.msra.mxu0 0.0
        %1891 = vmatpush.msra.mxu0 0.0
        %1892 = vmatpush.msra.mxu0 0.0
        %1893 = vmatpush.msra.mxu0 0.0
        %1894 = vmatpush.msra.mxu0 0.0
        %v1895 = vand.u32 %v1805, 4294901760
        %v1896 = vsub.f32 %v1805, %v1895
        %1897 = vmatpush.msra.mxu0 %v1896
        %v1898 = vand.u32 %v1804, 4294901760
        %v1899 = vsub.f32 %v1804, %v1898
        %1900 = vmatpush.msra.mxu0 %v1899
        %v1901 = vand.u32 %v1803, 4294901760
        %v1902 = vsub.f32 %v1803, %v1901
        %1903 = vmatpush.msra.mxu0 %v1902
        %v1904 = vand.u32 %v1802, 4294901760
        %v1905 = vsub.f32 %v1802, %v1904
        %1906 = vmatpush.msra.mxu0 %v1905
        %v1907 = vand.u32 %v1811, 4294901760
        %v1908 = vsub.f32 %v1811, %v1907
        %1909 = vmatmul.f32.gmra.mxu0 %v1908
        %v1910 = vpop.f32.mrf.mxu0
        %v1911 = vadd.f32 %v1881, %v1910
        %1912 = vdwg.mxu0
        %1913 = vmatpush.msra.mxu0 0.0
        %1914 = vmatpush.msra.mxu0 0.0
        %1915 = vmatpush.msra.mxu0 0.0
        %1916 = vmatpush.msra.mxu0 0.0
        %1917 = vmatpush.msra.mxu0 0.0
        %1918 = vmatpush.msra.mxu0 0.0
        %1919 = vmatpush.msra.mxu0 0.0
        %1920 = vmatpush.msra.mxu0 0.0
        %1921 = vmatpush.msra.mxu0 0.0
        %1922 = vmatpush.msra.mxu0 0.0
        %1923 = vmatpush.msra.mxu0 0.0
        %1924 = vmatpush.msra.mxu0 0.0
        %v1925 = vand.u32 %v1805, 4294901760
        %1926 = vmatpush.msra.mxu0 %v1925
        %v1927 = vand.u32 %v1804, 4294901760
        %1928 = vmatpush.msra.mxu0 %v1927
        %v1929 = vand.u32 %v1803, 4294901760
        %1930 = vmatpush.msra.mxu0 %v1929
        %v1931 = vand.u32 %v1802, 4294901760
        %1932 = vmatpush.msra.mxu0 %v1931
        %v1933 = vand.u32 %v1811, 4294901760
        %v1934 = vsub.f32 %v1811, %v1933
        %v1935 = vand.u32 %v1934, 4294901760
        %1936 = vmatmul.f32.gmra.mxu0 %v1935
        %v1937 = vpop.f32.mrf.mxu0
        %v1938 = vadd.f32 %v1911, %v1937
        %1939 = vdwg.mxu0
        %1940 = vmatpush.msra.mxu0 0.0
        %1941 = vmatpush.msra.mxu0 0.0
        %1942 = vmatpush.msra.mxu0 0.0
        %1943 = vmatpush.msra.mxu0 0.0
        %1944 = vmatpush.msra.mxu0 0.0
        %1945 = vmatpush.msra.mxu0 0.0
        %1946 = vmatpush.msra.mxu0 0.0
        %1947 = vmatpush.msra.mxu0 0.0
        %1948 = vmatpush.msra.mxu0 0.0
        %1949 = vmatpush.msra.mxu0 0.0
        %1950 = vmatpush.msra.mxu0 0.0
        %1951 = vmatpush.msra.mxu0 0.0
        %v1952 = vand.u32 %v1805, 4294901760
        %v1953 = vsub.f32 %v1805, %v1952
        %v1954 = vand.u32 %v1953, 4294901760
        %1955 = vmatpush.msra.mxu0 %v1954
        %v1956 = vand.u32 %v1804, 4294901760
        %v1957 = vsub.f32 %v1804, %v1956
        %v1958 = vand.u32 %v1957, 4294901760
        %1959 = vmatpush.msra.mxu0 %v1958
        %v1960 = vand.u32 %v1803, 4294901760
        %v1961 = vsub.f32 %v1803, %v1960
        %v1962 = vand.u32 %v1961, 4294901760
        %1963 = vmatpush.msra.mxu0 %v1962
        %v1964 = vand.u32 %v1802, 4294901760
        %v1965 = vsub.f32 %v1802, %v1964
        %v1966 = vand.u32 %v1965, 4294901760
        %1967 = vmatpush.msra.mxu0 %v1966
        %v1968 = vand.u32 %v1811, 4294901760
        %1969 = vmatmul.f32.gmra.mxu0 %v1968
        %v1970 = vpop.f32.mrf.mxu0
        %v1971 = vadd.f32 %v1938, %v1970
        %1972 = vdwg.mxu0
        %1973 = vmatpush.msra.mxu0 0.0
        %1974 = vmatpush.msra.mxu0 0.0
        %1975 = vmatpush.msra.mxu0 0.0
        %1976 = vmatpush.msra.mxu0 0.0
        %1977 = vmatpush.msra.mxu0 0.0
        %1978 = vmatpush.msra.mxu0 0.0
        %1979 = vmatpush.msra.mxu0 0.0
        %1980 = vmatpush.msra.mxu0 0.0
        %1981 = vmatpush.msra.mxu0 0.0
        %1982 = vmatpush.msra.mxu0 0.0
        %1983 = vmatpush.msra.mxu0 0.0
        %1984 = vmatpush.msra.mxu0 0.0
        %v1985 = vand.u32 %v1805, 4294901760
        %1986 = vmatpush.msra.mxu0 %v1985
        %v1987 = vand.u32 %v1804, 4294901760
        %1988 = vmatpush.msra.mxu0 %v1987
        %v1989 = vand.u32 %v1803, 4294901760
        %1990 = vmatpush.msra.mxu0 %v1989
        %v1991 = vand.u32 %v1802, 4294901760
        %1992 = vmatpush.msra.mxu0 %v1991
        %v1993 = vand.u32 %v1811, 4294901760
        %1994 = vmatmul.f32.gmra.mxu0 %v1993
        %v1995 = vpop.f32.mrf.mxu0
        %v1996 = vadd.f32 %v1971, %v1995
        %1997 = vdwg.mxu0
        %v1998 = vmul.f32 %v1996, %v1996
        %v1999 = vmul.f32 %v1996, %v1998
        %v2000 = vmul.f32 %v1999, 0.044715
        %v2001 = vadd.f32 %v1996, %v2000
        %v2002 = vmul.f32 %v2001, 0.7978846
        %v2003 = vtanh.pop %v2002
        %v2004 = vadd.f32 %v2003, 1.0
        %v2005 = vmul.f32 %v2004, 0.5
        %v2006 = vmul.f32 %v1996, %v2005
        %v2007 = vld [vmem:[%s12] sm:$0xff]
        %v2008 = vld [vmem:[%s12 + $0x8] sm:$0xff]
        %v2009 = vld [vmem:[%s12 + $0x10] sm:$0xff]
        %v2010 = vld [vmem:[%s12 + $0x18] sm:$0xff]
        %v2011 = vld [vmem:[%s12 + $0x20] sm:$0xff]
        %v2012 = vld [vmem:[%s12 + $0x28] sm:$0xff]
        %v2013 = vld [vmem:[%s12 + $0x30] sm:$0xff]
        %v2014 = vld [vmem:[%s12 + $0x38] sm:$0xff]
        %v2015 = vld [vmem:[%s12 + $0x40] sm:$0xff]
        %v2016 = vld [vmem:[%s12 + $0x48] sm:$0xff]
        %v2017 = vld [vmem:[%s12 + $0x50] sm:$0xff]
        %v2018 = vld [vmem:[%s12 + $0x58] sm:$0xff]
        %v2019 = vld [vmem:[%s12 + $0x60] sm:$0xff]
        %v2020 = vld [vmem:[%s12 + $0x68] sm:$0xff]
        %v2021 = vld [vmem:[%s12 + $0x70] sm:$0xff]
        %v2022 = vld [vmem:[%s12 + $0x78] sm:$0xff]
        %v2023 = vld [vmem:[%s13] sm:$0x1]
        %v2025 = vperm.slane %v2023, 0
        %v2027 = vand.u32 %v2022, 4294901760
        %2028 = vmatpush.msra.mxu0 %v2027
        %v2029 = vand.u32 %v2021, 4294901760
        %2030 = vmatpush.msra.mxu0 %v2029
        %v2031 = vand.u32 %v2020, 4294901760
        %2032 = vmatpush.msra.mxu0 %v2031
        %v2033 = vand.u32 %v2019, 4294901760
        %2034 = vmatpush.msra.mxu0 %v2033
        %v2035 = vand.u32 %v2018, 4294901760
        %2036 = vmatpush.msra.mxu0 %v2035
        %v2037 = vand.u32 %v2017, 4294901760
        %2038 = vmatpush.msra.mxu0 %v2037
        %v2039 = vand.u32 %v2016, 4294901760
        %2040 = vmatpush.msra.mxu0 %v2039
        %v2041 = vand.u32 %v2015, 4294901760
        %2042 = vmatpush.msra.mxu0 %v2041
        %v2043 = vand.u32 %v2014, 4294901760
        %2044 = vmatpush.msra.mxu0 %v2043
        %v2045 = vand.u32 %v2013, 4294901760
        %2046 = vmatpush.msra.mxu0 %v2045
        %v2047 = vand.u32 %v2012, 4294901760
        %2048 = vmatpush.msra.mxu0 %v2047
        %v2049 = vand.u32 %v2011, 4294901760
        %2050 = vmatpush.msra.mxu0 %v2049
        %v2051 = vand.u32 %v2010, 4294901760
        %2052 = vmatpush.msra.mxu0 %v2051
        %v2053 = vand.u32 %v2009, 4294901760
        %2054 = vmatpush.msra.mxu0 %v2053
        %v2055 = vand.u32 %v2008, 4294901760
        %2056 = vmatpush.msra.mxu0 %v2055
        %v2057 = vand.u32 %v2007, 4294901760
        %2058 = vmatpush.msra.mxu0 %v2057
        %v2059 = vand.u32 %v2006, 4294901760
        %v2060 = vsub.f32 %v2006, %v2059
        %v2061 = vand.u32 %v2060, 4294901760
        %v2062 = vsub.f32 %v2060, %v2061
        %v2063 = vand.u32 %v2062, 4294901760
        %2064 = vmatmul.f32.gmra.mxu0 %v2063
        %v2065 = vpop.f32.mrf.mxu0
        %v2066 = vadd.f32 %v2025, %v2065
        %2067 = vdwg.mxu0
        %v2068 = vand.u32 %v2022, 4294901760
        %v2069 = vsub.f32 %v2022, %v2068
        %v2070 = vand.u32 %v2069, 4294901760
        %v2071 = vsub.f32 %v2069, %v2070
        %v2072 = vand.u32 %v2071, 4294901760
        %2073 = vmatpush.msra.mxu0 %v2072
        %v2074 = vand.u32 %v2021, 4294901760
        %v2075 = vsub.f32 %v2021, %v2074
        %v2076 = vand.u32 %v2075, 4294901760
        %v2077 = vsub.f32 %v2075, %v2076
        %v2078 = vand.u32 %v2077, 4294901760
        %2079 = vmatpush.msra.mxu0 %v2078
        %v2080 = vand.u32 %v2020, 4294901760
        %v2081 = vsub.f32 %v2020, %v2080
        %v2082 = vand.u32 %v2081, 4294901760
        %v2083 = vsub.f32 %v2081, %v2082
        %v2084 = vand.u32 %v2083, 4294901760
        %2085 = vmatpush.msra.mxu0 %v2084
        %v2086 = vand.u32 %v2019, 4294901760
        %v2087 = vsub.f32 %v2019, %v2086
        %v2088 = vand.u32 %v2087, 4294901760
        %v2089 = vsub.f32 %v2087, %v2088
        %v2090 = vand.u32 %v2089, 4294901760
        %2091 = vmatpush.msra.mxu0 %v2090
        %v2092 = vand.u32 %v2018, 4294901760
        %v2093 = vsub.f32 %v2018, %v2092
        %v2094 = vand.u32 %v2093, 4294901760
        %v2095 = vsub.f32 %v2093, %v2094
        %v2096 = vand.u32 %v2095, 4294901760
        %2097 = vmatpush.msra.mxu0 %v2096
        %v2098 = vand.u32 %v2017, 4294901760
        %v2099 = vsub.f32 %v2017, %v2098
        %v2100 = vand.u32 %v2099, 4294901760
        %v2101 = vsub.f32 %v2099, %v2100
        %v2102 = vand.u32 %v2101, 4294901760
        %2103 = vmatpush.msra.mxu0 %v2102
        %v2104 = vand.u32 %v2016, 4294901760
        %v2105 = vsub.f32 %v2016, %v2104
        %v2106 = vand.u32 %v2105, 4294901760
        %v2107 = vsub.f32 %v2105, %v2106
        %v2108 = vand.u32 %v2107, 4294901760
        %2109 = vmatpush.msra.mxu0 %v2108
        %v2110 = vand.u32 %v2015, 4294901760
        %v2111 = vsub.f32 %v2015, %v2110
        %v2112 = vand.u32 %v2111, 4294901760
        %v2113 = vsub.f32 %v2111, %v2112
        %v2114 = vand.u32 %v2113, 4294901760
        %2115 = vmatpush.msra.mxu0 %v2114
        %v2116 = vand.u32 %v2014, 4294901760
        %v2117 = vsub.f32 %v2014, %v2116
        %v2118 = vand.u32 %v2117, 4294901760
        %v2119 = vsub.f32 %v2117, %v2118
        %v2120 = vand.u32 %v2119, 4294901760
        %2121 = vmatpush.msra.mxu0 %v2120
        %v2122 = vand.u32 %v2013, 4294901760
        %v2123 = vsub.f32 %v2013, %v2122
        %v2124 = vand.u32 %v2123, 4294901760
        %v2125 = vsub.f32 %v2123, %v2124
        %v2126 = vand.u32 %v2125, 4294901760
        %2127 = vmatpush.msra.mxu0 %v2126
        %v2128 = vand.u32 %v2012, 4294901760
        %v2129 = vsub.f32 %v2012, %v2128
        %v2130 = vand.u32 %v2129, 4294901760
        %v2131 = vsub.f32 %v2129, %v2130
        %v2132 = vand.u32 %v2131, 4294901760
        %2133 = vmatpush.msra.mxu0 %v2132
        %v2134 = vand.u32 %v2011, 4294901760
        %v2135 = vsub.f32 %v2011, %v2134
        %v2136 = vand.u32 %v2135, 4294901760
        %v2137 = vsub.f32 %v2135, %v2136
        %v2138 = vand.u32 %v2137, 4294901760
        %2139 = vmatpush.msra.mxu0 %v2138
        %v2140 = vand.u32 %v2010, 4294901760
        %v2141 = vsub.f32 %v2010, %v2140
        %v2142 = vand.u32 %v2141, 4294901760
        %v2143 = vsub.f32 %v2141, %v2142
        %v2144 = vand.u32 %v2143, 4294901760
        %2145 = vmatpush.msra.mxu0 %v2144
        %v2146 = vand.u32 %v2009, 4294901760
        %v2147 = vsub.f32 %v2009, %v2146
        %v2148 = vand.u32 %v2147, 4294901760
        %v2149 = vsub.f32 %v2147, %v2148
        %v2150 = vand.u32 %v2149, 4294901760
        %2151 = vmatpush.msra.mxu0 %v2150
        %v2152 = vand.u32 %v2008, 4294901760
        %v2153 = vsub.f32 %v2008, %v2152
        %v2154 = vand.u32 %v2153, 4294901760
        %v2155 = vsub.f32 %v2153, %v2154
        %v2156 = vand.u32 %v2155, 4294901760
        %2157 = vmatpush.msra.mxu0 %v2156
        %v2158 = vand.u32 %v2007, 4294901760
        %v2159 = vsub.f32 %v2007, %v2158
        %v2160 = vand.u32 %v2159, 4294901760
        %v2161 = vsub.f32 %v2159, %v2160
        %v2162 = vand.u32 %v2161, 4294901760
        %2163 = vmatpush.msra.mxu0 %v2162
        %v2164 = vand.u32 %v2006, 4294901760
        %2165 = vmatmul.f32.gmra.mxu0 %v2164
        %v2166 = vpop.f32.mrf.mxu0
        %v2167 = vadd.f32 %v2066, %v2166
        %2168 = vdwg.mxu0
        %v2169 = vand.u32 %v2022, 4294901760
        %v2170 = vsub.f32 %v2022, %v2169
        %2171 = vmatpush.msra.mxu0 %v2170
        %v2172 = vand.u32 %v2021, 4294901760
        %v2173 = vsub.f32 %v2021, %v2172
        %2174 = vmatpush.msra.mxu0 %v2173
        %v2175 = vand.u32 %v2020, 4294901760
        %v2176 = vsub.f32 %v2020, %v2175
        %2177 = vmatpush.msra.mxu0 %v2176
        %v2178 = vand.u32 %v2019, 4294901760
        %v2179 = vsub.f32 %v2019, %v2178
        %2180 = vmatpush.msra.mxu0 %v2179
        %v2181 = vand.u32 %v2018, 4294901760
        %v2182 = vsub.f32 %v2018, %v2181
        %2183 = vmatpush.msra.mxu0 %v2182
        %v2184 = vand.u32 %v2017, 4294901760
        %v2185 = vsub.f32 %v2017, %v2184
        %2186 = vmatpush.msra.mxu0 %v2185
        %v2187 = vand.u32 %v2016, 4294901760
        %v2188 = vsub.f32 %v2016, %v2187
        %2189 = vmatpush.msra.mxu0 %v2188
        %v2190 = vand.u32 %v2015, 4294901760
        %v2191 = vsub.f32 %v2015, %v2190
        %2192 = vmatpush.msra.mxu0 %v2191
        %v2193 = vand.u32 %v2014, 4294901760
        %v2194 = vsub.f32 %v2014, %v2193
        %2195 = vmatpush.msra.mxu0 %v2194
        %v2196 = vand.u32 %v2013, 4294901760
        %v2197 = vsub.f32 %v2013, %v2196
        %2198 = vmatpush.msra.mxu0 %v2197
        %v2199 = vand.u32 %v2012, 4294901760
        %v2200 = vsub.f32 %v2012, %v2199
        %2201 = vmatpush.msra.mxu0 %v2200
        %v2202 = vand.u32 %v2011, 4294901760
        %v2203 = vsub.f32 %v2011, %v2202
        %2204 = vmatpush.msra.mxu0 %v2203
        %v2205 = vand.u32 %v2010, 4294901760
        %v2206 = vsub.f32 %v2010, %v2205
        %2207 = vmatpush.msra.mxu0 %v2206
        %v2208 = vand.u32 %v2009, 4294901760
        %v2209 = vsub.f32 %v2009, %v2208
        %2210 = vmatpush.msra.mxu0 %v2209
        %v2211 = vand.u32 %v2008, 4294901760
        %v2212 = vsub.f32 %v2008, %v2211
        %2213 = vmatpush.msra.mxu0 %v2212
        %v2214 = vand.u32 %v2007, 4294901760
        %v2215 = vsub.f32 %v2007, %v2214
        %2216 = vmatpush.msra.mxu0 %v2215
        %v2217 = vand.u32 %v2006, 4294901760
        %v2218 = vsub.f32 %v2006, %v2217
        %2219 = vmatmul.f32.gmra.mxu0 %v2218
        %v2220 = vpop.f32.mrf.mxu0
        %v2221 = vadd.f32 %v2167, %v2220
        %2222 = vdwg.mxu0
        %v2223 = vand.u32 %v2022, 4294901760
        %2224 = vmatpush.msra.mxu0 %v2223
        %v2225 = vand.u32 %v2021, 4294901760
        %2226 = vmatpush.msra.mxu0 %v2225
        %v2227 = vand.u32 %v2020, 4294901760
        %2228 = vmatpush.msra.mxu0 %v2227
        %v2229 = vand.u32 %v2019, 4294901760
        %2230 = vmatpush.msra.mxu0 %v2229
        %v2231 = vand.u32 %v2018, 4294901760
        %2232 = vmatpush.msra.mxu0 %v2231
        %v2233 = vand.u32 %v2017, 4294901760
        %2234 = vmatpush.msra.mxu0 %v2233
        %v2235 = vand.u32 %v2016, 4294901760
        %2236 = vmatpush.msra.mxu0 %v2235
        %v2237 = vand.u32 %v2015, 4294901760
        %2238 = vmatpush.msra.mxu0 %v2237
        %v2239 = vand.u32 %v2014, 4294901760
        %2240 = vmatpush.msra.mxu0 %v2239
        %v2241 = vand.u32 %v2013, 4294901760
        %2242 = vmatpush.msra.mxu0 %v2241
        %v2243 = vand.u32 %v2012, 4294901760
        %2244 = vmatpush.msra.mxu0 %v2243
        %v2245 = vand.u32 %v2011, 4294901760
        %2246 = vmatpush.msra.mxu0 %v2245
        %v2247 = vand.u32 %v2010, 4294901760
        %2248 = vmatpush.msra.mxu0 %v2247
        %v2249 = vand.u32 %v2009, 4294901760
        %2250 = vmatpush.msra.mxu0 %v2249
        %v2251 = vand.u32 %v2008, 4294901760
        %2252 = vmatpush.msra.mxu0 %v2251
        %v2253 = vand.u32 %v2007, 4294901760
        %2254 = vmatpush.msra.mxu0 %v2253
        %v2255 = vand.u32 %v2006, 4294901760
        %v2256 = vsub.f32 %v2006, %v2255
        %v2257 = vand.u32 %v2256, 4294901760
        %2258 = vmatmul.f32.gmra.mxu0 %v2257
        %v2259 = vpop.f32.mrf.mxu0
        %v2260 = vadd.f32 %v2221, %v2259
        %2261 = vdwg.mxu0
        %v2262 = vand.u32 %v2022, 4294901760
        %v2263 = vsub.f32 %v2022, %v2262
        %v2264 = vand.u32 %v2263, 4294901760
        %2265 = vmatpush.msra.mxu0 %v2264
        %v2266 = vand.u32 %v2021, 4294901760
        %v2267 = vsub.f32 %v2021, %v2266
        %v2268 = vand.u32 %v2267, 4294901760
        %2269 = vmatpush.msra.mxu0 %v2268
        %v2270 = vand.u32 %v2020, 4294901760
        %v2271 = vsub.f32 %v2020, %v2270
        %v2272 = vand.u32 %v2271, 4294901760
        %2273 = vmatpush.msra.mxu0 %v2272
        %v2274 = vand.u32 %v2019, 4294901760
        %v2275 = vsub.f32 %v2019, %v2274
        %v2276 = vand.u32 %v2275, 4294901760
        %2277 = vmatpush.msra.mxu0 %v2276
        %v2278 = vand.u32 %v2018, 4294901760
        %v2279 = vsub.f32 %v2018, %v2278
        %v2280 = vand.u32 %v2279, 4294901760
        %2281 = vmatpush.msra.mxu0 %v2280
        %v2282 = vand.u32 %v2017, 4294901760
        %v2283 = vsub.f32 %v2017, %v2282
        %v2284 = vand.u32 %v2283, 4294901760
        %2285 = vmatpush.msra.mxu0 %v2284
        %v2286 = vand.u32 %v2016, 4294901760
        %v2287 = vsub.f32 %v2016, %v2286
        %v2288 = vand.u32 %v2287, 4294901760
        %2289 = vmatpush.msra.mxu0 %v2288
        %v2290 = vand.u32 %v2015, 4294901760
        %v2291 = vsub.f32 %v2015, %v2290
        %v2292 = vand.u32 %v2291, 4294901760
        %2293 = vmatpush.msra.mxu0 %v2292
        %v2294 = vand.u32 %v2014, 4294901760
        %v2295 = vsub.f32 %v2014, %v2294
        %v2296 = vand.u32 %v2295, 4294901760
        %2297 = vmatpush.msra.mxu0 %v2296
        %v2298 = vand.u32 %v2013, 4294901760
        %v2299 = vsub.f32 %v2013, %v2298
        %v2300 = vand.u32 %v2299, 4294901760
        %2301 = vmatpush.msra.mxu0 %v2300
        %v2302 = vand.u32 %v2012, 4294901760
        %v2303 = vsub.f32 %v2012, %v2302
        %v2304 = vand.u32 %v2303, 4294901760
        %2305 = vmatpush.msra.mxu0 %v2304
        %v2306 = vand.u32 %v2011, 4294901760
        %v2307 = vsub.f32 %v2011, %v2306
        %v2308 = vand.u32 %v2307, 4294901760
        %2309 = vmatpush.msra.mxu0 %v2308
        %v2310 = vand.u32 %v2010, 4294901760
        %v2311 = vsub.f32 %v2010, %v2310
        %v2312 = vand.u32 %v2311, 4294901760
        %2313 = vmatpush.msra.mxu0 %v2312
        %v2314 = vand.u32 %v2009, 4294901760
        %v2315 = vsub.f32 %v2009, %v2314
        %v2316 = vand.u32 %v2315, 4294901760
        %2317 = vmatpush.msra.mxu0 %v2316
        %v2318 = vand.u32 %v2008, 4294901760
        %v2319 = vsub.f32 %v2008, %v2318
        %v2320 = vand.u32 %v2319, 4294901760
        %2321 = vmatpush.msra.mxu0 %v2320
        %v2322 = vand.u32 %v2007, 4294901760
        %v2323 = vsub.f32 %v2007, %v2322
        %v2324 = vand.u32 %v2323, 4294901760
        %2325 = vmatpush.msra.mxu0 %v2324
        %v2326 = vand.u32 %v2006, 4294901760
        %2327 = vmatmul.f32.gmra.mxu0 %v2326
        %v2328 = vpop.f32.mrf.mxu0
        %v2329 = vadd.f32 %v2260, %v2328
        %2330 = vdwg.mxu0
        %v2331 = vand.u32 %v2022, 4294901760
        %2332 = vmatpush.msra.mxu0 %v2331
        %v2333 = vand.u32 %v2021, 4294901760
        %2334 = vmatpush.msra.mxu0 %v2333
        %v2335 = vand.u32 %v2020, 4294901760
        %2336 = vmatpush.msra.mxu0 %v2335
        %v2337 = vand.u32 %v2019, 4294901760
        %2338 = vmatpush.msra.mxu0 %v2337
        %v2339 = vand.u32 %v2018, 4294901760
        %2340 = vmatpush.msra.mxu0 %v2339
        %v2341 = vand.u32 %v2017, 4294901760
        %2342 = vmatpush.msra.mxu0 %v2341
        %v2343 = vand.u32 %v2016, 4294901760
        %2344 = vmatpush.msra.mxu0 %v2343
        %v2345 = vand.u32 %v2015, 4294901760
        %2346 = vmatpush.msra.mxu0 %v2345
        %v2347 = vand.u32 %v2014, 4294901760
        %2348 = vmatpush.msra.mxu0 %v2347
        %v2349 = vand.u32 %v2013, 4294901760
        %2350 = vmatpush.msra.mxu0 %v2349
        %v2351 = vand.u32 %v2012, 4294901760
        %2352 = vmatpush.msra.mxu0 %v2351
        %v2353 = vand.u32 %v2011, 4294901760
        %2354 = vmatpush.msra.mxu0 %v2353
        %v2355 = vand.u32 %v2010, 4294901760
        %2356 = vmatpush.msra.mxu0 %v2355
        %v2357 = vand.u32 %v2009, 4294901760
        %2358 = vmatpush.msra.mxu0 %v2357
        %v2359 = vand.u32 %v2008, 4294901760
        %2360 = vmatpush.msra.mxu0 %v2359
        %v2361 = vand.u32 %v2007, 4294901760
        %2362 = vmatpush.msra.mxu0 %v2361
        %v2363 = vand.u32 %v2006, 4294901760
        %2364 = vmatmul.f32.gmra.mxu0 %v2363
        %v2365 = vpop.f32.mrf.mxu0
        %v2366 = vadd.f32 %v2329, %v2365
        %2367 = vdwg.mxu0
        %v2368 = vadd.f32 %v1801, %v2366
        %v2369 = vld [vmem:[%s14] sm:$0x1]
        %v2370 = vld [vmem:[%s15] sm:$0x1]
        %v2371 = vsel %vm534, %v2368, 0.0
        %2372 = vadd.xlane.f32.xlu0 %v2371
        %v2373 = vpop.xlane.xlu0 %2372
        %v2374 = vmul.f32 %v2373, %v544
        %v2375 = vsub.f32 %v2368, %v2374
        %v2376 = vmul.f32 %v2375, %v2375
        %v2377 = vsel %vm534, %v2376, 0.0
        %2378 = vadd.xlane.f32.xlu0 %v2377
        %v2379 = vpop.xlane.xlu0 %2378
        %v2380 = vmul.f32 %v2379, %v544
        %v2381 = vadd.f32 %v2380, 1e-12
        %v2382 = vrsqrt.pop %v2381
        %v2383 = vmul.f32 %v2382, %v2381
        %v2384 = vmul.f32 %v2383, %v2382
        %v2385 = vmul.f32 0.5, %v2384
        %v2386 = vsub.f32 1.5, %v2385
        %v2387 = vmul.f32 %v2382, %v2386
        %vm2388 = vweird.f32 %v2381
        %vm2389 = vweird.f32 %v2382
        %vm2390 = vmor %vm2388, %vm2389
        %v2391 = vsel %vm2390, %v2382, %v2387
        %v2392 = vmul.f32 %v2375, %v2391
        %v2394 = vperm.slane %v2369, 0
        %v2396 = vmul.f32 %v2392, %v2394
        %v2398 = vperm.slane %v2370, 0
        %v2400 = vadd.f32 %v2396, %v2398
        %s2401 = scalar_lea.vmem %s4, 32
        %v2402 = vld [vmem:[%s2401] sm:$0xff]
        %v2403 = vld [vmem:[%s2401 + $0x8] sm:$0xff]
        %v2404 = vld [vmem:[%s2401 + $0x10] sm:$0xff]
        %v2405 = vld [vmem:[%s2401 + $0x18] sm:$0xff]
        %s2406 = scalar_lea.vmem %s5, 1
        %v2407 = vld [vmem:[%s2406] sm:$0x1]
        %s2408 = scalar_lea.vmem %s6, 32
        %v2409 = vld [vmem:[%s2408] sm:$0xff]
        %v2410 = vld [vmem:[%s2408 + $0x8] sm:$0xff]
        %v2411 = vld [vmem:[%s2408 + $0x10] sm:$0xff]
        %v2412 = vld [vmem:[%s2408 + $0x18] sm:$0xff]
        %s2413 = scalar_lea.vmem %s7, 1
        %v2414 = vld [vmem:[%s2413] sm:$0x1]
        %v2416 = vperm.slane %v2407, 0
        %v2419 = vsel %vm534, %v2400, 0
        %2421 = vmatpush.msra.mxu0 0.0
        %2422 = vmatpush.msra.mxu0 0.0
        %2423 = vmatpush.msra.mxu0 0.0
        %2424 = vmatpush.msra.mxu0 0.0
        %2425 = vmatpush.msra.mxu0 0.0
        %2426 = vmatpush.msra.mxu0 0.0
        %2427 = vmatpush.msra.mxu0 0.0
        %2428 = vmatpush.msra.mxu0 0.0
        %2429 = vmatpush.msra.mxu0 0.0
        %2430 = vmatpush.msra.mxu0 0.0
        %2431 = vmatpush.msra.mxu0 0.0
        %2432 = vmatpush.msra.mxu0 0.0
        %v2433 = vand.u32 %v2405, 4294901760
        %2434 = vmatpush.msra.mxu0 %v2433
        %v2435 = vand.u32 %v2404, 4294901760
        %2436 = vmatpush.msra.mxu0 %v2435
        %v2437 = vand.u32 %v2403, 4294901760
        %2438 = vmatpush.msra.mxu0 %v2437
        %v2439 = vand.u32 %v2402, 4294901760
        %2440 = vmatpush.msra.mxu0 %v2439
        %v2441 = vand.u32 %v2419, 4294901760
        %v2442 = vsub.f32 %v2419, %v2441
        %v2443 = vand.u32 %v2442, 4294901760
        %v2444 = vsub.f32 %v2442, %v2443
        %v2445 = vand.u32 %v2444, 4294901760
        %2446 = vmatmul.f32.gmra.mxu0 %v2445
        %v2447 = vpop.f32.mrf.mxu0
        %v2448 = vadd.f32 %v2416, %v2447
        %2449 = vdwg.mxu0
        %2450 = vmatpush.msra.mxu0 0.0
        %2451 = vmatpush.msra.mxu0 0.0
        %2452 = vmatpush.msra.mxu0 0.0
        %2453 = vmatpush.msra.mxu0 0.0
        %2454 = vmatpush.msra.mxu0 0.0
        %2455 = vmatpush.msra.mxu0 0.0
        %2456 = vmatpush.msra.mxu0 0.0
        %2457 = vmatpush.msra.mxu0 0.0
        %2458 = vmatpush.msra.mxu0 0.0
        %2459 = vmatpush.msra.mxu0 0.0
        %2460 = vmatpush.msra.mxu0 0.0
        %2461 = vmatpush.msra.mxu0 0.0
        %v2462 = vand.u32 %v2405, 4294901760
        %v2463 = vsub.f32 %v2405, %v2462
        %v2464 = vand.u32 %v2463, 4294901760
        %v2465 = vsub.f32 %v2463, %v2464
        %v2466 = vand.u32 %v2465, 4294901760
        %2467 = vmatpush.msra.mxu0 %v2466
        %v2468 = vand.u32 %v2404, 4294901760
        %v2469 = vsub.f32 %v2404, %v2468
        %v2470 = vand.u32 %v2469, 4294901760
        %v2471 = vsub.f32 %v2469, %v2470
        %v2472 = vand.u32 %v2471, 4294901760
        %2473 = vmatpush.msra.mxu0 %v2472
        %v2474 = vand.u32 %v2403, 4294901760
        %v2475 = vsub.f32 %v2403, %v2474
        %v2476 = vand.u32 %v2475, 4294901760
        %v2477 = vsub.f32 %v2475, %v2476
        %v2478 = vand.u32 %v2477, 4294901760
        %2479 = vmatpush.msra.mxu0 %v2478
        %v2480 = vand.u32 %v2402, 4294901760
        %v2481 = vsub.f32 %v2402, %v2480
        %v2482 = vand.u32 %v2481, 4294901760
        %v2483 = vsub.f32 %v2481, %v2482
        %v2484 = vand.u32 %v2483, 4294901760
        %2485 = vmatpush.msra.mxu0 %v2484
        %v2486 = vand.u32 %v2419, 4294901760
        %2487 = vmatmul.f32.gmra.mxu0 %v2486
        %v2488 = vpop.f32.mrf.mxu0
        %v2489 = vadd.f32 %v2448, %v2488
        %2490 = vdwg.mxu0
        %2491 = vmatpush.msra.mxu0 0.0
        %2492 = vmatpush.msra.mxu0 0.0
        %2493 = vmatpush.msra.mxu0 0.0
        %2494 = vmatpush.msra.mxu0 0.0
        %2495 = vmatpush.msra.mxu0 0.0
        %2496 = vmatpush.msra.mxu0 0.0
        %2497 = vmatpush.msra.mxu0 0.0
        %2498 = vmatpush.msra.mxu0 0.0
        %2499 = vmatpush.msra.mxu0 0.0
        %2500 = vmatpush.msra.mxu0 0.0
        %2501 = vmatpush.msra.mxu0 0.0
        %2502 = vmatpush.msra.mxu0 0.0
        %v2503 = vand.u32 %v2405, 4294901760
        %v2504 = vsub.f32 %v2405, %v2503
        %2505 = vmatpush.msra.mxu0 %v2504
        %v2506 = vand.u32 %v2404, 4294901760
        %v2507 = vsub.f32 %v2404, %v2506
        %2508 = vmatpush.msra.mxu0 %v2507
        %v2509 = vand.u32 %v2403, 4294901760
        %v2510 = vsub.f32 %v2403, %v2509
        %2511 = vmatpush.msra.mxu0 %v2510
        %v2512 = vand.u32 %v2402, 4294901760
        %v2513 = vsub.f32 %v2402, %v2512
        %2514 = vmatpush.msra.mxu0 %v2513
        %v2515 = vand.u32 %v2419, 4294901760
        %v2516 = vsub.f32 %v2419, %v2515
        %2517 = vmatmul.f32.gmra.mxu0 %v2516
        %v2518 = vpop.f32.mrf.mxu0
        %v2519 = vadd.f32 %v2489, %v2518
        %2520 = vdwg.mxu0
        %2521 = vmatpush.msra.mxu0 0.0
        %2522 = vmatpush.msra.mxu0 0.0
        %2523 = vmatpush.msra.mxu0 0.0
        %2524 = vmatpush.msra.mxu0 0.0
        %2525 = vmatpush.msra.mxu0 0.0
        %2526 = vmatpush.msra.mxu0 0.0
        %2527 = vmatpush.msra.mxu0 0.0
        %2528 = vmatpush.msra.mxu0 0.0
        %2529 = vmatpush.msra.mxu0 0.0
        %2530 = vmatpush.msra.mxu0 0.0
        %2531 = vmatpush.msra.mxu0 0.0
        %2532 = vmatpush.msra.mxu0 0.0
        %v2533 = vand.u32 %v2405, 4294901760
        %2534 = vmatpush.msra.mxu0 %v2533
        %v2535 = vand.u32 %v2404, 4294901760
        %2536 = vmatpush.msra.mxu0 %v2535
        %v2537 = vand.u32 %v2403, 4294901760
        %2538 = vmatpush.msra.mxu0 %v2537
        %v2539 = vand.u32 %v2402, 4294901760
        %2540 = vmatpush.msra.mxu0 %v2539
        %v2541 = vand.u32 %v2419, 4294901760
        %v2542 = vsub.f32 %v2419, %v2541
        %v2543 = vand.u32 %v2542, 4294901760
        %2544 = vmatmul.f32.gmra.mxu0 %v2543
        %v2545 = vpop.f32.mrf.mxu0
        %v2546 = vadd.f32 %v2519, %v2545
        %2547 = vdwg.mxu0
        %2548 = vmatpush.msra.mxu0 0.0
        %2549 = vmatpush.msra.mxu0 0.0
        %2550 = vmatpush.msra.mxu0 0.0
        %2551 = vmatpush.msra.mxu0 0.0
        %2552 = vmatpush.msra.mxu0 0.0
        %2553 = vmatpush.msra.mxu0 0.0
        %2554 = vmatpush.msra.mxu0 0.0
        %2555 = vmatpush.msra.mxu0 0.0
        %2556 = vmatpush.msra.mxu0 0.0
        %2557 = vmatpush.msra.mxu0 0.0
        %2558 = vmatpush.msra.mxu0 0.0
        %2559 = vmatpush.msra.mxu0 0.0
        %v2560 = vand.u32 %v2405, 4294901760
        %v2561 = vsub.f32 %v2405, %v2560
        %v2562 = vand.u32 %v2561, 4294901760
        %2563 = vmatpush.msra.mxu0 %v2562
        %v2564 = vand.u32 %v2404, 4294901760
        %v2565 = vsub.f32 %v2404, %v2564
        %v2566 = vand.u32 %v2565, 4294901760
        %2567 = vmatpush.msra.mxu0 %v2566
        %v2568 = vand.u32 %v2403, 4294901760
        %v2569 = vsub.f32 %v2403, %v2568
        %v2570 = vand.u32 %v2569, 4294901760
        %2571 = vmatpush.msra.mxu0 %v2570
        %v2572 = vand.u32 %v2402, 4294901760
        %v2573 = vsub.f32 %v2402, %v2572
        %v2574 = vand.u32 %v2573, 4294901760
        %2575 = vmatpush.msra.mxu0 %v2574
        %v2576 = vand.u32 %v2419, 4294901760
        %2577 = vmatmul.f32.gmra.mxu0 %v2576
        %v2578 = vpop.f32.mrf.mxu0
        %v2579 = vadd.f32 %v2546, %v2578
        %2580 = vdwg.mxu0
        %2581 = vmatpush.msra.mxu0 0.0
        %2582 = vmatpush.msra.mxu0 0.0
        %2583 = vmatpush.msra.mxu0 0.0
        %2584 = vmatpush.msra.mxu0 0.0
        %2585 = vmatpush.msra.mxu0 0.0
        %2586 = vmatpush.msra.mxu0 0.0
        %2587 = vmatpush.msra.mxu0 0.0
        %2588 = vmatpush.msra.mxu0 0.0
        %2589 = vmatpush.msra.mxu0 0.0
        %2590 = vmatpush.msra.mxu0 0.0
        %2591 = vmatpush.msra.mxu0 0.0
        %2592 = vmatpush.msra.mxu0 0.0
        %v2593 = vand.u32 %v2405, 4294901760
        %2594 = vmatpush.msra.mxu0 %v2593
        %v2595 = vand.u32 %v2404, 4294901760
        %2596 = vmatpush.msra.mxu0 %v2595
        %v2597 = vand.u32 %v2403, 4294901760
        %2598 = vmatpush.msra.mxu0 %v2597
        %v2599 = vand.u32 %v2402, 4294901760
        %2600 = vmatpush.msra.mxu0 %v2599
        %v2601 = vand.u32 %v2419, 4294901760
        %2602 = vmatmul.f32.gmra.mxu0 %v2601
        %v2603 = vpop.f32.mrf.mxu0
        %v2604 = vadd.f32 %v2579, %v2603
        %2605 = vdwg.mxu0
        %2607 = vrot.lane.b32.xlu0 %v2604, 96
        %v2608 = vpop.permute.xlu0 %2607
        %v2609 = vsel %vm776, %v2604, 0
        %v2611 = vsel %vm776, %v2608, 0
        %2613 = vmatpush.xpose.msra.mxu0 0.0
        %2614 = vmatpush.xpose.msra.mxu0 0.0
        %2615 = vmatpush.xpose.msra.mxu0 0.0
        %2616 = vmatpush.xpose.msra.mxu0 0.0
        %2617 = vmatpush.xpose.msra.mxu0 0.0
        %2618 = vmatpush.xpose.msra.mxu0 0.0
        %2619 = vmatpush.xpose.msra.mxu0 0.0
        %2620 = vmatpush.xpose.msra.mxu0 0.0
        %2621 = vmatpush.xpose.msra.mxu0 0.0
        %2622 = vmatpush.xpose.msra.mxu0 0.0
        %2623 = vmatpush.xpose.msra.mxu0 0.0
        %2624 = vmatpush.xpose.msra.mxu0 0.0
        %2625 = vmatpush.xpose.msra.mxu0 0.0
        %2626 = vmatpush.xpose.msra.mxu0 0.0
        %2627 = vmatpush.xpose.msra.mxu0 0.0
        %v2628 = vand.u32 %v2611, 4294901760
        %2629 = vmatpush.xpose.msra.mxu0 %v2628
        %v2630 = vand.u32 %v2609, 4294901760
        %v2631 = vsub.f32 %v2609, %v2630
        %v2632 = vand.u32 %v2631, 4294901760
        %v2633 = vsub.f32 %v2631, %v2632
        %v2634 = vand.u32 %v2633, 4294901760
        %2635 = vmatmul.f32.gmra.mxu0 %v2634
        %v2636 = vpop.f32.mrf.mxu0
        %v2637 = vadd.f32 0.0, %v2636
        %2638 = vdwg.mxu0
        %2639 = vmatpush.xpose.msra.mxu0 0.0
        %2640 = vmatpush.xpose.msra.mxu0 0.0
        %2641 = vmatpush.xpose.msra.mxu0 0.0
        %2642 = vmatpush.xpose.msra.mxu0 0.0
        %2643 = vmatpush.xpose.msra.mxu0 0.0
        %2644 = vmatpush.xpose.msra.mxu0 0.0
        %2645 = vmatpush.xpose.msra.mxu0 0.0
        %2646 = vmatpush.xpose.msra.mxu0 0.0
        %2647 = vmatpush.xpose.msra.mxu0 0.0
        %2648 = vmatpush.xpose.msra.mxu0 0.0
        %2649 = vmatpush.xpose.msra.mxu0 0.0
        %2650 = vmatpush.xpose.msra.mxu0 0.0
        %2651 = vmatpush.xpose.msra.mxu0 0.0
        %2652 = vmatpush.xpose.msra.mxu0 0.0
        %2653 = vmatpush.xpose.msra.mxu0 0.0
        %v2654 = vand.u32 %v2611, 4294901760
        %v2655 = vsub.f32 %v2611, %v2654
        %v2656 = vand.u32 %v2655, 4294901760
        %v2657 = vsub.f32 %v2655, %v2656
        %v2658 = vand.u32 %v2657, 4294901760
        %2659 = vmatpush.xpose.msra.mxu0 %v2658
        %v2660 = vand.u32 %v2609, 4294901760
        %2661 = vmatmul.f32.gmra.mxu0 %v2660
        %v2662 = vpop.f32.mrf.mxu0
        %v2663 = vadd.f32 %v2637, %v2662
        %2664 = vdwg.mxu0
        %2665 = vmatpush.xpose.msra.mxu0 0.0
        %2666 = vmatpush.xpose.msra.mxu0 0.0
        %2667 = vmatpush.xpose.msra.mxu0 0.0
        %2668 = vmatpush.xpose.msra.mxu0 0.0
        %2669 = vmatpush.xpose.msra.mxu0 0.0
        %2670 = vmatpush.xpose.msra.mxu0 0.0
        %2671 = vmatpush.xpose.msra.mxu0 0.0
        %2672 = vmatpush.xpose.msra.mxu0 0.0
        %2673 = vmatpush.xpose.msra.mxu0 0.0
        %2674 = vmatpush.xpose.msra.mxu0 0.0
        %2675 = vmatpush.xpose.msra.mxu0 0.0
        %2676 = vmatpush.xpose.msra.mxu0 0.0
        %2677 = vmatpush.xpose.msra.mxu0 0.0
        %2678 = vmatpush.xpose.msra.mxu0 0.0
        %2679 = vmatpush.xpose.msra.mxu0 0.0
        %v2680 = vand.u32 %v2611, 4294901760
        %v2681 = vsub.f32 %v2611, %v2680
        %2682 = vmatpush.xpose.msra.mxu0 %v2681
        %v2683 = vand.u32 %v2609, 4294901760
        %v2684 = vsub.f32 %v2609, %v2683
        %2685 = vmatmul.f32.gmra.mxu0 %v2684
        %v2686 = vpop.f32.mrf.mxu0
        %v2687 = vadd.f32 %v2663, %v2686
        %2688 = vdwg.mxu0
        %2689 = vmatpush.xpose.msra.mxu0 0.0
        %2690 = vmatpush.xpose.msra.mxu0 0.0
        %2691 = vmatpush.xpose.msra.mxu0 0.0
        %2692 = vmatpush.xpose.msra.mxu0 0.0
        %2693 = vmatpush.xpose.msra.mxu0 0.0
        %2694 = vmatpush.xpose.msra.mxu0 0.0
        %2695 = vmatpush.xpose.msra.mxu0 0.0
        %2696 = vmatpush.xpose.msra.mxu0 0.0
        %2697 = vmatpush.xpose.msra.mxu0 0.0
        %2698 = vmatpush.xpose.msra.mxu0 0.0
        %2699 = vmatpush.xpose.msra.mxu0 0.0
        %2700 = vmatpush.xpose.msra.mxu0 0.0
        %2701 = vmatpush.xpose.msra.mxu0 0.0
        %2702 = vmatpush.xpose.msra.mxu0 0.0
        %2703 = vmatpush.xpose.msra.mxu0 0.0
        %v2704 = vand.u32 %v2611, 4294901760
        %2705 = vmatpush.xpose.msra.mxu0 %v2704
        %v2706 = vand.u32 %v2609, 4294901760
        %v2707 = vsub.f32 %v2609, %v2706
        %v2708 = vand.u32 %v2707, 4294901760
        %2709 = vmatmul.f32.gmra.mxu0 %v2708
        %v2710 = vpop.f32.mrf.mxu0
        %v2711 = vadd.f32 %v2687, %v2710
        %2712 = vdwg.mxu0
        %2713 = vmatpush.xpose.msra.mxu0 0.0
        %2714 = vmatpush.xpose.msra.mxu0 0.0
        %2715 = vmatpush.xpose.msra.mxu0 0.0
        %2716 = vmatpush.xpose.msra.mxu0 0.0
        %2717 = vmatpush.xpose.msra.mxu0 0.0
        %2718 = vmatpush.xpose.msra.mxu0 0.0
        %2719 = vmatpush.xpose.msra.mxu0 0.0
        %2720 = vmatpush.xpose.msra.mxu0 0.0
        %2721 = vmatpush.xpose.msra.mxu0 0.0
        %2722 = vmatpush.xpose.msra.mxu0 0.0
        %2723 = vmatpush.xpose.msra.mxu0 0.0
        %2724 = vmatpush.xpose.msra.mxu0 0.0
        %2725 = vmatpush.xpose.msra.mxu0 0.0
        %2726 = vmatpush.xpose.msra.mxu0 0.0
        %2727 = vmatpush.xpose.msra.mxu0 0.0
        %v2728 = vand.u32 %v2611, 4294901760
        %v2729 = vsub.f32 %v2611, %v2728
        %v2730 = vand.u32 %v2729, 4294901760
        %2731 = vmatpush.xpose.msra.mxu0 %v2730
        %v2732 = vand.u32 %v2609, 4294901760
        %2733 = vmatmul.f32.gmra.mxu0 %v2732
        %v2734 = vpop.f32.mrf.mxu0
        %v2735 = vadd.f32 %v2711, %v2734
        %2736 = vdwg.mxu0
        %2737 = vmatpush.xpose.msra.mxu0 0.0
        %2738 = vmatpush.xpose.msra.mxu0 0.0
        %2739 = vmatpush.xpose.msra.mxu0 0.0
        %2740 = vmatpush.xpose.msra.mxu0 0.0
        %2741 = vmatpush.xpose.msra.mxu0 0.0
        %2742 = vmatpush.xpose.msra.mxu0 0.0
        %2743 = vmatpush.xpose.msra.mxu0 0.0
        %2744 = vmatpush.xpose.msra.mxu0 0.0
        %2745 = vmatpush.xpose.msra.mxu0 0.0
        %2746 = vmatpush.xpose.msra.mxu0 0.0
        %2747 = vmatpush.xpose.msra.mxu0 0.0
        %2748 = vmatpush.xpose.msra.mxu0 0.0
        %2749 = vmatpush.xpose.msra.mxu0 0.0
        %2750 = vmatpush.xpose.msra.mxu0 0.0
        %2751 = vmatpush.xpose.msra.mxu0 0.0
        %v2752 = vand.u32 %v2611, 4294901760
        %2753 = vmatpush.xpose.msra.mxu0 %v2752
        %v2754 = vand.u32 %v2609, 4294901760
        %2755 = vmatmul.f32.gmra.mxu0 %v2754
        %v2756 = vpop.f32.mrf.mxu0
        %v2757 = vadd.f32 %v2735, %v2756
        %2758 = vdwg.mxu0
        %v2759 = vmul.f32 %v2757, 0.25
        %v2760 = vadd.f32 %v2759, %v929
        %v2761 = vsel %vm932, %v2760, -inf
        %2762 = vmax.xlane.f32.xlu0 %v2761
        %v2763 = vpop.xlane.xlu0 %2762
        %v2764 = vsub.f32 %v2760, %v2763
        %v2765 = vmul.f32 %v2764, 1.442695
        %v2766 = vpow.pop %v2765
        %v2767 = vsel %vm932, %v2766, 0.0
        %2768 = vadd.xlane.f32.xlu0 %v2767
        %v2769 = vpop.xlane.xlu0 %2768
        %v2770 = vrcp.pop %v2769
        %v2771 = vmul.f32 %v2769, %v2770
        %v2772 = vsub.f32 1.0, %v2771
        %v2773 = vmul.f32 %v2770, %v2772
        %v2774 = vadd.f32 %v2770, %v2773
        %vm2775 = vweird.f32 %v2769
        %vm2776 = vweird.f32 %v2770
        %vm2777 = vmor %vm2775, %vm2776
        %v2778 = vsel %vm2777, %v2770, %v2774
        %v2779 = vand.u32 2147483647, %v2769
        %vm2780 = vcmp.eq.f32.partialorder %v2779, 8.507059e+37
        %v2781 = vand.u32 %v2769, 2147483648
        %v2782 = vor.u32 1.1754944e-38, %v2781
        %v2783 = vsel %vm2780, %v2782, %v2778
        %v2784 = vmul.f32 %v2766, %v2783
        %2785 = vrot.lane.b32.xlu0 %v2604, 64
        %v2786 = vpop.permute.xlu0 %2785
        %v2789 = vsel %vm932, %v2784, 0
        %2791 = vmatpush.msra.mxu0 0.0
        %2792 = vmatpush.msra.mxu0 0.0
        %2793 = vmatpush.msra.mxu0 0.0
        %2794 = vmatpush.msra.mxu0 0.0
        %2795 = vmatpush.msra.mxu0 0.0
        %2796 = vmatpush.msra.mxu0 0.0
        %2797 = vmatpush.msra.mxu0 0.0
        %2798 = vmatpush.msra.mxu0 0.0
        %2799 = vmatpush.msra.mxu0 0.0
        %2800 = vmatpush.msra.mxu0 0.0
        %2801 = vmatpush.msra.mxu0 0.0
        %2802 = vmatpush.msra.mxu0 0.0
        %2803 = vmatpush.msra.mxu0 0.0
        %2804 = vmatpush.msra.mxu0 0.0
        %2805 = vmatpush.msra.mxu0 0.0
        %v2806 = vand.u32 %v2786, 4294901760
        %2807 = vmatpush.msra.mxu0 %v2806
        %v2808 = vand.u32 %v2789, 4294901760
        %v2809 = vsub.f32 %v2789, %v2808
        %v2810 = vand.u32 %v2809, 4294901760
        %v2811 = vsub.f32 %v2809, %v2810
        %v2812 = vand.u32 %v2811, 4294901760
        %2813 = vmatmul.f32.gmra.mxu0 %v2812
        %v2814 = vpop.f32.mrf.mxu0
        %v2815 = vadd.f32 0.0, %v2814
        %2816 = vdwg.mxu0
        %2817 = vmatpush.msra.mxu0 0.0
        %2818 = vmatpush.msra.mxu0 0.0
        %2819 = vmatpush.msra.mxu0 0.0
        %2820 = vmatpush.msra.mxu0 0.0
        %2821 = vmatpush.msra.mxu0 0.0
        %2822 = vmatpush.msra.mxu0 0.0
        %2823 = vmatpush.msra.mxu0 0.0
        %2824 = vmatpush.msra.mxu0 0.0
        %2825 = vmatpush.msra.mxu0 0.0
        %2826 = vmatpush.msra.mxu0 0.0
        %2827 = vmatpush.msra.mxu0 0.0
        %2828 = vmatpush.msra.mxu0 0.0
        %2829 = vmatpush.msra.mxu0 0.0
        %2830 = vmatpush.msra.mxu0 0.0
        %2831 = vmatpush.msra.mxu0 0.0
        %v2832 = vand.u32 %v2786, 4294901760
        %v2833 = vsub.f32 %v2786, %v2832
        %v2834 = vand.u32 %v2833, 4294901760
        %v2835 = vsub.f32 %v2833, %v2834
        %v2836 = vand.u32 %v2835, 4294901760
        %2837 = vmatpush.msra.mxu0 %v2836
        %v2838 = vand.u32 %v2789, 4294901760
        %2839 = vmatmul.f32.gmra.mxu0 %v2838
        %v2840 = vpop.f32.mrf.mxu0
        %v2841 = vadd.f32 %v2815, %v2840
        %2842 = vdwg.mxu0
        %2843 = vmatpush.msra.mxu0 0.0
        %2844 = vmatpush.msra.mxu0 0.0
        %2845 = vmatpush.msra.mxu0 0.0
        %2846 = vmatpush.msra.mxu0 0.0
        %2847 = vmatpush.msra.mxu0 0.0
        %2848 = vmatpush.msra.mxu0 0.0
        %2849 = vmatpush.msra.mxu0 0.0
        %2850 = vmatpush.msra.mxu0 0.0
        %2851 = vmatpush.msra.mxu0 0.0
        %2852 = vmatpush.msra.mxu0 0.0
        %2853 = vmatpush.msra.mxu0 0.0
        %2854 = vmatpush.msra.mxu0 0.0
        %2855 = vmatpush.msra.mxu0 0.0
        %2856 = vmatpush.msra.mxu0 0.0
        %2857 = vmatpush.msra.mxu0 0.0
        %v2858 = vand.u32 %v2786, 4294901760
        %v2859 = vsub.f32 %v2786, %v2858
        %2860 = vmatpush.msra.mxu0 %v2859
        %v2861 = vand.u32 %v2789, 4294901760
        %v2862 = vsub.f32 %v2789, %v2861
        %2863 = vmatmul.f32.gmra.mxu0 %v2862
        %v2864 = vpop.f32.mrf.mxu0
        %v2865 = vadd.f32 %v2841, %v2864
        %2866 = vdwg.mxu0
        %2867 = vmatpush.msra.mxu0 0.0
        %2868 = vmatpush.msra.mxu0 0.0
        %2869 = vmatpush.msra.mxu0 0.0
        %2870 = vmatpush.msra.mxu0 0.0
        %2871 = vmatpush.msra.mxu0 0.0
        %2872 = vmatpush.msra.mxu0 0.0
        %2873 = vmatpush.msra.mxu0 0.0
        %2874 = vmatpush.msra.mxu0 0.0
        %2875 = vmatpush.msra.mxu0 0.0
        %2876 = vmatpush.msra.mxu0 0.0
        %2877 = vmatpush.msra.mxu0 0.0
        %2878 = vmatpush.msra.mxu0 0.0
        %2879 = vmatpush.msra.mxu0 0.0
        %2880 = vmatpush.msra.mxu0 0.0
        %2881 = vmatpush.msra.mxu0 0.0
        %v2882 = vand.u32 %v2786, 4294901760
        %2883 = vmatpush.msra.mxu0 %v2882
        %v2884 = vand.u32 %v2789, 4294901760
        %v2885 = vsub.f32 %v2789, %v2884
        %v2886 = vand.u32 %v2885, 4294901760
        %2887 = vmatmul.f32.gmra.mxu0 %v2886
        %v2888 = vpop.f32.mrf.mxu0
        %v2889 = vadd.f32 %v2865, %v2888
        %2890 = vdwg.mxu0
        %2891 = vmatpush.msra.mxu0 0.0
        %2892 = vmatpush.msra.mxu0 0.0
        %2893 = vmatpush.msra.mxu0 0.0
        %2894 = vmatpush.msra.mxu0 0.0
        %2895 = vmatpush.msra.mxu0 0.0
        %2896 = vmatpush.msra.mxu0 0.0
        %2897 = vmatpush.msra.mxu0 0.0
        %2898 = vmatpush.msra.mxu0 0.0
        %2899 = vmatpush.msra.mxu0 0.0
        %2900 = vmatpush.msra.mxu0 0.0
        %2901 = vmatpush.msra.mxu0 0.0
        %2902 = vmatpush.msra.mxu0 0.0
        %2903 = vmatpush.msra.mxu0 0.0
        %2904 = vmatpush.msra.mxu0 0.0
        %2905 = vmatpush.msra.mxu0 0.0
        %v2906 = vand.u32 %v2786, 4294901760
        %v2907 = vsub.f32 %v2786, %v2906
        %v2908 = vand.u32 %v2907, 4294901760
        %2909 = vmatpush.msra.mxu0 %v2908
        %v2910 = vand.u32 %v2789, 4294901760
        %2911 = vmatmul.f32.gmra.mxu0 %v2910
        %v2912 = vpop.f32.mrf.mxu0
        %v2913 = vadd.f32 %v2889, %v2912
        %2914 = vdwg.mxu0
        %2915 = vmatpush.msra.mxu0 0.0
        %2916 = vmatpush.msra.mxu0 0.0
        %2917 = vmatpush.msra.mxu0 0.0
        %2918 = vmatpush.msra.mxu0 0.0
        %2919 = vmatpush.msra.mxu0 0.0
        %2920 = vmatpush.msra.mxu0 0.0
        %2921 = vmatpush.msra.mxu0 0.0
        %2922 = vmatpush.msra.mxu0 0.0
        %2923 = vmatpush.msra.mxu0 0.0
        %2924 = vmatpush.msra.mxu0 0.0
        %2925 = vmatpush.msra.mxu0 0.0
        %2926 = vmatpush.msra.mxu0 0.0
        %2927 = vmatpush.msra.mxu0 0.0
        %2928 = vmatpush.msra.mxu0 0.0
        %2929 = vmatpush.msra.mxu0 0.0
        %v2930 = vand.u32 %v2786, 4294901760
        %2931 = vmatpush.msra.mxu0 %v2930
        %v2932 = vand.u32 %v2789, 4294901760
        %2933 = vmatmul.f32.gmra.mxu0 %v2932
        %v2934 = vpop.f32.mrf.mxu0
        %v2935 = vadd.f32 %v2913, %v2934
        %2936 = vdwg.mxu0
        %2937 = vrot.lane.b32.xlu0 %v2604, 112
        %v2938 = vpop.permute.xlu0 %2937
        %2939 = vrot.lane.b32.xlu0 %v2604, 80
        %v2940 = vpop.permute.xlu0 %2939
        %v2941 = vsel %vm776, %v2938, 0
        %v2943 = vsel %vm776, %v2940, 0
        %2945 = vmatpush.xpose.msra.mxu0 0.0
        %2946 = vmatpush.xpose.msra.mxu0 0.0
        %2947 = vmatpush.xpose.msra.mxu0 0.0
        %2948 = vmatpush.xpose.msra.mxu0 0.0
        %2949 = vmatpush.xpose.msra.mxu0 0.0
        %2950 = vmatpush.xpose.msra.mxu0 0.0
        %2951 = vmatpush.xpose.msra.mxu0 0.0
        %2952 = vmatpush.xpose.msra.mxu0 0.0
        %2953 = vmatpush.xpose.msra.mxu0 0.0
        %2954 = vmatpush.xpose.msra.mxu0 0.0
        %2955 = vmatpush.xpose.msra.mxu0 0.0
        %2956 = vmatpush.xpose.msra.mxu0 0.0
        %2957 = vmatpush.xpose.msra.mxu0 0.0
        %2958 = vmatpush.xpose.msra.mxu0 0.0
        %2959 = vmatpush.xpose.msra.mxu0 0.0
        %v2960 = vand.u32 %v2943, 4294901760
        %2961 = vmatpush.xpose.msra.mxu0 %v2960
        %v2962 = vand.u32 %v2941, 4294901760
        %v2963 = vsub.f32 %v2941, %v2962
        %v2964 = vand.u32 %v2963, 4294901760
        %v2965 = vsub.f32 %v2963, %v2964
        %v2966 = vand.u32 %v2965, 4294901760
        %2967 = vmatmul.f32.gmra.mxu0 %v2966
        %v2968 = vpop.f32.mrf.mxu0
        %v2969 = vadd.f32 0.0, %v2968
        %2970 = vdwg.mxu0
        %2971 = vmatpush.xpose.msra.mxu0 0.0
        %2972 = vmatpush.xpose.msra.mxu0 0.0
        %2973 = vmatpush.xpose.msra.mxu0 0.0
        %2974 = vmatpush.xpose.msra.mxu0 0.0
        %2975 = vmatpush.xpose.msra.mxu0 0.0
        %2976 = vmatpush.xpose.msra.mxu0 0.0
        %2977 = vmatpush.xpose.msra.mxu0 0.0
        %2978 = vmatpush.xpose.msra.mxu0 0.0
        %2979 = vmatpush.xpose.msra.mxu0 0.0
        %2980 = vmatpush.xpose.msra.mxu0 0.0
        %2981 = vmatpush.xpose.msra.mxu0 0.0
        %2982 = vmatpush.xpose.msra.mxu0 0.0
        %2983 = vmatpush.xpose.msra.mxu0 0.0
        %2984 = vmatpush.xpose.msra.mxu0 0.0
        %2985 = vmatpush.xpose.msra.mxu0 0.0
        %v2986 = vand.u32 %v2943, 4294901760
        %v2987 = vsub.f32 %v2943, %v2986
        %v2988 = vand.u32 %v2987, 4294901760
        %v2989 = vsub.f32 %v2987, %v2988
        %v2990 = vand.u32 %v2989, 4294901760
        %2991 = vmatpush.xpose.msra.mxu0 %v2990
        %v2992 = vand.u32 %v2941, 4294901760
        %2993 = vmatmul.f32.gmra.mxu0 %v2992
        %v2994 = vpop.f32.mrf.mxu0
        %v2995 = vadd.f32 %v2969, %v2994
        %2996 = vdwg.mxu0
        %2997 = vmatpush.xpose.msra.mxu0 0.0
        %2998 = vmatpush.xpose.msra.mxu0 0.0
        %2999 = vmatpush.xpose.msra.mxu0 0.0
        %3000 = vmatpush.xpose.msra.mxu0 0.0
        %3001 = vmatpush.xpose.msra.mxu0 0.0
        %3002 = vmatpush.xpose.msra.mxu0 0.0
        %3003 = vmatpush.xpose.msra.mxu0 0.0
        %3004 = vmatpush.xpose.msra.mxu0 0.0
        %3005 = vmatpush.xpose.msra.mxu0 0.0
        %3006 = vmatpush.xpose.msra.mxu0 0.0
        %3007 = vmatpush.xpose.msra.mxu0 0.0
        %3008 = vmatpush.xpose.msra.mxu0 0.0
        %3009 = vmatpush.xpose.msra.mxu0 0.0
        %3010 = vmatpush.xpose.msra.mxu0 0.0
        %3011 = vmatpush.xpose.msra.mxu0 0.0
        %v3012 = vand.u32 %v2943, 4294901760
        %v3013 = vsub.f32 %v2943, %v3012
        %3014 = vmatpush.xpose.msra.mxu0 %v3013
        %v3015 = vand.u32 %v2941, 4294901760
        %v3016 = vsub.f32 %v2941, %v3015
        %3017 = vmatmul.f32.gmra.mxu0 %v3016
        %v3018 = vpop.f32.mrf.mxu0
        %v3019 = vadd.f32 %v2995, %v3018
        %3020 = vdwg.mxu0
        %3021 = vmatpush.xpose.msra.mxu0 0.0
        %3022 = vmatpush.xpose.msra.mxu0 0.0
        %3023 = vmatpush.xpose.msra.mxu0 0.0
        %3024 = vmatpush.xpose.msra.mxu0 0.0
        %3025 = vmatpush.xpose.msra.mxu0 0.0
        %3026 = vmatpush.xpose.msra.mxu0 0.0
        %3027 = vmatpush.xpose.msra.mxu0 0.0
        %3028 = vmatpush.xpose.msra.mxu0 0.0
        %3029 = vmatpush.xpose.msra.mxu0 0.0
        %3030 = vmatpush.xpose.msra.mxu0 0.0
        %3031 = vmatpush.xpose.msra.mxu0 0.0
        %3032 = vmatpush.xpose.msra.mxu0 0.0
        %3033 = vmatpush.xpose.msra.mxu0 0.0
        %3034 = vmatpush.xpose.msra.mxu0 0.0
        %3035 = vmatpush.xpose.msra.mxu0 0.0
        %v3036 = vand.u32 %v2943, 4294901760
        %3037 = vmatpush.xpose.msra.mxu0 %v3036
        %v3038 = vand.u32 %v2941, 4294901760
        %v3039 = vsub.f32 %v2941, %v3038
        %v3040 = vand.u32 %v3039, 4294901760
        %3041 = vmatmul.f32.gmra.mxu0 %v3040
        %v3042 = vpop.f32.mrf.mxu0
        %v3043 = vadd.f32 %v3019, %v3042
        %3044 = vdwg.mxu0
        %3045 = vmatpush.xpose.msra.mxu0 0.0
        %3046 = vmatpush.xpose.msra.mxu0 0.0
        %3047 = vmatpush.xpose.msra.mxu0 0.0
        %3048 = vmatpush.xpose.msra.mxu0 0.0
        %3049 = vmatpush.xpose.msra.mxu0 0.0
        %3050 = vmatpush.xpose.msra.mxu0 0.0
        %3051 = vmatpush.xpose.msra.mxu0 0.0
        %3052 = vmatpush.xpose.msra.mxu0 0.0
        %3053 = vmatpush.xpose.msra.mxu0 0.0
        %3054 = vmatpush.xpose.msra.mxu0 0.0
        %3055 = vmatpush.xpose.msra.mxu0 0.0
        %3056 = vmatpush.xpose.msra.mxu0 0.0
        %3057 = vmatpush.xpose.msra.mxu0 0.0
        %3058 = vmatpush.xpose.msra.mxu0 0.0
        %3059 = vmatpush.xpose.msra.mxu0 0.0
        %v3060 = vand.u32 %v2943, 4294901760
        %v3061 = vsub.f32 %v2943, %v3060
        %v3062 = vand.u32 %v3061, 4294901760
        %3063 = vmatpush.xpose.msra.mxu0 %v3062
        %v3064 = vand.u32 %v2941, 4294901760
        %3065 = vmatmul.f32.gmra.mxu0 %v3064
        %v3066 = vpop.f32.mrf.mxu0
        %v3067 = vadd.f32 %v3043, %v3066
        %3068 = vdwg.mxu0
        %3069 = vmatpush.xpose.msra.mxu0 0.0
        %3070 = vmatpush.xpose.msra.mxu0 0.0
        %3071 = vmatpush.xpose.msra.mxu0 0.0
        %3072 = vmatpush.xpose.msra.mxu0 0.0
        %3073 = vmatpush.xpose.msra.mxu0 0.0
        %3074 = vmatpush.xpose.msra.mxu0 0.0
        %3075 = vmatpush.xpose.msra.mxu0 0.0
        %3076 = vmatpush.xpose.msra.mxu0 0.0
        %3077 = vmatpush.xpose.msra.mxu0 0.0
        %3078 = vmatpush.xpose.msra.mxu0 0.0
        %3079 = vmatpush.xpose.msra.mxu0 0.0
        %3080 = vmatpush.xpose.msra.mxu0 0.0
        %3081 = vmatpush.xpose.msra.mxu0 0.0
        %3082 = vmatpush.xpose.msra.mxu0 0.0
        %3083 = vmatpush.xpose.msra.mxu0 0.0
        %v3084 = vand.u32 %v2943, 4294901760
        %3085 = vmatpush.xpose.msra.mxu0 %v3084
        %v3086 = vand.u32 %v2941, 4294901760
        %3087 = vmatmul.f32.gmra.mxu0 %v3086
        %v3088 = vpop.f32.mrf.mxu0
        %v3089 = vadd.f32 %v3067, %v3088
        %3090 = vdwg.mxu0
        %v3091 = vmul.f32 %v3089, 0.25
        %v3092 = vadd.f32 %v3091, %v929
        %v3093 = vsel %vm932, %v3092, -inf
        %3094 = vmax.xlane.f32.xlu0 %v3093
        %v3095 = vpop.xlane.xlu0 %3094
        %v3096 = vsub.f32 %v3092, %v3095
        %v3097 = vmul.f32 %v3096, 1.442695
        %v3098 = vpow.pop %v3097
        %v3099 = vsel %vm932, %v3098, 0.0
        %3100 = vadd.xlane.f32.xlu0 %v3099
        %v3101 = vpop.xlane.xlu0 %3100
        %v3102 = vrcp.pop %v3101
        %v3103 = vmul.f32 %v3101, %v3102
        %v3104 = vsub.f32 1.0, %v3103
        %v3105 = vmul.f32 %v3102, %v3104
        %v3106 = vadd.f32 %v3102, %v3105
        %vm3107 = vweird.f32 %v3101
        %vm3108 = vweird.f32 %v3102
        %vm3109 = vmor %vm3107, %vm3108
        %v3110 = vsel %vm3109, %v3102, %v3106
        %v3111 = vand.u32 2147483647, %v3101
        %vm3112 = vcmp.eq.f32.partialorder %v3111, 8.507059e+37
        %v3113 = vand.u32 %v3101, 2147483648
        %v3114 = vor.u32 1.1754944e-38, %v3113
        %v3115 = vsel %vm3112, %v3114, %v3110
        %v3116 = vmul.f32 %v3098, %v3115
        %3117 = vrot.lane.b32.xlu0 %v2604, 48
        %v3118 = vpop.permute.xlu0 %3117
        %v3121 = vsel %vm932, %v3116, 0
        %3123 = vmatpush.msra.mxu0 0.0
        %3124 = vmatpush.msra.mxu0 0.0
        %3125 = vmatpush.msra.mxu0 0.0
        %3126 = vmatpush.msra.mxu0 0.0
        %3127 = vmatpush.msra.mxu0 0.0
        %3128 = vmatpush.msra.mxu0 0.0
        %3129 = vmatpush.msra.mxu0 0.0
        %3130 = vmatpush.msra.mxu0 0.0
        %3131 = vmatpush.msra.mxu0 0.0
        %3132 = vmatpush.msra.mxu0 0.0
        %3133 = vmatpush.msra.mxu0 0.0
        %3134 = vmatpush.msra.mxu0 0.0
        %3135 = vmatpush.msra.mxu0 0.0
        %3136 = vmatpush.msra.mxu0 0.0
        %3137 = vmatpush.msra.mxu0 0.0
        %v3138 = vand.u32 %v3118, 4294901760
        %3139 = vmatpush.msra.mxu0 %v3138
        %v3140 = vand.u32 %v3121, 4294901760
        %v3141 = vsub.f32 %v3121, %v3140
        %v3142 = vand.u32 %v3141, 4294901760
        %v3143 = vsub.f32 %v3141, %v3142
        %v3144 = vand.u32 %v3143, 4294901760
        %3145 = vmatmul.f32.gmra.mxu0 %v3144
        %v3146 = vpop.f32.mrf.mxu0
        %v3147 = vadd.f32 0.0, %v3146
        %3148 = vdwg.mxu0
        %3149 = vmatpush.msra.mxu0 0.0
        %3150 = vmatpush.msra.mxu0 0.0
        %3151 = vmatpush.msra.mxu0 0.0
        %3152 = vmatpush.msra.mxu0 0.0
        %3153 = vmatpush.msra.mxu0 0.0
        %3154 = vmatpush.msra.mxu0 0.0
        %3155 = vmatpush.msra.mxu0 0.0
        %3156 = vmatpush.msra.mxu0 0.0
        %3157 = vmatpush.msra.mxu0 0.0
        %3158 = vmatpush.msra.mxu0 0.0
        %3159 = vmatpush.msra.mxu0 0.0
        %3160 = vmatpush.msra.mxu0 0.0
        %3161 = vmatpush.msra.mxu0 0.0
        %3162 = vmatpush.msra.mxu0 0.0
        %3163 = vmatpush.msra.mxu0 0.0
        %v3164 = vand.u32 %v3118, 4294901760
        %v3165 = vsub.f32 %v3118, %v3164
        %v3166 = vand.u32 %v3165, 4294901760
        %v3167 = vsub.f32 %v3165, %v3166
        %v3168 = vand.u32 %v3167, 4294901760
        %3169 = vmatpush.msra.mxu0 %v3168
        %v3170 = vand.u32 %v3121, 4294901760
        %3171 = vmatmul.f32.gmra.mxu0 %v3170
        %v3172 = vpop.f32.mrf.mxu0
        %v3173 = vadd.f32 %v3147, %v3172
        %3174 = vdwg.mxu0
        %3175 = vmatpush.msra.mxu0 0.0
        %3176 = vmatpush.msra.mxu0 0.0
        %3177 = vmatpush.msra.mxu0 0.0
        %3178 = vmatpush.msra.mxu0 0.0
        %3179 = vmatpush.msra.mxu0 0.0
        %3180 = vmatpush.msra.mxu0 0.0
        %3181 = vmatpush.msra.mxu0 0.0
        %3182 = vmatpush.msra.mxu0 0.0
        %3183 = vmatpush.msra.mxu0 0.0
        %3184 = vmatpush.msra.mxu0 0.0
        %3185 = vmatpush.msra.mxu0 0.0
        %3186 = vmatpush.msra.mxu0 0.0
        %3187 = vmatpush.msra.mxu0 0.0
        %3188 = vmatpush.msra.mxu0 0.0
        %3189 = vmatpush.msra.mxu0 0.0
        %v3190 = vand.u32 %v3118, 4294901760
        %v3191 = vsub.f32 %v3118, %v3190
        %3192 = vmatpush.msra.mxu0 %v3191
        %v3193 = vand.u32 %v3121, 4294901760
        %v3194 = vsub.f32 %v3121, %v3193
        %3195 = vmatmul.f32.gmra.mxu0 %v3194
        %v3196 = vpop.f32.mrf.mxu0
        %v3197 = vadd.f32 %v3173, %v3196
        %3198 = vdwg.mxu0
        %3199 = vmatpush.msra.mxu0 0.0
        %3200 = vmatpush.msra.mxu0 0.0
        %3201 = vmatpush.msra.mxu0 0.0
        %3202 = vmatpush.msra.mxu0 0.0
        %3203 = vmatpush.msra.mxu0 0.0
        %3204 = vmatpush.msra.mxu0 0.0
        %3205 = vmatpush.msra.mxu0 0.0
        %3206 = vmatpush.msra.mxu0 0.0
        %3207 = vmatpush.msra.mxu0 0.0
        %3208 = vmatpush.msra.mxu0 0.0
        %3209 = vmatpush.msra.mxu0 0.0
        %3210 = vmatpush.msra.mxu0 0.0
        %3211 = vmatpush.msra.mxu0 0.0
        %3212 = vmatpush.msra.mxu0 0.0
        %3213 = vmatpush.msra.mxu0 0.0
        %v3214 = vand.u32 %v3118, 4294901760
        %3215 = vmatpush.msra.mxu0 %v3214
        %v3216 = vand.u32 %v3121, 4294901760
        %v3217 = vsub.f32 %v3121, %v3216
        %v3218 = vand.u32 %v3217, 4294901760
        %3219 = vmatmul.f32.gmra.mxu0 %v3218
        %v3220 = vpop.f32.mrf.mxu0
        %v3221 = vadd.f32 %v3197, %v3220
        %3222 = vdwg.mxu0
        %3223 = vmatpush.msra.mxu0 0.0
        %3224 = vmatpush.msra.mxu0 0.0
        %3225 = vmatpush.msra.mxu0 0.0
        %3226 = vmatpush.msra.mxu0 0.0
        %3227 = vmatpush.msra.mxu0 0.0
        %3228 = vmatpush.msra.mxu0 0.0
        %3229 = vmatpush.msra.mxu0 0.0
        %3230 = vmatpush.msra.mxu0 0.0
        %3231 = vmatpush.msra.mxu0 0.0
        %3232 = vmatpush.msra.mxu0 0.0
        %3233 = vmatpush.msra.mxu0 0.0
        %3234 = vmatpush.msra.mxu0 0.0
        %3235 = vmatpush.msra.mxu0 0.0
        %3236 = vmatpush.msra.mxu0 0.0
        %3237 = vmatpush.msra.mxu0 0.0
        %v3238 = vand.u32 %v3118, 4294901760
        %v3239 = vsub.f32 %v3118, %v3238
        %v3240 = vand.u32 %v3239, 4294901760
        %3241 = vmatpush.msra.mxu0 %v3240
        %v3242 = vand.u32 %v3121, 4294901760
        %3243 = vmatmul.f32.gmra.mxu0 %v3242
        %v3244 = vpop.f32.mrf.mxu0
        %v3245 = vadd.f32 %v3221, %v3244
        %3246 = vdwg.mxu0
        %3247 = vmatpush.msra.mxu0 0.0
        %3248 = vmatpush.msra.mxu0 0.0
        %3249 = vmatpush.msra.mxu0 0.0
        %3250 = vmatpush.msra.mxu0 0.0
        %3251 = vmatpush.msra.mxu0 0.0
        %3252 = vmatpush.msra.mxu0 0.0
        %3253 = vmatpush.msra.mxu0 0.0
        %3254 = vmatpush.msra.mxu0 0.0
        %3255 = vmatpush.msra.mxu0 0.0
        %3256 = vmatpush.msra.mxu0 0.0
        %3257 = vmatpush.msra.mxu0 0.0
        %3258 = vmatpush.msra.mxu0 0.0
        %3259 = vmatpush.msra.mxu0 0.0
        %3260 = vmatpush.msra.mxu0 0.0
        %3261 = vmatpush.msra.mxu0 0.0
        %v3262 = vand.u32 %v3118, 4294901760
        %3263 = vmatpush.msra.mxu0 %v3262
        %v3264 = vand.u32 %v3121, 4294901760
        %3265 = vmatmul.f32.gmra.mxu0 %v3264
        %v3266 = vpop.f32.mrf.mxu0
        %v3267 = vadd.f32 %v3245, %v3266
        %3268 = vdwg.mxu0
        %v3270 = vsel %vm776, %v3267, 0
        %3272 = vmatpush.msra.mxu0 0.0
        %3273 = vmatpush.msra.mxu0 0.0
        %3274 = vmatpush.msra.mxu0 0.0
        %3275 = vmatpush.msra.mxu0 0.0
        %3276 = vmatpush.msra.mxu0 0.0
        %3277 = vmatpush.msra.mxu0 0.0
        %3278 = vmatpush.msra.mxu0 0.0
        %3279 = vmatpush.msra.mxu0 0.0
        %3280 = vmatpush.msra.mxu0 0.0
        %3281 = vmatpush.msra.mxu0 0.0
        %3282 = vmatpush.msra.mxu0 0.0
        %3283 = vmatpush.msra.mxu0 0.0
        %3284 = vmatpush.msra.mxu0 0.0
        %3285 = vmatpush.msra.mxu0 0.0
        %v3286 = vand.u32 %v2412, 4294901760
        %3287 = vmatpush.msra.mxu0 %v3286
        %v3288 = vand.u32 %v2411, 4294901760
        %3289 = vmatpush.msra.mxu0 %v3288
        %v3290 = vand.u32 %v3270, 4294901760
        %v3291 = vsub.f32 %v3270, %v3290
        %v3292 = vand.u32 %v3291, 4294901760
        %v3293 = vsub.f32 %v3291, %v3292
        %v3294 = vand.u32 %v3293, 4294901760
        %3295 = vmatmul.f32.gmra.mxu0 %v3294
        %v3296 = vpop.f32.mrf.mxu0
        %v3297 = vadd.f32 0.0, %v3296
        %3298 = vdwg.mxu0
        %3299 = vmatpush.msra.mxu0 0.0
        %3300 = vmatpush.msra.mxu0 0.0
        %3301 = vmatpush.msra.mxu0 0.0
        %3302 = vmatpush.msra.mxu0 0.0
        %3303 = vmatpush.msra.mxu0 0.0
        %3304 = vmatpush.msra.mxu0 0.0
        %3305 = vmatpush.msra.mxu0 0.0
        %3306 = vmatpush.msra.mxu0 0.0
        %3307 = vmatpush.msra.mxu0 0.0
        %3308 = vmatpush.msra.mxu0 0.0
        %3309 = vmatpush.msra.mxu0 0.0
        %3310 = vmatpush.msra.mxu0 0.0
        %3311 = vmatpush.msra.mxu0 0.0
        %3312 = vmatpush.msra.mxu0 0.0
        %v3313 = vand.u32 %v2412, 4294901760
        %v3314 = vsub.f32 %v2412, %v3313
        %v3315 = vand.u32 %v3314, 4294901760
        %v3316 = vsub.f32 %v3314, %v3315
        %v3317 = vand.u32 %v3316, 4294901760
        %3318 = vmatpush.msra.mxu0 %v3317
        %v3319 = vand.u32 %v2411, 4294901760
        %v3320 = vsub.f32 %v2411, %v3319
        %v3321 = vand.u32 %v3320, 4294901760
        %v3322 = vsub.f32 %v3320, %v3321
        %v3323 = vand.u32 %v3322, 4294901760
        %3324 = vmatpush.msra.mxu0 %v3323
        %v3325 = vand.u32 %v3270, 4294901760
        %3326 = vmatmul.f32.gmra.mxu0 %v3325
        %v3327 = vpop.f32.mrf.mxu0
        %v3328 = vadd.f32 %v3297, %v3327
        %3329 = vdwg.mxu0
        %3330 = vmatpush.msra.mxu0 0.0
        %3331 = vmatpush.msra.mxu0 0.0
        %3332 = vmatpush.msra.mxu0 0.0
        %3333 = vmatpush.msra.mxu0 0.0
        %3334 = vmatpush.msra.mxu0 0.0
        %3335 = vmatpush.msra.mxu0 0.0
        %3336 = vmatpush.msra.mxu0 0.0
        %3337 = vmatpush.msra.mxu0 0.0
        %3338 = vmatpush.msra.mxu0 0.0
        %3339 = vmatpush.msra.mxu0 0.0
        %3340 = vmatpush.msra.mxu0 0.0
        %3341 = vmatpush.msra.mxu0 0.0
        %3342 = vmatpush.msra.mxu0 0.0
        %3343 = vmatpush.msra.mxu0 0.0
        %v3344 = vand.u32 %v2412, 4294901760
        %v3345 = vsub.f32 %v2412, %v3344
        %3346 = vmatpush.msra.mxu0 %v3345
        %v3347 = vand.u32 %v2411, 4294901760
        %v3348 = vsub.f32 %v2411, %v3347
        %3349 = vmatpush.msra.mxu0 %v3348
        %v3350 = vand.u32 %v3270, 4294901760
        %v3351 = vsub.f32 %v3270, %v3350
        %3352 = vmatmul.f32.gmra.mxu0 %v3351
        %v3353 = vpop.f32.mrf.mxu0
        %v3354 = vadd.f32 %v3328, %v3353
        %3355 = vdwg.mxu0
        %3356 = vmatpush.msra.mxu0 0.0
        %3357 = vmatpush.msra.mxu0 0.0
        %3358 = vmatpush.msra.mxu0 0.0
        %3359 = vmatpush.msra.mxu0 0.0
        %3360 = vmatpush.msra.mxu0 0.0
        %3361 = vmatpush.msra.mxu0 0.0
        %3362 = vmatpush.msra.mxu0 0.0
        %3363 = vmatpush.msra.mxu0 0.0
        %3364 = vmatpush.msra.mxu0 0.0
        %3365 = vmatpush.msra.mxu0 0.0
        %3366 = vmatpush.msra.mxu0 0.0
        %3367 = vmatpush.msra.mxu0 0.0
        %3368 = vmatpush.msra.mxu0 0.0
        %3369 = vmatpush.msra.mxu0 0.0
        %v3370 = vand.u32 %v2412, 4294901760
        %3371 = vmatpush.msra.mxu0 %v3370
        %v3372 = vand.u32 %v2411, 4294901760
        %3373 = vmatpush.msra.mxu0 %v3372
        %v3374 = vand.u32 %v3270, 4294901760
        %v3375 = vsub.f32 %v3270, %v3374
        %v3376 = vand.u32 %v3375, 4294901760
        %3377 = vmatmul.f32.gmra.mxu0 %v3376
        %v3378 = vpop.f32.mrf.mxu0
        %v3379 = vadd.f32 %v3354, %v3378
        %3380 = vdwg.mxu0
        %3381 = vmatpush.msra.mxu0 0.0
        %3382 = vmatpush.msra.mxu0 0.0
        %3383 = vmatpush.msra.mxu0 0.0
        %3384 = vmatpush.msra.mxu0 0.0
        %3385 = vmatpush.msra.mxu0 0.0
        %3386 = vmatpush.msra.mxu0 0.0
        %3387 = vmatpush.msra.mxu0 0.0
        %3388 = vmatpush.msra.mxu0 0.0
        %3389 = vmatpush.msra.mxu0 0.0
        %3390 = vmatpush.msra.mxu0 0.0
        %3391 = vmatpush.msra.mxu0 0.0
        %3392 = vmatpush.msra.mxu0 0.0
        %3393 = vmatpush.msra.mxu0 0.0
        %3394 = vmatpush.msra.mxu0 0.0
        %v3395 = vand.u32 %v2412, 4294901760
        %v3396 = vsub.f32 %v2412, %v3395
        %v3397 = vand.u32 %v3396, 4294901760
        %3398 = vmatpush.msra.mxu0 %v3397
        %v3399 = vand.u32 %v2411, 4294901760
        %v3400 = vsub.f32 %v2411, %v3399
        %v3401 = vand.u32 %v3400, 4294901760
        %3402 = vmatpush.msra.mxu0 %v3401
        %v3403 = vand.u32 %v3270, 4294901760
        %3404 = vmatmul.f32.gmra.mxu0 %v3403
        %v3405 = vpop.f32.mrf.mxu0
        %v3406 = vadd.f32 %v3379, %v3405
        %3407 = vdwg.mxu0
        %3408 = vmatpush.msra.mxu0 0.0
        %3409 = vmatpush.msra.mxu0 0.0
        %3410 = vmatpush.msra.mxu0 0.0
        %3411 = vmatpush.msra.mxu0 0.0
        %3412 = vmatpush.msra.mxu0 0.0
        %3413 = vmatpush.msra.mxu0 0.0
        %3414 = vmatpush.msra.mxu0 0.0
        %3415 = vmatpush.msra.mxu0 0.0
        %3416 = vmatpush.msra.mxu0 0.0
        %3417 = vmatpush.msra.mxu0 0.0
        %3418 = vmatpush.msra.mxu0 0.0
        %3419 = vmatpush.msra.mxu0 0.0
        %3420 = vmatpush.msra.mxu0 0.0
        %3421 = vmatpush.msra.mxu0 0.0
        %v3422 = vand.u32 %v2412, 4294901760
        %3423 = vmatpush.msra.mxu0 %v3422
        %v3424 = vand.u32 %v2411, 4294901760
        %3425 = vmatpush.msra.mxu0 %v3424
        %v3426 = vand.u32 %v3270, 4294901760
        %3427 = vmatmul.f32.gmra.mxu0 %v3426
        %v3428 = vpop.f32.mrf.mxu0
        %v3429 = vadd.f32 %v3406, %v3428
        %3430 = vdwg.mxu0
        %v3432 = vsel %vm776, %v2935, 0
        %3434 = vmatpush.msra.mxu0 0.0
        %3435 = vmatpush.msra.mxu0 0.0
        %3436 = vmatpush.msra.mxu0 0.0
        %3437 = vmatpush.msra.mxu0 0.0
        %3438 = vmatpush.msra.mxu0 0.0
        %3439 = vmatpush.msra.mxu0 0.0
        %3440 = vmatpush.msra.mxu0 0.0
        %3441 = vmatpush.msra.mxu0 0.0
        %3442 = vmatpush.msra.mxu0 0.0
        %3443 = vmatpush.msra.mxu0 0.0
        %3444 = vmatpush.msra.mxu0 0.0
        %3445 = vmatpush.msra.mxu0 0.0
        %3446 = vmatpush.msra.mxu0 0.0
        %3447 = vmatpush.msra.mxu0 0.0
        %v3448 = vand.u32 %v2410, 4294901760
        %3449 = vmatpush.msra.mxu0 %v3448
        %v3450 = vand.u32 %v2409, 4294901760
        %3451 = vmatpush.msra.mxu0 %v3450
        %v3452 = vand.u32 %v3432, 4294901760
        %v3453 = vsub.f32 %v3432, %v3452
        %v3454 = vand.u32 %v3453, 4294901760
        %v3455 = vsub.f32 %v3453, %v3454
        %v3456 = vand.u32 %v3455, 4294901760
        %3457 = vmatmul.f32.gmra.mxu0 %v3456
        %v3458 = vpop.f32.mrf.mxu0
        %v3459 = vadd.f32 %v3429, %v3458
        %3460 = vdwg.mxu0
        %3461 = vmatpush.msra.mxu0 0.0
        %3462 = vmatpush.msra.mxu0 0.0
        %3463 = vmatpush.msra.mxu0 0.0
        %3464 = vmatpush.msra.mxu0 0.0
        %3465 = vmatpush.msra.mxu0 0.0
        %3466 = vmatpush.msra.mxu0 0.0
        %3467 = vmatpush.msra.mxu0 0.0
        %3468 = vmatpush.msra.mxu0 0.0
        %3469 = vmatpush.msra.mxu0 0.0
        %3470 = vmatpush.msra.mxu0 0.0
        %3471 = vmatpush.msra.mxu0 0.0
        %3472 = vmatpush.msra.mxu0 0.0
        %3473 = vmatpush.msra.mxu0 0.0
        %3474 = vmatpush.msra.mxu0 0.0
        %v3475 = vand.u32 %v2410, 4294901760
        %v3476 = vsub.f32 %v2410, %v3475
        %v3477 = vand.u32 %v3476, 4294901760
        %v3478 = vsub.f32 %v3476, %v3477
        %v3479 = vand.u32 %v3478, 4294901760
        %3480 = vmatpush.msra.mxu0 %v3479
        %v3481 = vand.u32 %v2409, 4294901760
        %v3482 = vsub.f32 %v2409, %v3481
        %v3483 = vand.u32 %v3482, 4294901760
        %v3484 = vsub.f32 %v3482, %v3483
        %v3485 = vand.u32 %v3484, 4294901760
        %3486 = vmatpush.msra.mxu0 %v3485
        %v3487 = vand.u32 %v3432, 4294901760
        %3488 = vmatmul.f32.gmra.mxu0 %v3487
        %v3489 = vpop.f32.mrf.mxu0
        %v3490 = vadd.f32 %v3459, %v3489
        %3491 = vdwg.mxu0
        %3492 = vmatpush.msra.mxu0 0.0
        %3493 = vmatpush.msra.mxu0 0.0
        %3494 = vmatpush.msra.mxu0 0.0
        %3495 = vmatpush.msra.mxu0 0.0
        %3496 = vmatpush.msra.mxu0 0.0
        %3497 = vmatpush.msra.mxu0 0.0
        %3498 = vmatpush.msra.mxu0 0.0
        %3499 = vmatpush.msra.mxu0 0.0
        %3500 = vmatpush.msra.mxu0 0.0
        %3501 = vmatpush.msra.mxu0 0.0
        %3502 = vmatpush.msra.mxu0 0.0
        %3503 = vmatpush.msra.mxu0 0.0
        %3504 = vmatpush.msra.mxu0 0.0
        %3505 = vmatpush.msra.mxu0 0.0
        %v3506 = vand.u32 %v2410, 4294901760
        %v3507 = vsub.f32 %v2410, %v3506
        %3508 = vmatpush.msra.mxu0 %v3507
        %v3509 = vand.u32 %v2409, 4294901760
        %v3510 = vsub.f32 %v2409, %v3509
        %3511 = vmatpush.msra.mxu0 %v3510
        %v3512 = vand.u32 %v3432, 4294901760
        %v3513 = vsub.f32 %v3432, %v3512
        %3514 = vmatmul.f32.gmra.mxu0 %v3513
        %v3515 = vpop.f32.mrf.mxu0
        %v3516 = vadd.f32 %v3490, %v3515
        %3517 = vdwg.mxu0
        %3518 = vmatpush.msra.mxu0 0.0
        %3519 = vmatpush.msra.mxu0 0.0
        %3520 = vmatpush.msra.mxu0 0.0
        %3521 = vmatpush.msra.mxu0 0.0
        %3522 = vmatpush.msra.mxu0 0.0
        %3523 = vmatpush.msra.mxu0 0.0
        %3524 = vmatpush.msra.mxu0 0.0
        %3525 = vmatpush.msra.mxu0 0.0
        %3526 = vmatpush.msra.mxu0 0.0
        %3527 = vmatpush.msra.mxu0 0.0
        %3528 = vmatpush.msra.mxu0 0.0
        %3529 = vmatpush.msra.mxu0 0.0
        %3530 = vmatpush.msra.mxu0 0.0
        %3531 = vmatpush.msra.mxu0 0.0
        %v3532 = vand.u32 %v2410, 4294901760
        %3533 = vmatpush.msra.mxu0 %v3532
        %v3534 = vand.u32 %v2409, 4294901760
        %3535 = vmatpush.msra.mxu0 %v3534
        %v3536 = vand.u32 %v3432, 4294901760
        %v3537 = vsub.f32 %v3432, %v3536
        %v3538 = vand.u32 %v3537, 4294901760
        %3539 = vmatmul.f32.gmra.mxu0 %v3538
        %v3540 = vpop.f32.mrf.mxu0
        %v3541 = vadd.f32 %v3516, %v3540
        %3542 = vdwg.mxu0
        %3543 = vmatpush.msra.mxu0 0.0
        %3544 = vmatpush.msra.mxu0 0.0
        %3545 = vmatpush.msra.mxu0 0.0
        %3546 = vmatpush.msra.mxu0 0.0
        %3547 = vmatpush.msra.mxu0 0.0
        %3548 = vmatpush.msra.mxu0 0.0
        %3549 = vmatpush.msra.mxu0 0.0
        %3550 = vmatpush.msra.mxu0 0.0
        %3551 = vmatpush.msra.mxu0 0.0
        %3552 = vmatpush.msra.mxu0 0.0
        %3553 = vmatpush.msra.mxu0 0.0
        %3554 = vmatpush.msra.mxu0 0.0
        %3555 = vmatpush.msra.mxu0 0.0
        %3556 = vmatpush.msra.mxu0 0.0
        %v3557 = vand.u32 %v2410, 4294901760
        %v3558 = vsub.f32 %v2410, %v3557
        %v3559 = vand.u32 %v3558, 4294901760
        %3560 = vmatpush.msra.mxu0 %v3559
        %v3561 = vand.u32 %v2409, 4294901760
        %v3562 = vsub.f32 %v2409, %v3561
        %v3563 = vand.u32 %v3562, 4294901760
        %3564 = vmatpush.msra.mxu0 %v3563
        %v3565 = vand.u32 %v3432, 4294901760
        %3566 = vmatmul.f32.gmra.mxu0 %v3565
        %v3567 = vpop.f32.mrf.mxu0
        %v3568 = vadd.f32 %v3541, %v3567
        %3569 = vdwg.mxu0
        %3570 = vmatpush.msra.mxu0 0.0
        %3571 = vmatpush.msra.mxu0 0.0
        %3572 = vmatpush.msra.mxu0 0.0
        %3573 = vmatpush.msra.mxu0 0.0
        %3574 = vmatpush.msra.mxu0 0.0
        %3575 = vmatpush.msra.mxu0 0.0
        %3576 = vmatpush.msra.mxu0 0.0
        %3577 = vmatpush.msra.mxu0 0.0
        %3578 = vmatpush.msra.mxu0 0.0
        %3579 = vmatpush.msra.mxu0 0.0
        %3580 = vmatpush.msra.mxu0 0.0
        %3581 = vmatpush.msra.mxu0 0.0
        %3582 = vmatpush.msra.mxu0 0.0
        %3583 = vmatpush.msra.mxu0 0.0
        %v3584 = vand.u32 %v2410, 4294901760
        %3585 = vmatpush.msra.mxu0 %v3584
        %v3586 = vand.u32 %v2409, 4294901760
        %3587 = vmatpush.msra.mxu0 %v3586
        %v3588 = vand.u32 %v3432, 4294901760
        %3589 = vmatmul.f32.gmra.mxu0 %v3588
        %v3590 = vpop.f32.mrf.mxu0
        %v3591 = vadd.f32 %v3568, %v3590
        %3592 = vdwg.mxu0
        %v3593 = vadd.f32 %v2400, %v3591
        %v3595 = vperm.slane %v2414, 0
        %v3597 = vadd.f32 %v3593, %v3595
        %s3598 = scalar_lea.vmem %s8, 1
        %v3599 = vld [vmem:[%s3598] sm:$0x1]
        %s3600 = scalar_lea.vmem %s9, 1
        %v3601 = vld [vmem:[%s3600] sm:$0x1]
        %v3602 = vsel %vm534, %v3597, 0.0
        %3603 = vadd.xlane.f32.xlu0 %v3602
        %v3604 = vpop.xlane.xlu0 %3603
        %v3605 = vmul.f32 %v3604, %v544
        %v3606 = vsub.f32 %v3597, %v3605
        %v3607 = vmul.f32 %v3606, %v3606
        %v3608 = vsel %vm534, %v3607, 0.0
        %3609 = vadd.xlane.f32.xlu0 %v3608
        %v3610 = vpop.xlane.xlu0 %3609
        %v3611 = vmul.f32 %v3610, %v544
        %v3612 = vadd.f32 %v3611, 1e-12
        %v3613 = vrsqrt.pop %v3612
        %v3614 = vmul.f32 %v3613, %v3612
        %v3615 = vmul.f32 %v3614, %v3613
        %v3616 = vmul.f32 0.5, %v3615
        %v3617 = vsub.f32 1.5, %v3616
        %v3618 = vmul.f32 %v3613, %v3617
        %vm3619 = vweird.f32 %v3612
        %vm3620 = vweird.f32 %v3613
        %vm3621 = vmor %vm3619, %vm3620
        %v3622 = vsel %vm3621, %v3613, %v3618
        %v3623 = vmul.f32 %v3606, %v3622
        %v3625 = vperm.slane %v3599, 0
        %v3627 = vmul.f32 %v3623, %v3625
        %v3629 = vperm.slane %v3601, 0
        %v3631 = vadd.f32 %v3627, %v3629
        %s3632 = scalar_lea.vmem %s10, 32
        %v3633 = vld [vmem:[%s3632] sm:$0xff]
        %v3634 = vld [vmem:[%s3632 + $0x8] sm:$0xff]
        %v3635 = vld [vmem:[%s3632 + $0x10] sm:$0xff]
        %v3636 = vld [vmem:[%s3632 + $0x18] sm:$0xff]
        %s3637 = scalar_lea.vmem %s11, 1
        %v3638 = vld [vmem:[%s3637] sm:$0x1]
        %v3640 = vperm.slane %v3638, 0
        %v3643 = vsel %vm534, %v3631, 0
        %3645 = vmatpush.msra.mxu0 0.0
        %3646 = vmatpush.msra.mxu0 0.0
        %3647 = vmatpush.msra.mxu0 0.0
        %3648 = vmatpush.msra.mxu0 0.0
        %3649 = vmatpush.msra.mxu0 0.0
        %3650 = vmatpush.msra.mxu0 0.0
        %3651 = vmatpush.msra.mxu0 0.0
        %3652 = vmatpush.msra.mxu0 0.0
        %3653 = vmatpush.msra.mxu0 0.0
        %3654 = vmatpush.msra.mxu0 0.0
        %3655 = vmatpush.msra.mxu0 0.0
        %3656 = vmatpush.msra.mxu0 0.0
        %v3657 = vand.u32 %v3636, 4294901760
        %3658 = vmatpush.msra.mxu0 %v3657
        %v3659 = vand.u32 %v3635, 4294901760
        %3660 = vmatpush.msra.mxu0 %v3659
        %v3661 = vand.u32 %v3634, 4294901760
        %3662 = vmatpush.msra.mxu0 %v3661
        %v3663 = vand.u32 %v3633, 4294901760
        %3664 = vmatpush.msra.mxu0 %v3663
        %v3665 = vand.u32 %v3643, 4294901760
        %v3666 = vsub.f32 %v3643, %v3665
        %v3667 = vand.u32 %v3666, 4294901760
        %v3668 = vsub.f32 %v3666, %v3667
        %v3669 = vand.u32 %v3668, 4294901760
        %3670 = vmatmul.f32.gmra.mxu0 %v3669
        %v3671 = vpop.f32.mrf.mxu0
        %v3672 = vadd.f32 %v3640, %v3671
        %3673 = vdwg.mxu0
        %3674 = vmatpush.msra.mxu0 0.0
        %3675 = vmatpush.msra.mxu0 0.0
        %3676 = vmatpush.msra.mxu0 0.0
        %3677 = vmatpush.msra.mxu0 0.0
        %3678 = vmatpush.msra.mxu0 0.0
        %3679 = vmatpush.msra.mxu0 0.0
        %3680 = vmatpush.msra.mxu0 0.0
        %3681 = vmatpush.msra.mxu0 0.0
        %3682 = vmatpush.msra.mxu0 0.0
        %3683 = vmatpush.msra.mxu0 0.0
        %3684 = vmatpush.msra.mxu0 0.0
        %3685 = vmatpush.msra.mxu0 0.0
        %v3686 = vand.u32 %v3636, 4294901760
        %v3687 = vsub.f32 %v3636, %v3686
        %v3688 = vand.u32 %v3687, 4294901760
        %v3689 = vsub.f32 %v3687, %v3688
        %v3690 = vand.u32 %v3689, 4294901760
        %3691 = vmatpush.msra.mxu0 %v3690
        %v3692 = vand.u32 %v3635, 4294901760
        %v3693 = vsub.f32 %v3635, %v3692
        %v3694 = vand.u32 %v3693, 4294901760
        %v3695 = vsub.f32 %v3693, %v3694
        %v3696 = vand.u32 %v3695, 4294901760
        %3697 = vmatpush.msra.mxu0 %v3696
        %v3698 = vand.u32 %v3634, 4294901760
        %v3699 = vsub.f32 %v3634, %v3698
        %v3700 = vand.u32 %v3699, 4294901760
        %v3701 = vsub.f32 %v3699, %v3700
        %v3702 = vand.u32 %v3701, 4294901760
        %3703 = vmatpush.msra.mxu0 %v3702
        %v3704 = vand.u32 %v3633, 4294901760
        %v3705 = vsub.f32 %v3633, %v3704
        %v3706 = vand.u32 %v3705, 4294901760
        %v3707 = vsub.f32 %v3705, %v3706
        %v3708 = vand.u32 %v3707, 4294901760
        %3709 = vmatpush.msra.mxu0 %v3708
        %v3710 = vand.u32 %v3643, 4294901760
        %3711 = vmatmul.f32.gmra.mxu0 %v3710
        %v3712 = vpop.f32.mrf.mxu0
        %v3713 = vadd.f32 %v3672, %v3712
        %3714 = vdwg.mxu0
        %3715 = vmatpush.msra.mxu0 0.0
        %3716 = vmatpush.msra.mxu0 0.0
        %3717 = vmatpush.msra.mxu0 0.0
        %3718 = vmatpush.msra.mxu0 0.0
        %3719 = vmatpush.msra.mxu0 0.0
        %3720 = vmatpush.msra.mxu0 0.0
        %3721 = vmatpush.msra.mxu0 0.0
        %3722 = vmatpush.msra.mxu0 0.0
        %3723 = vmatpush.msra.mxu0 0.0
        %3724 = vmatpush.msra.mxu0 0.0
        %3725 = vmatpush.msra.mxu0 0.0
        %3726 = vmatpush.msra.mxu0 0.0
        %v3727 = vand.u32 %v3636, 4294901760
        %v3728 = vsub.f32 %v3636, %v3727
        %3729 = vmatpush.msra.mxu0 %v3728
        %v3730 = vand.u32 %v3635, 4294901760
        %v3731 = vsub.f32 %v3635, %v3730
        %3732 = vmatpush.msra.mxu0 %v3731
        %v3733 = vand.u32 %v3634, 4294901760
        %v3734 = vsub.f32 %v3634, %v3733
        %3735 = vmatpush.msra.mxu0 %v3734
        %v3736 = vand.u32 %v3633, 4294901760
        %v3737 = vsub.f32 %v3633, %v3736
        %3738 = vmatpush.msra.mxu0 %v3737
        %v3739 = vand.u32 %v3643, 4294901760
        %v3740 = vsub.f32 %v3643, %v3739
        %3741 = vmatmul.f32.gmra.mxu0 %v3740
        %v3742 = vpop.f32.mrf.mxu0
        %v3743 = vadd.f32 %v3713, %v3742
        %3744 = vdwg.mxu0
        %3745 = vmatpush.msra.mxu0 0.0
        %3746 = vmatpush.msra.mxu0 0.0
        %3747 = vmatpush.msra.mxu0 0.0
        %3748 = vmatpush.msra.mxu0 0.0
        %3749 = vmatpush.msra.mxu0 0.0
        %3750 = vmatpush.msra.mxu0 0.0
        %3751 = vmatpush.msra.mxu0 0.0
        %3752 = vmatpush.msra.mxu0 0.0
        %3753 = vmatpush.msra.mxu0 0.0
        %3754 = vmatpush.msra.mxu0 0.0
        %3755 = vmatpush.msra.mxu0 0.0
        %3756 = vmatpush.msra.mxu0 0.0
        %v3757 = vand.u32 %v3636, 4294901760
        %3758 = vmatpush.msra.mxu0 %v3757
        %v3759 = vand.u32 %v3635, 4294901760
        %3760 = vmatpush.msra.mxu0 %v3759
        %v3761 = vand.u32 %v3634, 4294901760
        %3762 = vmatpush.msra.mxu0 %v3761
        %v3763 = vand.u32 %v3633, 4294901760
        %3764 = vmatpush.msra.mxu0 %v3763
        %v3765 = vand.u32 %v3643, 4294901760
        %v3766 = vsub.f32 %v3643, %v3765
        %v3767 = vand.u32 %v3766, 4294901760
        %3768 = vmatmul.f32.gmra.mxu0 %v3767
        %v3769 = vpop.f32.mrf.mxu0
        %v3770 = vadd.f32 %v3743, %v3769
        %3771 = vdwg.mxu0
        %3772 = vmatpush.msra.mxu0 0.0
        %3773 = vmatpush.msra.mxu0 0.0
        %3774 = vmatpush.msra.mxu0 0.0
        %3775 = vmatpush.msra.mxu0 0.0
        %3776 = vmatpush.msra.mxu0 0.0
        %3777 = vmatpush.msra.mxu0 0.0
        %3778 = vmatpush.msra.mxu0 0.0
        %3779 = vmatpush.msra.mxu0 0.0
        %3780 = vmatpush.msra.mxu0 0.0
        %3781 = vmatpush.msra.mxu0 0.0
        %3782 = vmatpush.msra.mxu0 0.0
        %3783 = vmatpush.msra.mxu0 0.0
        %v3784 = vand.u32 %v3636, 4294901760
        %v3785 = vsub.f32 %v3636, %v3784
        %v3786 = vand.u32 %v3785, 4294901760
        %3787 = vmatpush.msra.mxu0 %v3786
        %v3788 = vand.u32 %v3635, 4294901760
        %v3789 = vsub.f32 %v3635, %v3788
        %v3790 = vand.u32 %v3789, 4294901760
        %3791 = vmatpush.msra.mxu0 %v3790
        %v3792 = vand.u32 %v3634, 4294901760
        %v3793 = vsub.f32 %v3634, %v3792
        %v3794 = vand.u32 %v3793, 4294901760
        %3795 = vmatpush.msra.mxu0 %v3794
        %v3796 = vand.u32 %v3633, 4294901760
        %v3797 = vsub.f32 %v3633, %v3796
        %v3798 = vand.u32 %v3797, 4294901760
        %3799 = vmatpush.msra.mxu0 %v3798
        %v3800 = vand.u32 %v3643, 4294901760
        %3801 = vmatmul.f32.gmra.mxu0 %v3800
        %v3802 = vpop.f32.mrf.mxu0
        %v3803 = vadd.f32 %v3770, %v3802
        %3804 = vdwg.mxu0
        %3805 = vmatpush.msra.mxu0 0.0
        %3806 = vmatpush.msra.mxu0 0.0
        %3807 = vmatpush.msra.mxu0 0.0
        %3808 = vmatpush.msra.mxu0 0.0
        %3809 = vmatpush.msra.mxu0 0.0
        %3810 = vmatpush.msra.mxu0 0.0
        %3811 = vmatpush.msra.mxu0 0.0
        %3812 = vmatpush.msra.mxu0 0.0
        %3813 = vmatpush.msra.mxu0 0.0
        %3814 = vmatpush.msra.mxu0 0.0
        %3815 = vmatpush.msra.mxu0 0.0
        %3816 = vmatpush.msra.mxu0 0.0
        %v3817 = vand.u32 %v3636, 4294901760
        %3818 = vmatpush.msra.mxu0 %v3817
        %v3819 = vand.u32 %v3635, 4294901760
        %3820 = vmatpush.msra.mxu0 %v3819
        %v3821 = vand.u32 %v3634, 4294901760
        %3822 = vmatpush.msra.mxu0 %v3821
        %v3823 = vand.u32 %v3633, 4294901760
        %3824 = vmatpush.msra.mxu0 %v3823
        %v3825 = vand.u32 %v3643, 4294901760
        %3826 = vmatmul.f32.gmra.mxu0 %v3825
        %v3827 = vpop.f32.mrf.mxu0
        %v3828 = vadd.f32 %v3803, %v3827
        %3829 = vdwg.mxu0
        %v3830 = vmul.f32 %v3828, %v3828
        %v3831 = vmul.f32 %v3828, %v3830
        %v3832 = vmul.f32 %v3831, 0.044715
        %v3833 = vadd.f32 %v3828, %v3832
        %v3834 = vmul.f32 %v3833, 0.7978846
        %v3835 = vtanh.pop %v3834
        %v3836 = vadd.f32 %v3835, 1.0
        %v3837 = vmul.f32 %v3836, 0.5
        %v3838 = vmul.f32 %v3828, %v3837
        %s3839 = scalar_lea.vmem %s12, 128
        %v3840 = vld [vmem:[%s3839] sm:$0xff]
        %v3841 = vld [vmem:[%s3839 + $0x8] sm:$0xff]
        %v3842 = vld [vmem:[%s3839 + $0x10] sm:$0xff]
        %v3843 = vld [vmem:[%s3839 + $0x18] sm:$0xff]
        %v3844 = vld [vmem:[%s3839 + $0x20] sm:$0xff]
        %v3845 = vld [vmem:[%s3839 + $0x28] sm:$0xff]
        %v3846 = vld [vmem:[%s3839 + $0x30] sm:$0xff]
        %v3847 = vld [vmem:[%s3839 + $0x38] sm:$0xff]
        %v3848 = vld [vmem:[%s3839 + $0x40] sm:$0xff]
        %v3849 = vld [vmem:[%s3839 + $0x48] sm:$0xff]
        %v3850 = vld [vmem:[%s3839 + $0x50] sm:$0xff]
        %v3851 = vld [vmem:[%s3839 + $0x58] sm:$0xff]
        %v3852 = vld [vmem:[%s3839 + $0x60] sm:$0xff]
        %v3853 = vld [vmem:[%s3839 + $0x68] sm:$0xff]
        %v3854 = vld [vmem:[%s3839 + $0x70] sm:$0xff]
        %v3855 = vld [vmem:[%s3839 + $0x78] sm:$0xff]
        %s3856 = scalar_lea.vmem %s13, 1
        %v3857 = vld [vmem:[%s3856] sm:$0x1]
        %v3859 = vperm.slane %v3857, 0
        %v3861 = vand.u32 %v3855, 4294901760
        %3862 = vmatpush.msra.mxu0 %v3861
        %v3863 = vand.u32 %v3854, 4294901760
        %3864 = vmatpush.msra.mxu0 %v3863
        %v3865 = vand.u32 %v3853, 4294901760
        %3866 = vmatpush.msra.mxu0 %v3865
        %v3867 = vand.u32 %v3852, 4294901760
        %3868 = vmatpush.msra.mxu0 %v3867
        %v3869 = vand.u32 %v3851, 4294901760
        %3870 = vmatpush.msra.mxu0 %v3869
        %v3871 = vand.u32 %v3850, 4294901760
        %3872 = vmatpush.msra.mxu0 %v3871
        %v3873 = vand.u32 %v3849, 4294901760
        %3874 = vmatpush.msra.mxu0 %v3873
        %v3875 = vand.u32 %v3848, 4294901760
        %3876 = vmatpush.msra.mxu0 %v3875
        %v3877 = vand.u32 %v3847, 4294901760
        %3878 = vmatpush.msra.mxu0 %v3877
        %v3879 = vand.u32 %v3846, 4294901760
        %3880 = vmatpush.msra.mxu0 %v3879
        %v3881 = vand.u32 %v3845, 4294901760
        %3882 = vmatpush.msra.mxu0 %v3881
        %v3883 = vand.u32 %v3844, 4294901760
        %3884 = vmatpush.msra.mxu0 %v3883
        %v3885 = vand.u32 %v3843, 4294901760
        %3886 = vmatpush.msra.mxu0 %v3885
        %v3887 = vand.u32 %v3842, 4294901760
        %3888 = vmatpush.msra.mxu0 %v3887
        %v3889 = vand.u32 %v3841, 4294901760
        %3890 = vmatpush.msra.mxu0 %v3889
        %v3891 = vand.u32 %v3840, 4294901760
        %3892 = vmatpush.msra.mxu0 %v3891
        %v3893 = vand.u32 %v3838, 4294901760
        %v3894 = vsub.f32 %v3838, %v3893
        %v3895 = vand.u32 %v3894, 4294901760
        %v3896 = vsub.f32 %v3894, %v3895
        %v3897 = vand.u32 %v3896, 4294901760
        %3898 = vmatmul.f32.gmra.mxu0 %v3897
        %v3899 = vpop.f32.mrf.mxu0
        %v3900 = vadd.f32 %v3859, %v3899
        %3901 = vdwg.mxu0
        %v3902 = vand.u32 %v3855, 4294901760
        %v3903 = vsub.f32 %v3855, %v3902
        %v3904 = vand.u32 %v3903, 4294901760
        %v3905 = vsub.f32 %v3903, %v3904
        %v3906 = vand.u32 %v3905, 4294901760
        %3907 = vmatpush.msra.mxu0 %v3906
        %v3908 = vand.u32 %v3854, 4294901760
        %v3909 = vsub.f32 %v3854, %v3908
        %v3910 = vand.u32 %v3909, 4294901760
        %v3911 = vsub.f32 %v3909, %v3910
        %v3912 = vand.u32 %v3911, 4294901760
        %3913 = vmatpush.msra.mxu0 %v3912
        %v3914 = vand.u32 %v3853, 4294901760
        %v3915 = vsub.f32 %v3853, %v3914
        %v3916 = vand.u32 %v3915, 4294901760
        %v3917 = vsub.f32 %v3915, %v3916
        %v3918 = vand.u32 %v3917, 4294901760
        %3919 = vmatpush.msra.mxu0 %v3918
        %v3920 = vand.u32 %v3852, 4294901760
        %v3921 = vsub.f32 %v3852, %v3920
        %v3922 = vand.u32 %v3921, 4294901760
        %v3923 = vsub.f32 %v3921, %v3922
        %v3924 = vand.u32 %v3923, 4294901760
        %3925 = vmatpush.msra.mxu0 %v3924
        %v3926 = vand.u32 %v3851, 4294901760
        %v3927 = vsub.f32 %v3851, %v3926
        %v3928 = vand.u32 %v3927, 4294901760
        %v3929 = vsub.f32 %v3927, %v3928
        %v3930 = vand.u32 %v3929, 4294901760
        %3931 = vmatpush.msra.mxu0 %v3930
        %v3932 = vand.u32 %v3850, 4294901760
        %v3933 = vsub.f32 %v3850, %v3932
        %v3934 = vand.u32 %v3933, 4294901760
        %v3935 = vsub.f32 %v3933, %v3934
        %v3936 = vand.u32 %v3935, 4294901760
        %3937 = vmatpush.msra.mxu0 %v3936
        %v3938 = vand.u32 %v3849, 4294901760
        %v3939 = vsub.f32 %v3849, %v3938
        %v3940 = vand.u32 %v3939, 4294901760
        %v3941 = vsub.f32 %v3939, %v3940
        %v3942 = vand.u32 %v3941, 4294901760
        %3943 = vmatpush.msra.mxu0 %v3942
        %v3944 = vand.u32 %v3848, 4294901760
        %v3945 = vsub.f32 %v3848, %v3944
        %v3946 = vand.u32 %v3945, 4294901760
        %v3947 = vsub.f32 %v3945, %v3946
        %v3948 = vand.u32 %v3947, 4294901760
        %3949 = vmatpush.msra.mxu0 %v3948
        %v3950 = vand.u32 %v3847, 4294901760
        %v3951 = vsub.f32 %v3847, %v3950
        %v3952 = vand.u32 %v3951, 4294901760
        %v3953 = vsub.f32 %v3951, %v3952
        %v3954 = vand.u32 %v3953, 4294901760
        %3955 = vmatpush.msra.mxu0 %v3954
        %v3956 = vand.u32 %v3846, 4294901760
        %v3957 = vsub.f32 %v3846, %v3956
        %v3958 = vand.u32 %v3957, 4294901760
        %v3959 = vsub.f32 %v3957, %v3958
        %v3960 = vand.u32 %v3959, 4294901760
        %3961 = vmatpush.msra.mxu0 %v3960
        %v3962 = vand.u32 %v3845, 4294901760
        %v3963 = vsub.f32 %v3845, %v3962
        %v3964 = vand.u32 %v3963, 4294901760
        %v3965 = vsub.f32 %v3963, %v3964
        %v3966 = vand.u32 %v3965, 4294901760
        %3967 = vmatpush.msra.mxu0 %v3966
        %v3968 = vand.u32 %v3844, 4294901760
        %v3969 = vsub.f32 %v3844, %v3968
        %v3970 = vand.u32 %v3969, 4294901760
        %v3971 = vsub.f32 %v3969, %v3970
        %v3972 = vand.u32 %v3971, 4294901760
        %3973 = vmatpush.msra.mxu0 %v3972
        %v3974 = vand.u32 %v3843, 4294901760
        %v3975 = vsub.f32 %v3843, %v3974
        %v3976 = vand.u32 %v3975, 4294901760
        %v3977 = vsub.f32 %v3975, %v3976
        %v3978 = vand.u32 %v3977, 4294901760
        %3979 = vmatpush.msra.mxu0 %v3978
        %v3980 = vand.u32 %v3842, 4294901760
        %v3981 = vsub.f32 %v3842, %v3980
        %v3982 = vand.u32 %v3981, 4294901760
        %v3983 = vsub.f32 %v3981, %v3982
        %v3984 = vand.u32 %v3983, 4294901760
        %3985 = vmatpush.msra.mxu0 %v3984
        %v3986 = vand.u32 %v3841, 4294901760
        %v3987 = vsub.f32 %v3841, %v3986
        %v3988 = vand.u32 %v3987, 4294901760
        %v3989 = vsub.f32 %v3987, %v3988
        %v3990 = vand.u32 %v3989, 4294901760
        %3991 = vmatpush.msra.mxu0 %v3990
        %v3992 = vand.u32 %v3840, 4294901760
        %v3993 = vsub.f32 %v3840, %v3992
        %v3994 = vand.u32 %v3993, 4294901760
        %v3995 = vsub.f32 %v3993, %v3994
        %v3996 = vand.u32 %v3995, 4294901760
        %3997 = vmatpush.msra.mxu0 %v3996
        %v3998 = vand.u32 %v3838, 4294901760
        %3999 = vmatmul.f32.gmra.mxu0 %v3998
        %v4000 = vpop.f32.mrf.mxu0
        %v4001 = vadd.f32 %v3900, %v4000
        %4002 = vdwg.mxu0
        %v4003 = vand.u32 %v3855, 4294901760
        %v4004 = vsub.f32 %v3855, %v4003
        %4005 = vmatpush.msra.mxu0 %v4004
        %v4006 = vand.u32 %v3854, 4294901760
        %v4007 = vsub.f32 %v3854, %v4006
        %4008 = vmatpush.msra.mxu0 %v4007
        %v4009 = vand.u32 %v3853, 4294901760
        %v4010 = vsub.f32 %v3853, %v4009
        %4011 = vmatpush.msra.mxu0 %v4010
        %v4012 = vand.u32 %v3852, 4294901760
        %v4013 = vsub.f32 %v3852, %v4012
        %4014 = vmatpush.msra.mxu0 %v4013
        %v4015 = vand.u32 %v3851, 4294901760
        %v4016 = vsub.f32 %v3851, %v4015
        %4017 = vmatpush.msra.mxu0 %v4016
        %v4018 = vand.u32 %v3850, 4294901760
        %v4019 = vsub.f32 %v3850, %v4018
        %4020 = vmatpush.msra.mxu0 %v4019
        %v4021 = vand.u32 %v3849, 4294901760
        %v4022 = vsub.f32 %v3849, %v4021
        %4023 = vmatpush.msra.mxu0 %v4022
        %v4024 = vand.u32 %v3848, 4294901760
        %v4025 = vsub.f32 %v3848, %v4024
        %4026 = vmatpush.msra.mxu0 %v4025
        %v4027 = vand.u32 %v3847, 4294901760
        %v4028 = vsub.f32 %v3847, %v4027
        %4029 = vmatpush.msra.mxu0 %v4028
        %v4030 = vand.u32 %v3846, 4294901760
        %v4031 = vsub.f32 %v3846, %v4030
        %4032 = vmatpush.msra.mxu0 %v4031
        %v4033 = vand.u32 %v3845, 4294901760
        %v4034 = vsub.f32 %v3845, %v4033
        %4035 = vmatpush.msra.mxu0 %v4034
        %v4036 = vand.u32 %v3844, 4294901760
        %v4037 = vsub.f32 %v3844, %v4036
        %4038 = vmatpush.msra.mxu0 %v4037
        %v4039 = vand.u32 %v3843, 4294901760
        %v4040 = vsub.f32 %v3843, %v4039
        %4041 = vmatpush.msra.mxu0 %v4040
        %v4042 = vand.u32 %v3842, 4294901760
        %v4043 = vsub.f32 %v3842, %v4042
        %4044 = vmatpush.msra.mxu0 %v4043
        %v4045 = vand.u32 %v3841, 4294901760
        %v4046 = vsub.f32 %v3841, %v4045
        %4047 = vmatpush.msra.mxu0 %v4046
        %v4048 = vand.u32 %v3840, 4294901760
        %v4049 = vsub.f32 %v3840, %v4048
        %4050 = vmatpush.msra.mxu0 %v4049
        %v4051 = vand.u32 %v3838, 4294901760
        %v4052 = vsub.f32 %v3838, %v4051
        %4053 = vmatmul.f32.gmra.mxu0 %v4052
        %v4054 = vpop.f32.mrf.mxu0
        %v4055 = vadd.f32 %v4001, %v4054
        %4056 = vdwg.mxu0
        %v4057 = vand.u32 %v3855, 4294901760
        %4058 = vmatpush.msra.mxu0 %v4057
        %v4059 = vand.u32 %v3854, 4294901760
        %4060 = vmatpush.msra.mxu0 %v4059
        %v4061 = vand.u32 %v3853, 4294901760
        %4062 = vmatpush.msra.mxu0 %v4061
        %v4063 = vand.u32 %v3852, 4294901760
        %4064 = vmatpush.msra.mxu0 %v4063
        %v4065 = vand.u32 %v3851, 4294901760
        %4066 = vmatpush.msra.mxu0 %v4065
        %v4067 = vand.u32 %v3850, 4294901760
        %4068 = vmatpush.msra.mxu0 %v4067
        %v4069 = vand.u32 %v3849, 4294901760
        %4070 = vmatpush.msra.mxu0 %v4069
        %v4071 = vand.u32 %v3848, 4294901760
        %4072 = vmatpush.msra.mxu0 %v4071
        %v4073 = vand.u32 %v3847, 4294901760
        %4074 = vmatpush.msra.mxu0 %v4073
        %v4075 = vand.u32 %v3846, 4294901760
        %4076 = vmatpush.msra.mxu0 %v4075
        %v4077 = vand.u32 %v3845, 4294901760
        %4078 = vmatpush.msra.mxu0 %v4077
        %v4079 = vand.u32 %v3844, 4294901760
        %4080 = vmatpush.msra.mxu0 %v4079
        %v4081 = vand.u32 %v3843, 4294901760
        %4082 = vmatpush.msra.mxu0 %v4081
        %v4083 = vand.u32 %v3842, 4294901760
        %4084 = vmatpush.msra.mxu0 %v4083
        %v4085 = vand.u32 %v3841, 4294901760
        %4086 = vmatpush.msra.mxu0 %v4085
        %v4087 = vand.u32 %v3840, 4294901760
        %4088 = vmatpush.msra.mxu0 %v4087
        %v4089 = vand.u32 %v3838, 4294901760
        %v4090 = vsub.f32 %v3838, %v4089
        %v4091 = vand.u32 %v4090, 4294901760
        %4092 = vmatmul.f32.gmra.mxu0 %v4091
        %v4093 = vpop.f32.mrf.mxu0
        %v4094 = vadd.f32 %v4055, %v4093
        %4095 = vdwg.mxu0
        %v4096 = vand.u32 %v3855, 4294901760
        %v4097 = vsub.f32 %v3855, %v4096
        %v4098 = vand.u32 %v4097, 4294901760
        %4099 = vmatpush.msra.mxu0 %v4098
        %v4100 = vand.u32 %v3854, 4294901760
        %v4101 = vsub.f32 %v3854, %v4100
        %v4102 = vand.u32 %v4101, 4294901760
        %4103 = vmatpush.msra.mxu0 %v4102
        %v4104 = vand.u32 %v3853, 4294901760
        %v4105 = vsub.f32 %v3853, %v4104
        %v4106 = vand.u32 %v4105, 4294901760
        %4107 = vmatpush.msra.mxu0 %v4106
        %v4108 = vand.u32 %v3852, 4294901760
        %v4109 = vsub.f32 %v3852, %v4108
        %v4110 = vand.u32 %v4109, 4294901760
        %4111 = vmatpush.msra.mxu0 %v4110
        %v4112 = vand.u32 %v3851, 4294901760
        %v4113 = vsub.f32 %v3851, %v4112
        %v4114 = vand.u32 %v4113, 4294901760
        %4115 = vmatpush.msra.mxu0 %v4114
        %v4116 = vand.u32 %v3850, 4294901760
        %v4117 = vsub.f32 %v3850, %v4116
        %v4118 = vand.u32 %v4117, 4294901760
        %4119 = vmatpush.msra.mxu0 %v4118
        %v4120 = vand.u32 %v3849, 4294901760
        %v4121 = vsub.f32 %v3849, %v4120
        %v4122 = vand.u32 %v4121, 4294901760
        %4123 = vmatpush.msra.mxu0 %v4122
        %v4124 = vand.u32 %v3848, 4294901760
        %v4125 = vsub.f32 %v3848, %v4124
        %v4126 = vand.u32 %v4125, 4294901760
        %4127 = vmatpush.msra.mxu0 %v4126
        %v4128 = vand.u32 %v3847, 4294901760
        %v4129 = vsub.f32 %v3847, %v4128
        %v4130 = vand.u32 %v4129, 4294901760
        %4131 = vmatpush.msra.mxu0 %v4130
        %v4132 = vand.u32 %v3846, 4294901760
        %v4133 = vsub.f32 %v3846, %v4132
        %v4134 = vand.u32 %v4133, 4294901760
        %4135 = vmatpush.msra.mxu0 %v4134
        %v4136 = vand.u32 %v3845, 4294901760
        %v4137 = vsub.f32 %v3845, %v4136
        %v4138 = vand.u32 %v4137, 4294901760
        %4139 = vmatpush.msra.mxu0 %v4138
        %v4140 = vand.u32 %v3844, 4294901760
        %v4141 = vsub.f32 %v3844, %v4140
        %v4142 = vand.u32 %v4141, 4294901760
        %4143 = vmatpush.msra.mxu0 %v4142
        %v4144 = vand.u32 %v3843, 4294901760
        %v4145 = vsub.f32 %v3843, %v4144
        %v4146 = vand.u32 %v4145, 4294901760
        %4147 = vmatpush.msra.mxu0 %v4146
        %v4148 = vand.u32 %v3842, 4294901760
        %v4149 = vsub.f32 %v3842, %v4148
        %v4150 = vand.u32 %v4149, 4294901760
        %4151 = vmatpush.msra.mxu0 %v4150
        %v4152 = vand.u32 %v3841, 4294901760
        %v4153 = vsub.f32 %v3841, %v4152
        %v4154 = vand.u32 %v4153, 4294901760
        %4155 = vmatpush.msra.mxu0 %v4154
        %v4156 = vand.u32 %v3840, 4294901760
        %v4157 = vsub.f32 %v3840, %v4156
        %v4158 = vand.u32 %v4157, 4294901760
        %4159 = vmatpush.msra.mxu0 %v4158
        %v4160 = vand.u32 %v3838, 4294901760
        %4161 = vmatmul.f32.gmra.mxu0 %v4160
        %v4162 = vpop.f32.mrf.mxu0
        %v4163 = vadd.f32 %v4094, %v4162
        %4164 = vdwg.mxu0
        %v4165 = vand.u32 %v3855, 4294901760
        %4166 = vmatpush.msra.mxu0 %v4165
        %v4167 = vand.u32 %v3854, 4294901760
        %4168 = vmatpush.msra.mxu0 %v4167
        %v4169 = vand.u32 %v3853, 4294901760
        %4170 = vmatpush.msra.mxu0 %v4169
        %v4171 = vand.u32 %v3852, 4294901760
        %4172 = vmatpush.msra.mxu0 %v4171
        %v4173 = vand.u32 %v3851, 4294901760
        %4174 = vmatpush.msra.mxu0 %v4173
        %v4175 = vand.u32 %v3850, 4294901760
        %4176 = vmatpush.msra.mxu0 %v4175
        %v4177 = vand.u32 %v3849, 4294901760
        %4178 = vmatpush.msra.mxu0 %v4177
        %v4179 = vand.u32 %v3848, 4294901760
        %4180 = vmatpush.msra.mxu0 %v4179
        %v4181 = vand.u32 %v3847, 4294901760
        %4182 = vmatpush.msra.mxu0 %v4181
        %v4183 = vand.u32 %v3846, 4294901760
        %4184 = vmatpush.msra.mxu0 %v4183
        %v4185 = vand.u32 %v3845, 4294901760
        %4186 = vmatpush.msra.mxu0 %v4185
        %v4187 = vand.u32 %v3844, 4294901760
        %4188 = vmatpush.msra.mxu0 %v4187
        %v4189 = vand.u32 %v3843, 4294901760
        %4190 = vmatpush.msra.mxu0 %v4189
        %v4191 = vand.u32 %v3842, 4294901760
        %4192 = vmatpush.msra.mxu0 %v4191
        %v4193 = vand.u32 %v3841, 4294901760
        %4194 = vmatpush.msra.mxu0 %v4193
        %v4195 = vand.u32 %v3840, 4294901760
        %4196 = vmatpush.msra.mxu0 %v4195
        %v4197 = vand.u32 %v3838, 4294901760
        %4198 = vmatmul.f32.gmra.mxu0 %v4197
        %v4199 = vpop.f32.mrf.mxu0
        %v4200 = vadd.f32 %v4163, %v4199
        %4201 = vdwg.mxu0
        %v4202 = vadd.f32 %v3631, %v4200
        %s4203 = scalar_lea.vmem %s14, 1
        %v4204 = vld [vmem:[%s4203] sm:$0x1]
        %s4205 = scalar_lea.vmem %s15, 1
        %v4206 = vld [vmem:[%s4205] sm:$0x1]
        %v4207 = vsel %vm534, %v4202, 0.0
        %4208 = vadd.xlane.f32.xlu0 %v4207
        %v4209 = vpop.xlane.xlu0 %4208
        %v4210 = vmul.f32 %v4209, %v544
        %v4211 = vsub.f32 %v4202, %v4210
        %v4212 = vmul.f32 %v4211, %v4211
        %v4213 = vsel %vm534, %v4212, 0.0
        %4214 = vadd.xlane.f32.xlu0 %v4213
        %v4215 = vpop.xlane.xlu0 %4214
        %v4216 = vmul.f32 %v4215, %v544
        %v4217 = vadd.f32 %v4216, 1e-12
        %v4218 = vrsqrt.pop %v4217
        %v4219 = vmul.f32 %v4218, %v4217
        %v4220 = vmul.f32 %v4219, %v4218
        %v4221 = vmul.f32 0.5, %v4220
        %v4222 = vsub.f32 1.5, %v4221
        %v4223 = vmul.f32 %v4218, %v4222
        %vm4224 = vweird.f32 %v4217
        %vm4225 = vweird.f32 %v4218
        %vm4226 = vmor %vm4224, %vm4225
        %v4227 = vsel %vm4226, %v4218, %v4223
        %v4228 = vmul.f32 %v4211, %v4227
        %v4230 = vperm.slane %v4204, 0
        %v4232 = vmul.f32 %v4228, %v4230
        %v4234 = vperm.slane %v4206, 0
        %v4236 = vadd.f32 %v4232, %v4234
        %v4237 = vmax.f32 %v4236, 0.0
        %vm4238 = vcmask 253952
        %4239 = vst.msk [vmem:[%s522] sm:$0x1] %vm4238, %v4237
        %s4240 = sand.u32 %s384, 1
        %s4241 = scalar_lea.sflag [#allocation3], %s4240
        %s4242 = sand.u32 %s384, 1
        %s4243 = scalar_lea.vmem [#allocation2], %s4242
        // Predicated region
        $region85: #{tpu_custom_call.1} parent=83 // pred_check
          %p4244 = pneg %p394
        $region86: #{tpu_custom_call.1} parent=83 // pred_check_branch
          %4246 = sbr.rel (%p4244) target = $region88
        $region87: #{tpu_custom_call.1} parent=83 // pred_region
          %4248 = vsyncadd %s4241, 0
          %s4249 = scalar_lea.hbm %s16, %s30
          %s4251 = sshll.u32 %s4243, 4
          %s4252 = int_to_ptr.vmem [resolvable:$true] %s4251
          %s4253 = sshll.u32 %s4249, 4
          %s4254 = int_to_ptr.hbm [resolvable:$true] %s4253
          %4256 = dma.vmem_to_hbm [thread:$0]  %s4252, 16, %s4254, %s4241
        $region88: #{tpu_custom_call.1} parent=83 // pred_fallthru
          _
      $region84: #{tpu_custom_call.1} parent=5 // pred_fallthru
        _
      %p4257 = scmp.le.s32.totalorder 2, %s25
      // Predicated region
      $region89: #{tpu_custom_call.1} parent=5 // pred_check
        %p4258 = pneg %p4257
      $region90: #{tpu_custom_call.1} parent=5 // pred_check_branch
        %4260 = sbr.rel (%p4258) target = $region92
      $region91: #{tpu_custom_call.1} parent=5 // pred_region
        %s4261 = ssub.s32 %s25, 2
        // Predicated region
        $region93: #{tpu_custom_call.1} parent=91 // pred_check
          %p4262 = pneg %p400
        $region94: #{tpu_custom_call.1} parent=91 // pred_check_branch
          %4264 = sbr.rel (%p4262) target = $region96
        $region95: #{tpu_custom_call.1} parent=91 // pred_region
          %s4265 = sand.u32 %s385, 1
          %s4266 = scalar_lea.sflag [#allocation3], %s4265
          %s4267 = sand.u32 %s385, 1
          %s4268 = scalar_lea.vmem [#allocation2], %s4267
          %4270 = dma.done %s4266, 16
        $region96: #{tpu_custom_call.1} parent=91 // pred_fallthru
          _
      $region92: #{tpu_custom_call.1} parent=5 // pred_fallthru
        _
    $region6: #{tpu_custom_call.1} parent=1 // loop_footer
      %s29 = sadd.s32 1, %s25
    $region7: #{tpu_custom_call.1} parent=1 // loop_footer_branch
      %24 = sbr.rel target = $region3
    $region8: #{tpu_custom_call.1} parent=1 // loop_exit
      _
    %4271 = vsyncpa [#allocation3], 1
    %s4272 = scalar_lea.sflag [#allocation3], 1
    %4273 = vsyncpa %s4272, 1

</llo_original>
